<compile_context>
chip_gen: v7x
topology: tpu7x:2x2x1
jax: 0.10.0
libtpu: 0.0.40
codegen_flags: <defaults>
</compile_context>

<pallas_src>
import functools
import math

import jax
import jax.numpy as jnp
import numpy as np
from jax.experimental import pallas as pl
from jax.experimental.pallas import tpu as pltpu


# ----------------------------- kernel helpers ------------------------------ #

def _layer_norm(x, w, b, eps):
    mean = jnp.mean(x, axis=-1, keepdims=True)
    var = jnp.mean((x - mean) ** 2, axis=-1, keepdims=True)
    return (x - mean) * jax.lax.rsqrt(var + eps) * w + b


def _mha(q2, k2, v2, *, nhead, hd, cdt, mask=None):
    """Multi-head attention on one batch element.

    q2: (Lq, E) f32, k2/v2: (Lk, E) f32.  Heads become a small leading batch
    dim; scores and PV are two leading-batch einsums with bf16 operands and
    f32 accumulation.  Softmax normalization is deferred to the (H, Lq, hd)
    output (EUP approx reciprocal instead of O(Lq*Lk) VALU divides).
    """
    Lq, E = q2.shape
    Lk = k2.shape[0]
    qh = jnp.transpose(q2.reshape(Lq, nhead, hd), (1, 0, 2)).astype(cdt)
    kh = jnp.transpose(k2.reshape(Lk, nhead, hd), (1, 0, 2)).astype(cdt)
    vh = jnp.transpose(v2.reshape(Lk, nhead, hd), (1, 0, 2)).astype(cdt)

    # Q was pre-scaled by 1/sqrt(hd) at trace time -> no score scaling here.
    s = jnp.einsum("hqd,hkd->hqk", qh, kh,
                   preferred_element_type=jnp.float32)            # (H, Lq, Lk)
    if mask is not None:
        s = jnp.where(mask[None], s, jnp.float32(-1e30))
    # TODO(synk): at production L/S, tile over KV blocks (flash-style online
    # softmax for self-attn; only the 1-2 band-intersecting key tiles for the
    # sliding-window cross-attn) instead of materializing (H, Lq, Lk) scores.
    s = s - jnp.max(s, axis=-1, keepdims=True)
    p = jnp.exp(s)
    inv_l = pl.reciprocal(jnp.sum(p, axis=-1, keepdims=True), approx=True)
    o = jnp.einsum("hqk,hkd->hqd", p.astype(cdt), vh,
                   preferred_element_type=jnp.float32)            # (H, Lq, hd)
    o = o * inv_l
    # TODO(synk): for production hd (64/128), pack 2-4 heads per MXU pass so the
    # contracted / produced dims reach >=256 on v6e/v7x.
    return jnp.transpose(o, (1, 0, 2)).reshape(Lq, E)


# -------------------------------- kernel ----------------------------------- #

def _decoder_kernel(x_ref, mem_ref,
                    sa_q_w, sa_k_w, sa_v_w, sa_out_w,
                    ca_q_w, ca_k_w, ca_v_w, ca_out_w,
                    l1_w, l2_w, l1_b, vec_b,
                    out_ref,
                    *, nhead, window_size, eps, L, S):
    E = x_ref.shape[-1]
    hd = E // nhead
    cdt = sa_q_w.dtype                 # bf16 compute dtype for all MXU operands

    x = x_ref[0]                       # (L, E) f32, one batch element
    mem_c = mem_ref[0].astype(cdt)     # (S, E) bf16 (only ever a matmul operand)

    vecs = vec_b[...]                  # (15, E) packed f32 vectors
    (sa_q_b, sa_k_b, sa_v_b, sa_out_b,
     ca_q_b, ca_k_b, ca_v_b, ca_out_b, l2_b,
     ln1_w, ln1_b, ln2_w, ln2_b, ln3_w, ln3_b) = [vecs[i] for i in range(15)]

    # ---------------- self-attention block + norm1 (post-norm) --------------
    xc = x.astype(cdt)
    q = jnp.dot(xc, sa_q_w[...], preferred_element_type=jnp.float32) + sa_q_b
    k = jnp.dot(xc, sa_k_w[...], preferred_element_type=jnp.float32) + sa_k_b
    v = jnp.dot(xc, sa_v_w[...], preferred_element_type=jnp.float32) + sa_v_b
    sa = _mha(q, k, v, nhead=nhead, hd=hd, cdt=cdt)
    sa = jnp.dot(sa.astype(cdt), sa_out_w[...],
                 preferred_element_type=jnp.float32) + sa_out_b
    x = _layer_norm(x + sa, ln1_w, ln1_b, eps)

    # ------------- sliding-window cross-attention block + norm2 -------------
    xc = x.astype(cdt)
    q = jnp.dot(xc, ca_q_w[...], preferred_element_type=jnp.float32) + ca_q_b
    k = jnp.dot(mem_c, ca_k_w[...], preferred_element_type=jnp.float32) + ca_k_b
    v = jnp.dot(mem_c, ca_v_w[...], preferred_element_type=jnp.float32) + ca_v_b
    qi = jax.lax.broadcasted_iota(jnp.int32, (L, S), 0)
    kj = jax.lax.broadcasted_iota(jnp.int32, (L, S), 1)
    band = jnp.abs(qi - kj) <= (window_size // 2)
    ca = _mha(q, k, v, nhead=nhead, hd=hd, cdt=cdt, mask=band)
    ca = jnp.dot(ca.astype(cdt), ca_out_w[...],
                 preferred_element_type=jnp.float32) + ca_out_b
    x = _layer_norm(x + ca, ln2_w, ln2_b, eps)

    # ------------------------- feed-forward + norm3 --------------------------
    h = jnp.dot(x.astype(cdt), l1_w[...],
                preferred_element_type=jnp.float32) + l1_b[...]
    h = jnp.maximum(h, 0.0)            # relu
    ff = jnp.dot(h.astype(cdt), l2_w[...],
                 preferred_element_type=jnp.float32) + l2_b
    x = _layer_norm(x + ff, ln3_w, ln3_b, eps)

    out_ref[0] = x


# ------------------------------- wrapper ------------------------------------ #

def interaction_decoder(tgt, memory, params, *, nhead, window_size=3,
                        eps=1e-5, compute_dtype=jnp.bfloat16):
    """tgt: (L, N, E), memory: (S, N, E)  (PyTorch batch_first=False layout)."""
    L, N, E = tgt.shape
    S = memory.shape[0]
    FF = params["l1_w_t"].shape[1]
    hd = E // nhead
    scale = 1.0 / math.sqrt(hd)
    cdt = compute_dtype

    # Batch-major layout: each grid step gets one batch element as a contiguous
    # (1, L, E) block; Q/K/V are produced per batch element inside the kernel.
    x_b = jnp.transpose(tgt, (1, 0, 2))        # (N, L, E)
    mem_b = jnp.transpose(memory, (1, 0, 2))   # (N, S, E)

    # ---- trace-time parameter repacking (zero in-kernel cost) ----
    # Split fused in_proj weights into Q/K/V (E % 128 != 0 -> in-kernel lane
    # slices of a fused result would relayout), fold 1/sqrt(hd) into Q, cast
    # weight matrices to bf16 for the MXU, pack all (1, E) vectors together.
    sa_w, sa_b = params["sa_in_w_t"], params["sa_in_b"]
    ca_w, ca_b = params["ca_in_w_t"], params["ca_in_b"]
    weights = (
        (sa_w[:, :E] * scale).astype(cdt), sa_w[:, E:2 * E].astype(cdt),
        sa_w[:, 2 * E:].astype(cdt), params["sa_out_w_t"].astype(cdt),
        (ca_w[:, :E] * scale).astype(cdt), ca_w[:, E:2 * E].astype(cdt),
        ca_w[:, 2 * E:].astype(cdt), params["ca_out_w_t"].astype(cdt),
        params["l1_w_t"].astype(cdt), params["l2_w_t"].astype(cdt),
    )
    vec_b = jnp.concatenate([
        sa_b[:, :E] * scale, sa_b[:, E:2 * E], sa_b[:, 2 * E:], params["sa_out_b"],
        ca_b[:, :E] * scale, ca_b[:, E:2 * E], ca_b[:, 2 * E:], params["ca_out_b"],
        params["l2_b"],
        params["ln1_w"], params["ln1_b"], params["ln2_w"], params["ln2_b"],
        params["ln3_w"], params["ln3_b"],
    ], axis=0)                                  # (15, E) f32

    kernel = functools.partial(_decoder_kernel, nhead=nhead,
                               window_size=window_size, eps=eps, L=L, S=S)

    # Weights/biases: constant index_map -> fetched once, VMEM-resident.
    resident = lambda shape: pl.BlockSpec(shape, lambda n: (0,) * len(shape))
    in_specs = (
        [pl.BlockSpec((1, L, E), lambda n: (n, 0, 0)),
         pl.BlockSpec((1, S, E), lambda n: (n, 0, 0))]
        + [resident(w.shape) for w in weights]
        + [resident((1, FF)), resident((15, E))]
    )

    # TODO(synk): at production sizes, also tile L within each batch step, pad
    # E to a lane-dense 128 multiple for the output, and set
    # CompilerParams(vmem_limit_bytes=...) to cover the resident bf16 weights
    # (64 MiB VMEM budget on v7x).
    out = pl.pallas_call(
        kernel,
        grid=(N,),
        in_specs=in_specs,
        out_specs=pl.BlockSpec((1, L, E), lambda n: (n, 0, 0)),
        out_shape=jax.ShapeDtypeStruct((N, L, E), jnp.float32),
        compiler_params=pltpu.CompilerParams(
            dimension_semantics=("parallel",)),
    )(x_b, mem_b, *weights, params["l1_b"], vec_b)

    return jnp.transpose(out, (1, 0, 2))        # back to (L, N, E)


# --------------------------- pure-JAX reference ----------------------------- #

def _ref_forward(tgt, memory, params, *, nhead, window_size=3, eps=1e-5):
    def ln(x, w, b):
        m = jnp.mean(x, -1, keepdims=True)
        v = jnp.mean((x - m) ** 2, -1, keepdims=True)
        return (x - m) / jnp.sqrt(v + eps) * w[0] + b[0]

    def mha(q_in, kv_in, wt, b, ow, ob, mask=None):
        E = q_in.shape[-1]
        hd = E // nhead
        q = q_in @ wt[:, :E] + b[0, :E]
        k = kv_in @ wt[:, E:2 * E] + b[0, E:2 * E]
        v = kv_in @ wt[:, 2 * E:] + b[0, 2 * E:]
        outs = []
        for h in range(nhead):
            sl = slice(h * hd, (h + 1) * hd)
            s = q[:, sl] @ k[:, sl].T / math.sqrt(hd)
            if mask is not None:
                s = jnp.where(mask, s, -1e30)
            p = jax.nn.softmax(s, axis=-1)
            outs.append(p @ v[:, sl])
        return jnp.concatenate(outs, -1) @ ow + ob[0]

    L, N, E = tgt.shape
    S = memory.shape[0]
    band = jnp.abs(jnp.arange(L)[:, None] - jnp.arange(S)[None, :]) <= (window_size // 2)
    outs = []
    for n in range(N):
        x = tgt[:, n]
        mem = memory[:, n]
        x = ln(x + mha(x, x, params["sa_in_w_t"], params["sa_in_b"],
                       params["sa_out_w_t"], params["sa_out_b"]),
               params["ln1_w"], params["ln1_b"])
        x = ln(x + mha(x, mem, params["ca_in_w_t"], params["ca_in_b"],
                       params["ca_out_w_t"], params["ca_out_b"], mask=band),
               params["ln2_w"], params["ln2_b"])
        ff = jnp.maximum(x @ params["l1_w_t"] + params["l1_b"][0], 0.0) @ params["l2_w_t"] + params["l2_b"][0]
        x = ln(x + ff, params["ln3_w"], params["ln3_b"])
        outs.append(x)
    return jnp.stack(outs, axis=1)


# --------------------------------- main -------------------------------------- #

def _make_params(key, d_model, nhead, dim_ff):
    E, FF = d_model, dim_ff
    ks = jax.random.split(key, 12)
    n = lambda k, s: (jax.random.normal(k, s, jnp.float32) * 0.05)
    params = {
        # weights are stored pre-transposed (in_features, out_features) so the
        # kernel does plain x @ W without in-kernel transposes
        "sa_in_w_t": n(ks[0], (E, 3 * E)), "sa_in_b": n(ks[1], (1, 3 * E)),
        "sa_out_w_t": n(ks[2], (E, E)),    "sa_out_b": n(ks[3], (1, E)),
        "ca_in_w_t": n(ks[4], (E, 3 * E)), "ca_in_b": n(ks[5], (1, 3 * E)),
        "ca_out_w_t": n(ks[6], (E, E)),    "ca_out_b": n(ks[7], (1, E)),
        "ln1_w": jnp.ones((1, E), jnp.float32), "ln1_b": jnp.zeros((1, E), jnp.float32),
        "ln2_w": jnp.ones((1, E), jnp.float32), "ln2_b": jnp.zeros((1, E), jnp.float32),
        "ln3_w": jnp.ones((1, E), jnp.float32), "ln3_b": jnp.zeros((1, E), jnp.float32),
        "l1_w_t": n(ks[8], (E, FF)), "l1_b": n(ks[9], (1, FF)),
        "l2_w_t": n(ks[10], (FF, E)), "l2_b": n(ks[11], (1, E)),
    }
    return params


if __name__ == "__main__":
    d_model, nhead, dim_ff = 32, 4, 64
    L, S, N = 8, 8, 2   # tgt len, memory len, batch
    window_size = 3

    key = jax.random.PRNGKey(0)
    k_t, k_m, k_p = jax.random.split(key, 3)
    tgt = jax.random.normal(k_t, (L, N, d_model), jnp.float32)
    memory = jax.random.normal(k_m, (S, N, d_model), jnp.float32)
    params = _make_params(k_p, d_model, nhead, dim_ff)

    out = interaction_decoder(tgt, memory, params, nhead=nhead, window_size=window_size)
    out = jax.block_until_ready(out)

    ref = _ref_forward(tgt, memory, params, nhead=nhead, window_size=window_size)
    assert out.shape == (L, N, d_model)
    # bf16 MXU operands + approx reciprocal -> loose-but-safe tolerance vs f32 ref.
    np.testing.assert_allclose(np.asarray(out), np.asarray(ref), rtol=3e-2, atol=3e-2)

    print("KERNEL_OK")
</pallas_src>

<mosaic_0001>
module attributes {stable_mosaic.version = 11 : i64} {
  func.func @_decoder_kernel(%arg0: i32, %arg1: memref<1x8x32xf32, #tpu.memory_space<vmem>>, %arg2: memref<1x8x32xf32, #tpu.memory_space<vmem>>, %arg3: memref<32x32xbf16, #tpu.memory_space<vmem>>, %arg4: memref<32x32xbf16, #tpu.memory_space<vmem>>, %arg5: memref<32x32xbf16, #tpu.memory_space<vmem>>, %arg6: memref<32x32xbf16, #tpu.memory_space<vmem>>, %arg7: memref<32x32xbf16, #tpu.memory_space<vmem>>, %arg8: memref<32x32xbf16, #tpu.memory_space<vmem>>, %arg9: memref<32x32xbf16, #tpu.memory_space<vmem>>, %arg10: memref<32x32xbf16, #tpu.memory_space<vmem>>, %arg11: memref<32x64xbf16, #tpu.memory_space<vmem>>, %arg12: memref<64x32xbf16, #tpu.memory_space<vmem>>, %arg13: memref<1x64xf32, #tpu.memory_space<vmem>>, %arg14: memref<15x32xf32, #tpu.memory_space<vmem>>, %arg15: memref<1x8x32xf32, #tpu.memory_space<vmem>>) attributes {dimension_semantics = [#tpu.dimension_semantics<parallel>], iteration_bounds = array<i64: 2>, scalar_prefetch = 0 : i64, scratch_operands = 0 : i64, tpu.core_type = #tpu.core_type<tc>, window_params = [{transform_indices = @transform_0, window_bounds = array<i64: 1, 8, 32>}, {transform_indices = @transform_1, window_bounds = array<i64: 1, 8, 32>}, {pipeline_mode = #tpu.pipeline_mode<synchronous>, transform_indices = @transform_2, window_bounds = array<i64: 32, 32>}, {pipeline_mode = #tpu.pipeline_mode<synchronous>, transform_indices = @transform_3, window_bounds = array<i64: 32, 32>}, {pipeline_mode = #tpu.pipeline_mode<synchronous>, transform_indices = @transform_4, window_bounds = array<i64: 32, 32>}, {pipeline_mode = #tpu.pipeline_mode<synchronous>, transform_indices = @transform_5, window_bounds = array<i64: 32, 32>}, {pipeline_mode = #tpu.pipeline_mode<synchronous>, transform_indices = @transform_6, window_bounds = array<i64: 32, 32>}, {pipeline_mode = #tpu.pipeline_mode<synchronous>, transform_indices = @transform_7, window_bounds = array<i64: 32, 32>}, {pipeline_mode = #tpu.pipeline_mode<synchronous>, transform_indices = @transform_8, window_bounds = array<i64: 32, 32>}, {pipeline_mode = #tpu.pipeline_mode<synchronous>, transform_indices = @transform_9, window_bounds = array<i64: 32, 32>}, {pipeline_mode = #tpu.pipeline_mode<synchronous>, transform_indices = @transform_10, window_bounds = array<i64: 32, 64>}, {pipeline_mode = #tpu.pipeline_mode<synchronous>, transform_indices = @transform_11, window_bounds = array<i64: 64, 32>}, {pipeline_mode = #tpu.pipeline_mode<synchronous>, transform_indices = @transform_12, window_bounds = array<i64: 1, 64>}, {pipeline_mode = #tpu.pipeline_mode<synchronous>, transform_indices = @transform_13, window_bounds = array<i64: 15, 32>}, {transform_indices = @transform_14, window_bounds = array<i64: 1, 8, 32>}]} {
    %c0 = arith.constant 0 : index
    %c0_0 = arith.constant 0 : index
    %c0_1 = arith.constant 0 : index
    %0 = vector.load %arg1[%c0, %c0_0, %c0_1] : memref<1x8x32xf32, #tpu.memory_space<vmem>>, vector<1x8x32xf32>
    %1 = vector.shape_cast %0 : vector<1x8x32xf32> to vector<8x32xf32>
    %c0_2 = arith.constant 0 : index
    %c0_3 = arith.constant 0 : index
    %c0_4 = arith.constant 0 : index
    %2 = vector.load %arg2[%c0_2, %c0_3, %c0_4] : memref<1x8x32xf32, #tpu.memory_space<vmem>>, vector<1x8x32xf32>
    %3 = vector.shape_cast %2 : vector<1x8x32xf32> to vector<8x32xf32>
    %4 = arith.truncf %3 : vector<8x32xf32> to vector<8x32xbf16>
    %c0_5 = arith.constant 0 : index
    %c0_6 = arith.constant 0 : index
    %5 = vector.load %arg14[%c0_5, %c0_6] : memref<15x32xf32, #tpu.memory_space<vmem>>, vector<15x32xf32>
    %6 = vector.extract_strided_slice %5 {offsets = [0, 0], sizes = [1, 32], strides = [1, 1]} : vector<15x32xf32> to vector<1x32xf32>
    %7 = vector.shape_cast %6 : vector<1x32xf32> to vector<32xf32>
    %8 = vector.extract_strided_slice %5 {offsets = [1, 0], sizes = [1, 32], strides = [1, 1]} : vector<15x32xf32> to vector<1x32xf32>
    %9 = vector.shape_cast %8 : vector<1x32xf32> to vector<32xf32>
    %10 = vector.extract_strided_slice %5 {offsets = [2, 0], sizes = [1, 32], strides = [1, 1]} : vector<15x32xf32> to vector<1x32xf32>
    %11 = vector.shape_cast %10 : vector<1x32xf32> to vector<32xf32>
    %12 = vector.extract_strided_slice %5 {offsets = [3, 0], sizes = [1, 32], strides = [1, 1]} : vector<15x32xf32> to vector<1x32xf32>
    %13 = vector.shape_cast %12 : vector<1x32xf32> to vector<32xf32>
    %14 = vector.extract_strided_slice %5 {offsets = [4, 0], sizes = [1, 32], strides = [1, 1]} : vector<15x32xf32> to vector<1x32xf32>
    %15 = vector.shape_cast %14 : vector<1x32xf32> to vector<32xf32>
    %16 = vector.extract_strided_slice %5 {offsets = [5, 0], sizes = [1, 32], strides = [1, 1]} : vector<15x32xf32> to vector<1x32xf32>
    %17 = vector.shape_cast %16 : vector<1x32xf32> to vector<32xf32>
    %18 = vector.extract_strided_slice %5 {offsets = [6, 0], sizes = [1, 32], strides = [1, 1]} : vector<15x32xf32> to vector<1x32xf32>
    %19 = vector.shape_cast %18 : vector<1x32xf32> to vector<32xf32>
    %20 = vector.extract_strided_slice %5 {offsets = [7, 0], sizes = [1, 32], strides = [1, 1]} : vector<15x32xf32> to vector<1x32xf32>
    %21 = vector.shape_cast %20 : vector<1x32xf32> to vector<32xf32>
    %22 = vector.extract_strided_slice %5 {offsets = [8, 0], sizes = [1, 32], strides = [1, 1]} : vector<15x32xf32> to vector<1x32xf32>
    %23 = vector.shape_cast %22 : vector<1x32xf32> to vector<32xf32>
    %24 = vector.extract_strided_slice %5 {offsets = [9, 0], sizes = [1, 32], strides = [1, 1]} : vector<15x32xf32> to vector<1x32xf32>
    %25 = vector.shape_cast %24 : vector<1x32xf32> to vector<32xf32>
    %26 = vector.extract_strided_slice %5 {offsets = [10, 0], sizes = [1, 32], strides = [1, 1]} : vector<15x32xf32> to vector<1x32xf32>
    %27 = vector.shape_cast %26 : vector<1x32xf32> to vector<32xf32>
    %28 = vector.extract_strided_slice %5 {offsets = [11, 0], sizes = [1, 32], strides = [1, 1]} : vector<15x32xf32> to vector<1x32xf32>
    %29 = vector.shape_cast %28 : vector<1x32xf32> to vector<32xf32>
    %30 = vector.extract_strided_slice %5 {offsets = [12, 0], sizes = [1, 32], strides = [1, 1]} : vector<15x32xf32> to vector<1x32xf32>
    %31 = vector.shape_cast %30 : vector<1x32xf32> to vector<32xf32>
    %32 = vector.extract_strided_slice %5 {offsets = [13, 0], sizes = [1, 32], strides = [1, 1]} : vector<15x32xf32> to vector<1x32xf32>
    %33 = vector.shape_cast %32 : vector<1x32xf32> to vector<32xf32>
    %34 = vector.extract_strided_slice %5 {offsets = [14, 0], sizes = [1, 32], strides = [1, 1]} : vector<15x32xf32> to vector<1x32xf32>
    %35 = vector.shape_cast %34 : vector<1x32xf32> to vector<32xf32>
    %36 = arith.truncf %1 : vector<8x32xf32> to vector<8x32xbf16>
    %c0_7 = arith.constant 0 : index
    %c0_8 = arith.constant 0 : index
    %37 = vector.load %arg3[%c0_7, %c0_8] : memref<32x32xbf16, #tpu.memory_space<vmem>>, vector<32x32xbf16>
    %cst = arith.constant dense<0.000000e+00> : vector<8x32xf32>
    %38 = tpu.matmul %36, %37, %cst {dimension_numbers = #tpu.dot_dimension_numbers<[1], [0], [0], [1], [0, 0, 1, 1], [], []>} : vector<8x32xbf16>, vector<32x32xbf16>, vector<8x32xf32> -> vector<8x32xf32>
    %39 = vector.shape_cast %7 : vector<32xf32> to vector<1x32xf32>
    %40 = vector.broadcast %39 : vector<1x32xf32> to vector<8x32xf32>
    %41 = arith.addf %38, %40 : vector<8x32xf32>
    %c0_9 = arith.constant 0 : index
    %c0_10 = arith.constant 0 : index
    %42 = vector.load %arg4[%c0_9, %c0_10] : memref<32x32xbf16, #tpu.memory_space<vmem>>, vector<32x32xbf16>
    %cst_11 = arith.constant dense<0.000000e+00> : vector<8x32xf32>
    %43 = tpu.matmul %36, %42, %cst_11 {dimension_numbers = #tpu.dot_dimension_numbers<[1], [0], [0], [1], [0, 0, 1, 1], [], []>} : vector<8x32xbf16>, vector<32x32xbf16>, vector<8x32xf32> -> vector<8x32xf32>
    %44 = vector.shape_cast %9 : vector<32xf32> to vector<1x32xf32>
    %45 = vector.broadcast %44 : vector<1x32xf32> to vector<8x32xf32>
    %46 = arith.addf %43, %45 : vector<8x32xf32>
    %c0_12 = arith.constant 0 : index
    %c0_13 = arith.constant 0 : index
    %47 = vector.load %arg5[%c0_12, %c0_13] : memref<32x32xbf16, #tpu.memory_space<vmem>>, vector<32x32xbf16>
    %cst_14 = arith.constant dense<0.000000e+00> : vector<8x32xf32>
    %48 = tpu.matmul %36, %47, %cst_14 {dimension_numbers = #tpu.dot_dimension_numbers<[1], [0], [0], [1], [0, 0, 1, 1], [], []>} : vector<8x32xbf16>, vector<32x32xbf16>, vector<8x32xf32> -> vector<8x32xf32>
    %49 = vector.shape_cast %11 : vector<32xf32> to vector<1x32xf32>
    %50 = vector.broadcast %49 : vector<1x32xf32> to vector<8x32xf32>
    %51 = arith.addf %48, %50 : vector<8x32xf32>
    %52 = vector.shape_cast %41 : vector<8x32xf32> to vector<8x4x8xf32>
    %53 = tpu.transpose %52, [1, 0, 2] : vector<8x4x8xf32> -> vector<4x8x8xf32>
    %54 = arith.truncf %53 : vector<4x8x8xf32> to vector<4x8x8xbf16>
    %55 = vector.shape_cast %46 : vector<8x32xf32> to vector<8x4x8xf32>
    %56 = tpu.transpose %55, [1, 0, 2] : vector<8x4x8xf32> -> vector<4x8x8xf32>
    %57 = arith.truncf %56 : vector<4x8x8xf32> to vector<4x8x8xbf16>
    %58 = vector.shape_cast %51 : vector<8x32xf32> to vector<8x4x8xf32>
    %59 = tpu.transpose %58, [1, 0, 2] : vector<8x4x8xf32> -> vector<4x8x8xf32>
    %60 = arith.truncf %59 : vector<4x8x8xf32> to vector<4x8x8xbf16>
    "tpu.trace_start"() <{level = 10 : i32, message = "hqd,hkd->hqk"}> : () -> ()
    %cst_15 = arith.constant dense<0.000000e+00> : vector<4x8x8xf32>
    %61 = tpu.matmul %54, %57, %cst_15 {dimension_numbers = #tpu.dot_dimension_numbers<[2], [2], [1], [1], [0, 0, 0, 1, 1, 1], [0], [0]>} : vector<4x8x8xbf16>, vector<4x8x8xbf16>, vector<4x8x8xf32> -> vector<4x8x8xf32>
    "tpu.trace_stop"() : () -> ()
    %cst_16 = arith.constant dense<0xFF800000> : vector<4x8xf32>
    %62 = vector.multi_reduction <maximumf>, %61, %cst_16 [2] : vector<4x8x8xf32> to vector<4x8xf32>
    %63 = vector.shape_cast %62 : vector<4x8xf32> to vector<4x8x1xf32>
    %64 = vector.broadcast %63 : vector<4x8x1xf32> to vector<4x8x8xf32>
    %65 = arith.subf %61, %64 : vector<4x8x8xf32>
    %66 = math.exp %65 : vector<4x8x8xf32>
    %cst_17 = arith.constant dense<0.000000e+00> : vector<4x8xf32>
    %67 = vector.multi_reduction <add>, %66, %cst_17 [2] : vector<4x8x8xf32> to vector<4x8xf32>
    %68 = vector.shape_cast %67 : vector<4x8xf32> to vector<4x8x1xf32>
    %69 = tpu.reciprocal %68 {approx = true} : vector<4x8x1xf32> -> vector<4x8x1xf32>
    %70 = arith.truncf %66 : vector<4x8x8xf32> to vector<4x8x8xbf16>
    "tpu.trace_start"() <{level = 10 : i32, message = "hqk,hkd->hqd"}> : () -> ()
    %cst_18 = arith.constant dense<0.000000e+00> : vector<4x8x8xf32>
    %71 = tpu.matmul %70, %60, %cst_18 {dimension_numbers = #tpu.dot_dimension_numbers<[2], [1], [1], [2], [0, 0, 0, 1, 1, 2], [0], [0]>} : vector<4x8x8xbf16>, vector<4x8x8xbf16>, vector<4x8x8xf32> -> vector<4x8x8xf32>
    "tpu.trace_stop"() : () -> ()
    %72 = vector.broadcast %69 : vector<4x8x1xf32> to vector<4x8x8xf32>
    %73 = arith.mulf %71, %72 : vector<4x8x8xf32>
    %74 = tpu.transpose %73, [1, 0, 2] : vector<4x8x8xf32> -> vector<8x4x8xf32>
    %75 = vector.shape_cast %74 : vector<8x4x8xf32> to vector<8x32xf32>
    %76 = arith.truncf %75 : vector<8x32xf32> to vector<8x32xbf16>
    %c0_19 = arith.constant 0 : index
    %c0_20 = arith.constant 0 : index
    %77 = vector.load %arg6[%c0_19, %c0_20] : memref<32x32xbf16, #tpu.memory_space<vmem>>, vector<32x32xbf16>
    %cst_21 = arith.constant dense<0.000000e+00> : vector<8x32xf32>
    %78 = tpu.matmul %76, %77, %cst_21 {dimension_numbers = #tpu.dot_dimension_numbers<[1], [0], [0], [1], [0, 0, 1, 1], [], []>} : vector<8x32xbf16>, vector<32x32xbf16>, vector<8x32xf32> -> vector<8x32xf32>
    %79 = vector.shape_cast %13 : vector<32xf32> to vector<1x32xf32>
    %80 = vector.broadcast %79 : vector<1x32xf32> to vector<8x32xf32>
    %81 = arith.addf %78, %80 : vector<8x32xf32>
    %82 = arith.addf %1, %81 : vector<8x32xf32>
    %cst_22 = arith.constant dense<0.000000e+00> : vector<8xf32>
    %83 = vector.multi_reduction <add>, %82, %cst_22 [1] : vector<8x32xf32> to vector<8xf32>
    %84 = vector.shape_cast %83 : vector<8xf32> to vector<8x1xf32>
    %cst_23 = arith.constant 3.200000e+01 : f32
    %85 = vector.broadcast %cst_23 : f32 to vector<8x1xf32>
    %86 = arith.divf %84, %85 : vector<8x1xf32>
    %87 = vector.broadcast %86 : vector<8x1xf32> to vector<8x32xf32>
    %88 = arith.subf %82, %87 : vector<8x32xf32>
    %89 = arith.mulf %88, %88 : vector<8x32xf32>
    %cst_24 = arith.constant dense<0.000000e+00> : vector<8xf32>
    %90 = vector.multi_reduction <add>, %89, %cst_24 [1] : vector<8x32xf32> to vector<8xf32>
    %91 = vector.shape_cast %90 : vector<8xf32> to vector<8x1xf32>
    %cst_25 = arith.constant 3.200000e+01 : f32
    %92 = vector.broadcast %cst_25 : f32 to vector<8x1xf32>
    %93 = arith.divf %91, %92 : vector<8x1xf32>
    %94 = vector.broadcast %86 : vector<8x1xf32> to vector<8x32xf32>
    %95 = arith.subf %82, %94 : vector<8x32xf32>
    %cst_26 = arith.constant 9.99999974E-6 : f32
    %96 = vector.broadcast %cst_26 : f32 to vector<8x1xf32>
    %97 = arith.addf %93, %96 : vector<8x1xf32>
    %98 = math.rsqrt %97 : vector<8x1xf32>
    %99 = vector.broadcast %98 : vector<8x1xf32> to vector<8x32xf32>
    %100 = arith.mulf %95, %99 : vector<8x32xf32>
    %101 = vector.shape_cast %25 : vector<32xf32> to vector<1x32xf32>
    %102 = vector.broadcast %101 : vector<1x32xf32> to vector<8x32xf32>
    %103 = arith.mulf %100, %102 : vector<8x32xf32>
    %104 = vector.shape_cast %27 : vector<32xf32> to vector<1x32xf32>
    %105 = vector.broadcast %104 : vector<1x32xf32> to vector<8x32xf32>
    %106 = arith.addf %103, %105 : vector<8x32xf32>
    %107 = arith.truncf %106 : vector<8x32xf32> to vector<8x32xbf16>
    %c0_27 = arith.constant 0 : index
    %c0_28 = arith.constant 0 : index
    %108 = vector.load %arg7[%c0_27, %c0_28] : memref<32x32xbf16, #tpu.memory_space<vmem>>, vector<32x32xbf16>
    %cst_29 = arith.constant dense<0.000000e+00> : vector<8x32xf32>
    %109 = tpu.matmul %107, %108, %cst_29 {dimension_numbers = #tpu.dot_dimension_numbers<[1], [0], [0], [1], [0, 0, 1, 1], [], []>} : vector<8x32xbf16>, vector<32x32xbf16>, vector<8x32xf32> -> vector<8x32xf32>
    %110 = vector.shape_cast %15 : vector<32xf32> to vector<1x32xf32>
    %111 = vector.broadcast %110 : vector<1x32xf32> to vector<8x32xf32>
    %112 = arith.addf %109, %111 : vector<8x32xf32>
    %c0_30 = arith.constant 0 : index
    %c0_31 = arith.constant 0 : index
    %113 = vector.load %arg8[%c0_30, %c0_31] : memref<32x32xbf16, #tpu.memory_space<vmem>>, vector<32x32xbf16>
    %cst_32 = arith.constant dense<0.000000e+00> : vector<8x32xf32>
    %114 = tpu.matmul %4, %113, %cst_32 {dimension_numbers = #tpu.dot_dimension_numbers<[1], [0], [0], [1], [0, 0, 1, 1], [], []>} : vector<8x32xbf16>, vector<32x32xbf16>, vector<8x32xf32> -> vector<8x32xf32>
    %115 = vector.shape_cast %17 : vector<32xf32> to vector<1x32xf32>
    %116 = vector.broadcast %115 : vector<1x32xf32> to vector<8x32xf32>
    %117 = arith.addf %114, %116 : vector<8x32xf32>
    %c0_33 = arith.constant 0 : index
    %c0_34 = arith.constant 0 : index
    %118 = vector.load %arg9[%c0_33, %c0_34] : memref<32x32xbf16, #tpu.memory_space<vmem>>, vector<32x32xbf16>
    %cst_35 = arith.constant dense<0.000000e+00> : vector<8x32xf32>
    %119 = tpu.matmul %4, %118, %cst_35 {dimension_numbers = #tpu.dot_dimension_numbers<[1], [0], [0], [1], [0, 0, 1, 1], [], []>} : vector<8x32xbf16>, vector<32x32xbf16>, vector<8x32xf32> -> vector<8x32xf32>
    %120 = vector.shape_cast %19 : vector<32xf32> to vector<1x32xf32>
    %121 = vector.broadcast %120 : vector<1x32xf32> to vector<8x32xf32>
    %122 = arith.addf %119, %121 : vector<8x32xf32>
    %123 = tpu.iota {dimensions = array<i32: 0>} : vector<8x8xi32>
    %124 = tpu.iota {dimensions = array<i32: 1>} : vector<8x8xi32>
    %125 = arith.subi %123, %124 : vector<8x8xi32>
    %126 = math.absi %125 : vector<8x8xi32>
    %c1_i32 = arith.constant 1 : i32
    %127 = vector.broadcast %c1_i32 : i32 to vector<8x8xi32>
    %128 = arith.cmpi sle, %126, %127 : vector<8x8xi32>
    %129 = vector.shape_cast %112 : vector<8x32xf32> to vector<8x4x8xf32>
    %130 = tpu.transpose %129, [1, 0, 2] : vector<8x4x8xf32> -> vector<4x8x8xf32>
    %131 = arith.truncf %130 : vector<4x8x8xf32> to vector<4x8x8xbf16>
    %132 = vector.shape_cast %117 : vector<8x32xf32> to vector<8x4x8xf32>
    %133 = tpu.transpose %132, [1, 0, 2] : vector<8x4x8xf32> -> vector<4x8x8xf32>
    %134 = arith.truncf %133 : vector<4x8x8xf32> to vector<4x8x8xbf16>
    %135 = vector.shape_cast %122 : vector<8x32xf32> to vector<8x4x8xf32>
    %136 = tpu.transpose %135, [1, 0, 2] : vector<8x4x8xf32> -> vector<4x8x8xf32>
    %137 = arith.truncf %136 : vector<4x8x8xf32> to vector<4x8x8xbf16>
    "tpu.trace_start"() <{level = 10 : i32, message = "hqd,hkd->hqk"}> : () -> ()
    %cst_36 = arith.constant dense<0.000000e+00> : vector<4x8x8xf32>
    %138 = tpu.matmul %131, %134, %cst_36 {dimension_numbers = #tpu.dot_dimension_numbers<[2], [2], [1], [1], [0, 0, 0, 1, 1, 1], [0], [0]>} : vector<4x8x8xbf16>, vector<4x8x8xbf16>, vector<4x8x8xf32> -> vector<4x8x8xf32>
    "tpu.trace_stop"() : () -> ()
    %139 = vector.shape_cast %128 : vector<8x8xi1> to vector<1x8x8xi1>
    %cst_37 = arith.constant -1.000000e+30 : f32
    %140 = vector.shape_cast %139 : vector<1x8x8xi1> to vector<1x8x8xi1>
    %141 = vector.broadcast %140 : vector<1x8x8xi1> to vector<4x8x8xi1>
    %142 = vector.broadcast %cst_37 : f32 to vector<4x8x8xf32>
    %143 = arith.select %141, %138, %142 : vector<4x8x8xi1>, vector<4x8x8xf32>
    %cst_38 = arith.constant dense<0xFF800000> : vector<4x8xf32>
    %144 = vector.multi_reduction <maximumf>, %143, %cst_38 [2] : vector<4x8x8xf32> to vector<4x8xf32>
    %145 = vector.shape_cast %144 : vector<4x8xf32> to vector<4x8x1xf32>
    %146 = vector.broadcast %145 : vector<4x8x1xf32> to vector<4x8x8xf32>
    %147 = arith.subf %143, %146 : vector<4x8x8xf32>
    %148 = math.exp %147 : vector<4x8x8xf32>
    %cst_39 = arith.constant dense<0.000000e+00> : vector<4x8xf32>
    %149 = vector.multi_reduction <add>, %148, %cst_39 [2] : vector<4x8x8xf32> to vector<4x8xf32>
    %150 = vector.shape_cast %149 : vector<4x8xf32> to vector<4x8x1xf32>
    %151 = tpu.reciprocal %150 {approx = true} : vector<4x8x1xf32> -> vector<4x8x1xf32>
    %152 = arith.truncf %148 : vector<4x8x8xf32> to vector<4x8x8xbf16>
    "tpu.trace_start"() <{level = 10 : i32, message = "hqk,hkd->hqd"}> : () -> ()
    %cst_40 = arith.constant dense<0.000000e+00> : vector<4x8x8xf32>
    %153 = tpu.matmul %152, %137, %cst_40 {dimension_numbers = #tpu.dot_dimension_numbers<[2], [1], [1], [2], [0, 0, 0, 1, 1, 2], [0], [0]>} : vector<4x8x8xbf16>, vector<4x8x8xbf16>, vector<4x8x8xf32> -> vector<4x8x8xf32>
    "tpu.trace_stop"() : () -> ()
    %154 = vector.broadcast %151 : vector<4x8x1xf32> to vector<4x8x8xf32>
    %155 = arith.mulf %153, %154 : vector<4x8x8xf32>
    %156 = tpu.transpose %155, [1, 0, 2] : vector<4x8x8xf32> -> vector<8x4x8xf32>
    %157 = vector.shape_cast %156 : vector<8x4x8xf32> to vector<8x32xf32>
    %158 = arith.truncf %157 : vector<8x32xf32> to vector<8x32xbf16>
    %c0_41 = arith.constant 0 : index
    %c0_42 = arith.constant 0 : index
    %159 = vector.load %arg10[%c0_41, %c0_42] : memref<32x32xbf16, #tpu.memory_space<vmem>>, vector<32x32xbf16>
    %cst_43 = arith.constant dense<0.000000e+00> : vector<8x32xf32>
    %160 = tpu.matmul %158, %159, %cst_43 {dimension_numbers = #tpu.dot_dimension_numbers<[1], [0], [0], [1], [0, 0, 1, 1], [], []>} : vector<8x32xbf16>, vector<32x32xbf16>, vector<8x32xf32> -> vector<8x32xf32>
    %161 = vector.shape_cast %21 : vector<32xf32> to vector<1x32xf32>
    %162 = vector.broadcast %161 : vector<1x32xf32> to vector<8x32xf32>
    %163 = arith.addf %160, %162 : vector<8x32xf32>
    %164 = arith.addf %106, %163 : vector<8x32xf32>
    %cst_44 = arith.constant dense<0.000000e+00> : vector<8xf32>
    %165 = vector.multi_reduction <add>, %164, %cst_44 [1] : vector<8x32xf32> to vector<8xf32>
    %166 = vector.shape_cast %165 : vector<8xf32> to vector<8x1xf32>
    %cst_45 = arith.constant 3.200000e+01 : f32
    %167 = vector.broadcast %cst_45 : f32 to vector<8x1xf32>
    %168 = arith.divf %166, %167 : vector<8x1xf32>
    %169 = vector.broadcast %168 : vector<8x1xf32> to vector<8x32xf32>
    %170 = arith.subf %164, %169 : vector<8x32xf32>
    %171 = arith.mulf %170, %170 : vector<8x32xf32>
    %cst_46 = arith.constant dense<0.000000e+00> : vector<8xf32>
    %172 = vector.multi_reduction <add>, %171, %cst_46 [1] : vector<8x32xf32> to vector<8xf32>
    %173 = vector.shape_cast %172 : vector<8xf32> to vector<8x1xf32>
    %cst_47 = arith.constant 3.200000e+01 : f32
    %174 = vector.broadcast %cst_47 : f32 to vector<8x1xf32>
    %175 = arith.divf %173, %174 : vector<8x1xf32>
    %176 = vector.broadcast %168 : vector<8x1xf32> to vector<8x32xf32>
    %177 = arith.subf %164, %176 : vector<8x32xf32>
    %cst_48 = arith.constant 9.99999974E-6 : f32
    %178 = vector.broadcast %cst_48 : f32 to vector<8x1xf32>
    %179 = arith.addf %175, %178 : vector<8x1xf32>
    %180 = math.rsqrt %179 : vector<8x1xf32>
    %181 = vector.broadcast %180 : vector<8x1xf32> to vector<8x32xf32>
    %182 = arith.mulf %177, %181 : vector<8x32xf32>
    %183 = vector.shape_cast %29 : vector<32xf32> to vector<1x32xf32>
    %184 = vector.broadcast %183 : vector<1x32xf32> to vector<8x32xf32>
    %185 = arith.mulf %182, %184 : vector<8x32xf32>
    %186 = vector.shape_cast %31 : vector<32xf32> to vector<1x32xf32>
    %187 = vector.broadcast %186 : vector<1x32xf32> to vector<8x32xf32>
    %188 = arith.addf %185, %187 : vector<8x32xf32>
    %189 = arith.truncf %188 : vector<8x32xf32> to vector<8x32xbf16>
    %c0_49 = arith.constant 0 : index
    %c0_50 = arith.constant 0 : index
    %190 = vector.load %arg11[%c0_49, %c0_50] : memref<32x64xbf16, #tpu.memory_space<vmem>>, vector<32x64xbf16>
    %cst_51 = arith.constant dense<0.000000e+00> : vector<8x64xf32>
    %191 = tpu.matmul %189, %190, %cst_51 {dimension_numbers = #tpu.dot_dimension_numbers<[1], [0], [0], [1], [0, 0, 1, 1], [], []>} : vector<8x32xbf16>, vector<32x64xbf16>, vector<8x64xf32> -> vector<8x64xf32>
    %c0_52 = arith.constant 0 : index
    %c0_53 = arith.constant 0 : index
    %192 = vector.load %arg13[%c0_52, %c0_53] : memref<1x64xf32, #tpu.memory_space<vmem>>, vector<1x64xf32>
    %193 = vector.broadcast %192 : vector<1x64xf32> to vector<8x64xf32>
    %194 = arith.addf %191, %193 : vector<8x64xf32>
    %cst_54 = arith.constant 0.000000e+00 : f32
    %195 = vector.broadcast %cst_54 : f32 to vector<8x64xf32>
    %196 = arith.maximumf %194, %195 : vector<8x64xf32>
    %197 = arith.truncf %196 : vector<8x64xf32> to vector<8x64xbf16>
    %c0_55 = arith.constant 0 : index
    %c0_56 = arith.constant 0 : index
    %198 = vector.load %arg12[%c0_55, %c0_56] : memref<64x32xbf16, #tpu.memory_space<vmem>>, vector<64x32xbf16>
    %cst_57 = arith.constant dense<0.000000e+00> : vector<8x32xf32>
    %199 = tpu.matmul %197, %198, %cst_57 {dimension_numbers = #tpu.dot_dimension_numbers<[1], [0], [0], [1], [0, 0, 1, 1], [], []>} : vector<8x64xbf16>, vector<64x32xbf16>, vector<8x32xf32> -> vector<8x32xf32>
    %200 = vector.shape_cast %23 : vector<32xf32> to vector<1x32xf32>
    %201 = vector.broadcast %200 : vector<1x32xf32> to vector<8x32xf32>
    %202 = arith.addf %199, %201 : vector<8x32xf32>
    %203 = arith.addf %188, %202 : vector<8x32xf32>
    %cst_58 = arith.constant dense<0.000000e+00> : vector<8xf32>
    %204 = vector.multi_reduction <add>, %203, %cst_58 [1] : vector<8x32xf32> to vector<8xf32>
    %205 = vector.shape_cast %204 : vector<8xf32> to vector<8x1xf32>
    %cst_59 = arith.constant 3.200000e+01 : f32
    %206 = vector.broadcast %cst_59 : f32 to vector<8x1xf32>
    %207 = arith.divf %205, %206 : vector<8x1xf32>
    %208 = vector.broadcast %207 : vector<8x1xf32> to vector<8x32xf32>
    %209 = arith.subf %203, %208 : vector<8x32xf32>
    %210 = arith.mulf %209, %209 : vector<8x32xf32>
    %cst_60 = arith.constant dense<0.000000e+00> : vector<8xf32>
    %211 = vector.multi_reduction <add>, %210, %cst_60 [1] : vector<8x32xf32> to vector<8xf32>
    %212 = vector.shape_cast %211 : vector<8xf32> to vector<8x1xf32>
    %cst_61 = arith.constant 3.200000e+01 : f32
    %213 = vector.broadcast %cst_61 : f32 to vector<8x1xf32>
    %214 = arith.divf %212, %213 : vector<8x1xf32>
    %215 = vector.broadcast %207 : vector<8x1xf32> to vector<8x32xf32>
    %216 = arith.subf %203, %215 : vector<8x32xf32>
    %cst_62 = arith.constant 9.99999974E-6 : f32
    %217 = vector.broadcast %cst_62 : f32 to vector<8x1xf32>
    %218 = arith.addf %214, %217 : vector<8x1xf32>
    %219 = math.rsqrt %218 : vector<8x1xf32>
    %220 = vector.broadcast %219 : vector<8x1xf32> to vector<8x32xf32>
    %221 = arith.mulf %216, %220 : vector<8x32xf32>
    %222 = vector.shape_cast %33 : vector<32xf32> to vector<1x32xf32>
    %223 = vector.broadcast %222 : vector<1x32xf32> to vector<8x32xf32>
    %224 = arith.mulf %221, %223 : vector<8x32xf32>
    %225 = vector.shape_cast %35 : vector<32xf32> to vector<1x32xf32>
    %226 = vector.broadcast %225 : vector<1x32xf32> to vector<8x32xf32>
    %227 = arith.addf %224, %226 : vector<8x32xf32>
    %c0_63 = arith.constant 0 : index
    %c0_64 = arith.constant 0 : index
    %c0_65 = arith.constant 0 : index
    %228 = vector.load %arg15[%c0_63, %c0_64, %c0_65] : memref<1x8x32xf32, #tpu.memory_space<vmem>>, vector<1x8x32xf32>
    %229 = vector.shape_cast %228 : vector<1x8x32xf32> to vector<8x32xf32>
    %230 = vector.shape_cast %227 : vector<8x32xf32> to vector<1x8x32xf32>
    tpu.vector_store %arg15[%c0_63, %c0_64, %c0_65], %230 {strides = array<i32>} : memref<1x8x32xf32, #tpu.memory_space<vmem>>, vector<1x8x32xf32>,
    return
  }
  func.func @transform_0(%arg0: i32) -> (i32, i32, i32) {
    %c0_i32 = arith.constant 0 : i32
    %c0_i32_0 = arith.constant 0 : i32
    %c0_i32_1 = arith.constant 0 : i32
    return %arg0, %c0_i32, %c0_i32_0 : i32, i32, i32
  }
  func.func @transform_1(%arg0: i32) -> (i32, i32, i32) {
    %c0_i32 = arith.constant 0 : i32
    %c0_i32_0 = arith.constant 0 : i32
    %c0_i32_1 = arith.constant 0 : i32
    return %arg0, %c0_i32, %c0_i32_0 : i32, i32, i32
  }
  func.func @transform_2(%arg0: i32) -> (i32, i32) {
    %c0_i32 = arith.constant 0 : i32
    %c0_i32_0 = arith.constant 0 : i32
    %c0_i32_1 = arith.constant 0 : i32
    return %c0_i32, %c0_i32_0 : i32, i32
  }
  func.func @transform_3(%arg0: i32) -> (i32, i32) {
    %c0_i32 = arith.constant 0 : i32
    %c0_i32_0 = arith.constant 0 : i32
    %c0_i32_1 = arith.constant 0 : i32
    return %c0_i32, %c0_i32_0 : i32, i32
  }
  func.func @transform_4(%arg0: i32) -> (i32, i32) {
    %c0_i32 = arith.constant 0 : i32
    %c0_i32_0 = arith.constant 0 : i32
    %c0_i32_1 = arith.constant 0 : i32
    return %c0_i32, %c0_i32_0 : i32, i32
  }
  func.func @transform_5(%arg0: i32) -> (i32, i32) {
    %c0_i32 = arith.constant 0 : i32
    %c0_i32_0 = arith.constant 0 : i32
    %c0_i32_1 = arith.constant 0 : i32
    return %c0_i32, %c0_i32_0 : i32, i32
  }
  func.func @transform_6(%arg0: i32) -> (i32, i32) {
    %c0_i32 = arith.constant 0 : i32
    %c0_i32_0 = arith.constant 0 : i32
    %c0_i32_1 = arith.constant 0 : i32
    return %c0_i32, %c0_i32_0 : i32, i32
  }
  func.func @transform_7(%arg0: i32) -> (i32, i32) {
    %c0_i32 = arith.constant 0 : i32
    %c0_i32_0 = arith.constant 0 : i32
    %c0_i32_1 = arith.constant 0 : i32
    return %c0_i32, %c0_i32_0 : i32, i32
  }
  func.func @transform_8(%arg0: i32) -> (i32, i32) {
    %c0_i32 = arith.constant 0 : i32
    %c0_i32_0 = arith.constant 0 : i32
    %c0_i32_1 = arith.constant 0 : i32
    return %c0_i32, %c0_i32_0 : i32, i32
  }
  func.func @transform_9(%arg0: i32) -> (i32, i32) {
    %c0_i32 = arith.constant 0 : i32
    %c0_i32_0 = arith.constant 0 : i32
    %c0_i32_1 = arith.constant 0 : i32
    return %c0_i32, %c0_i32_0 : i32, i32
  }
  func.func @transform_10(%arg0: i32) -> (i32, i32) {
    %c0_i32 = arith.constant 0 : i32
    %c0_i32_0 = arith.constant 0 : i32
    %c0_i32_1 = arith.constant 0 : i32
    return %c0_i32, %c0_i32_0 : i32, i32
  }
  func.func @transform_11(%arg0: i32) -> (i32, i32) {
    %c0_i32 = arith.constant 0 : i32
    %c0_i32_0 = arith.constant 0 : i32
    %c0_i32_1 = arith.constant 0 : i32
    return %c0_i32, %c0_i32_0 : i32, i32
  }
  func.func @transform_12(%arg0: i32) -> (i32, i32) {
    %c0_i32 = arith.constant 0 : i32
    %c0_i32_0 = arith.constant 0 : i32
    %c0_i32_1 = arith.constant 0 : i32
    return %c0_i32, %c0_i32_0 : i32, i32
  }
  func.func @transform_13(%arg0: i32) -> (i32, i32) {
    %c0_i32 = arith.constant 0 : i32
    %c0_i32_0 = arith.constant 0 : i32
    %c0_i32_1 = arith.constant 0 : i32
    return %c0_i32, %c0_i32_0 : i32, i32
  }
  func.func @transform_14(%arg0: i32) -> (i32, i32, i32) {
    %c0_i32 = arith.constant 0 : i32
    %c0_i32_0 = arith.constant 0 : i32
    %c0_i32_1 = arith.constant 0 : i32
    return %arg0, %c0_i32, %c0_i32_0 : i32, i32, i32
  }
}

</mosaic_0001>

<llo_original>
// kernel: tpu_custom_call.1
$region0: #{tpu_custom_call.1}
  #allocation0 [shape = 'u32[]', space=smem, size = 0x4, offset = 0x4, fixed_abs, tag = 'smem constant byte address 0x4 - core index']
  #allocation1 [shape = 'u32[144,128]{1,0:T(1,128)}', space=vmem, size = 0x12000, scoped, tag = 'internal scratch']
  %s0 = inlined_call_operand.vmem [shape: f32[2,8,32], index: 0, kind: input, shape index: {}]
  %s1 = inlined_call_operand.vmem [shape: f32[2,8,32], index: 1, kind: input, shape index: {}]
  %s2 = inlined_call_operand.vmem [shape: bf16[32,32], index: 2, kind: input, shape index: {}]
  %s3 = inlined_call_operand.hbm [shape: bf16[32,32], index: 3, kind: input, shape index: {}]
  %s4 = inlined_call_operand.hbm [shape: bf16[32,32], index: 4, kind: input, shape index: {}]
  %s5 = inlined_call_operand.hbm [shape: bf16[32,32], index: 5, kind: input, shape index: {}]
  %s6 = inlined_call_operand.hbm [shape: bf16[32,32], index: 6, kind: input, shape index: {}]
  %s7 = inlined_call_operand.hbm [shape: bf16[32,32], index: 7, kind: input, shape index: {}]
  %s8 = inlined_call_operand.hbm [shape: bf16[32,32], index: 8, kind: input, shape index: {}]
  %s9 = inlined_call_operand.vmem [shape: bf16[32,32], index: 9, kind: input, shape index: {}]
  %s10 = inlined_call_operand.hbm [shape: bf16[32,64], index: 10, kind: input, shape index: {}]
  %s11 = inlined_call_operand.vmem [shape: bf16[64,32], index: 11, kind: input, shape index: {}]
  %s12 = inlined_call_operand.vmem [shape: f32[1,64], index: 12, kind: input, shape index: {}]
  %s13 = inlined_call_operand.vmem [shape: f32[15,32], index: 13, kind: input, shape index: {}]
  %s14 = inlined_call_operand.hbm [shape: f32[2,8,32], index: 14, kind: output, shape index: {}]
  %s15 = sld [smem:[#allocation0]]
  $region117: #{tpu_custom_call.1} parent=0
    _
  %s17 = ssub.s32 1, %s15
  %s18 = scalar_select 0, %s17, %s15
  $region1: #{tpu_custom_call.1} parent=0
    #allocation2 [shape = 'u8[8192]{0}', space=vmem, size = 0x2000, scoped, tag = 'input window, operand 3, single buffered']
    #allocation3 [shape = 's32[2]{0}', space=sflag, size = 0x8, scoped, tag = 'scoped memory for tpu_custom_call.1']
    #allocation4 [shape = 's32[2]{0}', space=sflag, size = 0x8, scoped, tag = 'scoped memory for tpu_custom_call.1']
    #allocation5 [shape = 'u8[8192]{0}', space=vmem, size = 0x2000, scoped, tag = 'input window, operand 4, single buffered']
    #allocation6 [shape = 's32[1]{0}', space=sflag, size = 0x4, scoped, tag = 'scoped memory for tpu_custom_call.1']
    #allocation7 [shape = 'u8[8192]{0}', space=vmem, size = 0x2000, scoped, tag = 'input window, operand 5, single buffered']
    #allocation8 [shape = 'u8[8192]{0}', space=vmem, size = 0x2000, scoped, tag = 'input window, operand 6, single buffered']
    #allocation9 [shape = 's32[1]{0}', space=sflag, size = 0x4, scoped, tag = 'scoped memory for tpu_custom_call.1']
    #allocation10 [shape = 'u8[8192]{0}', space=vmem, size = 0x2000, scoped, tag = 'input window, operand 7, single buffered']
    #allocation11 [shape = 'u8[8192]{0}', space=vmem, size = 0x2000, scoped, tag = 'input window, operand 8, single buffered']
    #allocation12 [shape = 's32[1]{0}', space=sflag, size = 0x4, scoped, tag = 'scoped memory for tpu_custom_call.1']
    #allocation13 [shape = 'u8[8192]{0}', space=vmem, size = 0x2000, scoped, tag = 'input window, operand 10, single buffered']
    #allocation14 [shape = 'u8[8192]{0}', space=vmem, size = 0x2000, scoped, tag = 'output window, operand 0']
    %19 = vsyncpa [#allocation3], 0
    %20 = vsyncpa [#allocation6], 0
    %21 = vsyncpa [#allocation9], 0
    %22 = vsyncpa [#allocation12], 0
    %23 = vsyncpa [#allocation4], 0
    %s24 = scalar_lea.sflag [#allocation4], 1
    %25 = vsyncpa %s24, 0
    loop: start=0, step=1, limit=4
    $region2: #{tpu_custom_call.1} parent=1 // loop_pre_header
      _
    $region3: #{tpu_custom_call.1} parent=1 // loop_header
      %s27 = sphi 0, %s31
      %p28 = scmp.ge.s32.totalorder %s27, 4
      %s37 = sphi 0, %s39
      %s40 = sphi 0, %s37
      %s41 = sphi 0, %s40
      %s57 = sphi 0, %s41
      %s63 = sphi 0, %s65
      %s66 = sphi 0, %s63
      %s67 = sphi 0, %s66
      %s83 = sphi 0, %s67
      %s87 = sphi 0, %s87
      %s89 = sphi 0, %s87
      %s90 = sphi 0, %s89
      %s104 = sphi 0, %s90
      %s108 = sphi 0, %s108
      %s110 = sphi 0, %s108
      %s111 = sphi 0, %s110
      %s125 = sphi 0, %s111
      %s129 = sphi 0, %s129
      %s131 = sphi 0, %s129
      %s132 = sphi 0, %s131
      %s146 = sphi 0, %s132
      %s150 = sphi 0, %s150
      %s152 = sphi 0, %s150
      %s153 = sphi 0, %s152
      %s167 = sphi 0, %s153
      %s171 = sphi 0, %s171
      %s173 = sphi 0, %s171
      %s174 = sphi 0, %s173
      %s188 = sphi 0, %s174
      %s192 = sphi 0, %s192
      %s194 = sphi 0, %s192
      %s195 = sphi 0, %s194
      %s209 = sphi 0, %s195
      %s213 = sphi 0, %s213
      %s215 = sphi 0, %s213
      %s216 = sphi 0, %s215
      %s230 = sphi 0, %s216
      %s234 = sphi 0, %s234
      %s236 = sphi 0, %s234
      %s237 = sphi 0, %s236
      %s251 = sphi 0, %s237
      %s255 = sphi 0, %s255
      %s257 = sphi 0, %s255
      %s258 = sphi 0, %s257
      %s272 = sphi 0, %s258
      %s276 = sphi 0, %s276
      %s278 = sphi 0, %s276
      %s279 = sphi 0, %s278
      %s293 = sphi 0, %s279
      %s297 = sphi 0, %s297
      %s299 = sphi 0, %s297
      %s300 = sphi 0, %s299
      %s314 = sphi 0, %s300
      %s318 = sphi 0, %s318
      %s320 = sphi 0, %s318
      %s321 = sphi 0, %s320
      %s335 = sphi 0, %s321
      %s341 = sphi 0, %s343
      %s344 = sphi 0, %s341
      %s345 = sphi 0, %s344
      %s361 = sphi 0, %s345
    $region4: #{tpu_custom_call.1} parent=1 // loop_header_branch
      %30 = sbr.rel (%p28) target = $region8
    $region5: #{tpu_custom_call.1} parent=1 // loop_body
      %s32 = ssub.s32 %s27, 1
      %s33 = ssub.s32 %s27, 2
      %s34 = sadd.s32 %s27, 1
      %s35 = ssub.s32 %s27, %s34
      %p36 = scmp.eq.s32.totalorder %s35, 0
      %s38 = sadd.s32 %s37, 1
      %s39 = scalar_select %p36, %s37, %s38
      %p42 = pneg %p36
      %p43 = scmp.eq.s32.totalorder %s27, 1
      %p44 = por %p42, %p43
      %p45 = scmp.ne.s32.totalorder %s37, %s40
      %p46 = scmp.eq.s32.totalorder %s27, 0
      %p47 = por %p45, %p46
      %p48 = scmp.ne.s32.totalorder %s37, %s40
      %p49 = scmp.eq.s32.totalorder %s32, 1
      %p50 = por %p48, %p49
      %p51 = scmp.ne.s32.totalorder %s40, %s41
      %p52 = scmp.eq.s32.totalorder %s32, 0
      %p53 = por %p51, %p52
      %p54 = scmp.ne.s32.totalorder %s40, %s41
      %p55 = scmp.eq.s32.totalorder %s33, 1
      %p56 = por %p54, %p55
      %p58 = scmp.ne.s32.totalorder %s41, %s57
      %p59 = scmp.eq.s32.totalorder %s33, 0
      %p60 = por %p58, %p59
      %s61 = ssub.s32 %s27, %s34
      %p62 = scmp.eq.s32.totalorder %s61, 0
      %s64 = sadd.s32 %s63, 1
      %s65 = scalar_select %p62, %s63, %s64
      %p68 = pneg %p62
      %p69 = scmp.eq.s32.totalorder %s27, 1
      %p70 = por %p68, %p69
      %p71 = scmp.ne.s32.totalorder %s63, %s66
      %p72 = scmp.eq.s32.totalorder %s27, 0
      %p73 = por %p71, %p72
      %p74 = scmp.ne.s32.totalorder %s63, %s66
      %p75 = scmp.eq.s32.totalorder %s32, 1
      %p76 = por %p74, %p75
      %p77 = scmp.ne.s32.totalorder %s66, %s67
      %p78 = scmp.eq.s32.totalorder %s32, 0
      %p79 = por %p77, %p78
      %p80 = scmp.ne.s32.totalorder %s66, %s67
      %p81 = scmp.eq.s32.totalorder %s33, 1
      %p82 = por %p80, %p81
      %p84 = scmp.ne.s32.totalorder %s67, %s83
      %p85 = scmp.eq.s32.totalorder %s33, 0
      %p86 = por %p84, %p85
      %s88 = sadd.s32 %s87, 1
      %p91 = scmp.eq.s32.totalorder %s27, 1
      %p92 = scmp.ne.s32.totalorder %s87, %s89
      %p93 = scmp.eq.s32.totalorder %s27, 0
      %p94 = por %p92, %p93
      %p95 = scmp.ne.s32.totalorder %s87, %s89
      %p96 = scmp.eq.s32.totalorder %s32, 1
      %p97 = por %p95, %p96
      %p98 = scmp.ne.s32.totalorder %s89, %s90
      %p99 = scmp.eq.s32.totalorder %s32, 0
      %p100 = por %p98, %p99
      %p101 = scmp.ne.s32.totalorder %s89, %s90
      %p102 = scmp.eq.s32.totalorder %s33, 1
      %p103 = por %p101, %p102
      %p105 = scmp.ne.s32.totalorder %s90, %s104
      %p106 = scmp.eq.s32.totalorder %s33, 0
      %p107 = por %p105, %p106
      %s109 = sadd.s32 %s108, 1
      %p112 = scmp.eq.s32.totalorder %s27, 1
      %p113 = scmp.ne.s32.totalorder %s108, %s110
      %p114 = scmp.eq.s32.totalorder %s27, 0
      %p115 = por %p113, %p114
      %p116 = scmp.ne.s32.totalorder %s108, %s110
      %p117 = scmp.eq.s32.totalorder %s32, 1
      %p118 = por %p116, %p117
      %p119 = scmp.ne.s32.totalorder %s110, %s111
      %p120 = scmp.eq.s32.totalorder %s32, 0
      %p121 = por %p119, %p120
      %p122 = scmp.ne.s32.totalorder %s110, %s111
      %p123 = scmp.eq.s32.totalorder %s33, 1
      %p124 = por %p122, %p123
      %p126 = scmp.ne.s32.totalorder %s111, %s125
      %p127 = scmp.eq.s32.totalorder %s33, 0
      %p128 = por %p126, %p127
      %s130 = sadd.s32 %s129, 1
      %p133 = scmp.eq.s32.totalorder %s27, 1
      %p134 = scmp.ne.s32.totalorder %s129, %s131
      %p135 = scmp.eq.s32.totalorder %s27, 0
      %p136 = por %p134, %p135
      %p137 = scmp.ne.s32.totalorder %s129, %s131
      %p138 = scmp.eq.s32.totalorder %s32, 1
      %p139 = por %p137, %p138
      %p140 = scmp.ne.s32.totalorder %s131, %s132
      %p141 = scmp.eq.s32.totalorder %s32, 0
      %p142 = por %p140, %p141
      %p143 = scmp.ne.s32.totalorder %s131, %s132
      %p144 = scmp.eq.s32.totalorder %s33, 1
      %p145 = por %p143, %p144
      %p147 = scmp.ne.s32.totalorder %s132, %s146
      %p148 = scmp.eq.s32.totalorder %s33, 0
      %p149 = por %p147, %p148
      %s151 = sadd.s32 %s150, 1
      %p154 = scmp.eq.s32.totalorder %s27, 1
      %p155 = scmp.ne.s32.totalorder %s150, %s152
      %p156 = scmp.eq.s32.totalorder %s27, 0
      %p157 = por %p155, %p156
      %p158 = scmp.ne.s32.totalorder %s150, %s152
      %p159 = scmp.eq.s32.totalorder %s32, 1
      %p160 = por %p158, %p159
      %p161 = scmp.ne.s32.totalorder %s152, %s153
      %p162 = scmp.eq.s32.totalorder %s32, 0
      %p163 = por %p161, %p162
      %p164 = scmp.ne.s32.totalorder %s152, %s153
      %p165 = scmp.eq.s32.totalorder %s33, 1
      %p166 = por %p164, %p165
      %p168 = scmp.ne.s32.totalorder %s153, %s167
      %p169 = scmp.eq.s32.totalorder %s33, 0
      %p170 = por %p168, %p169
      %s172 = sadd.s32 %s171, 1
      %p175 = scmp.eq.s32.totalorder %s27, 1
      %p176 = scmp.ne.s32.totalorder %s171, %s173
      %p177 = scmp.eq.s32.totalorder %s27, 0
      %p178 = por %p176, %p177
      %p179 = scmp.ne.s32.totalorder %s171, %s173
      %p180 = scmp.eq.s32.totalorder %s32, 1
      %p181 = por %p179, %p180
      %p182 = scmp.ne.s32.totalorder %s173, %s174
      %p183 = scmp.eq.s32.totalorder %s32, 0
      %p184 = por %p182, %p183
      %p185 = scmp.ne.s32.totalorder %s173, %s174
      %p186 = scmp.eq.s32.totalorder %s33, 1
      %p187 = por %p185, %p186
      %p189 = scmp.ne.s32.totalorder %s174, %s188
      %p190 = scmp.eq.s32.totalorder %s33, 0
      %p191 = por %p189, %p190
      %s193 = sadd.s32 %s192, 1
      %p196 = scmp.eq.s32.totalorder %s27, 1
      %p197 = scmp.ne.s32.totalorder %s192, %s194
      %p198 = scmp.eq.s32.totalorder %s27, 0
      %p199 = por %p197, %p198
      %p200 = scmp.ne.s32.totalorder %s192, %s194
      %p201 = scmp.eq.s32.totalorder %s32, 1
      %p202 = por %p200, %p201
      %p203 = scmp.ne.s32.totalorder %s194, %s195
      %p204 = scmp.eq.s32.totalorder %s32, 0
      %p205 = por %p203, %p204
      %p206 = scmp.ne.s32.totalorder %s194, %s195
      %p207 = scmp.eq.s32.totalorder %s33, 1
      %p208 = por %p206, %p207
      %p210 = scmp.ne.s32.totalorder %s195, %s209
      %p211 = scmp.eq.s32.totalorder %s33, 0
      %p212 = por %p210, %p211
      %s214 = sadd.s32 %s213, 1
      %p217 = scmp.eq.s32.totalorder %s27, 1
      %p218 = scmp.ne.s32.totalorder %s213, %s215
      %p219 = scmp.eq.s32.totalorder %s27, 0
      %p220 = por %p218, %p219
      %p221 = scmp.ne.s32.totalorder %s213, %s215
      %p222 = scmp.eq.s32.totalorder %s32, 1
      %p223 = por %p221, %p222
      %p224 = scmp.ne.s32.totalorder %s215, %s216
      %p225 = scmp.eq.s32.totalorder %s32, 0
      %p226 = por %p224, %p225
      %p227 = scmp.ne.s32.totalorder %s215, %s216
      %p228 = scmp.eq.s32.totalorder %s33, 1
      %p229 = por %p227, %p228
      %p231 = scmp.ne.s32.totalorder %s216, %s230
      %p232 = scmp.eq.s32.totalorder %s33, 0
      %p233 = por %p231, %p232
      %s235 = sadd.s32 %s234, 1
      %p238 = scmp.eq.s32.totalorder %s27, 1
      %p239 = scmp.ne.s32.totalorder %s234, %s236
      %p240 = scmp.eq.s32.totalorder %s27, 0
      %p241 = por %p239, %p240
      %p242 = scmp.ne.s32.totalorder %s234, %s236
      %p243 = scmp.eq.s32.totalorder %s32, 1
      %p244 = por %p242, %p243
      %p245 = scmp.ne.s32.totalorder %s236, %s237
      %p246 = scmp.eq.s32.totalorder %s32, 0
      %p247 = por %p245, %p246
      %p248 = scmp.ne.s32.totalorder %s236, %s237
      %p249 = scmp.eq.s32.totalorder %s33, 1
      %p250 = por %p248, %p249
      %p252 = scmp.ne.s32.totalorder %s237, %s251
      %p253 = scmp.eq.s32.totalorder %s33, 0
      %p254 = por %p252, %p253
      %s256 = sadd.s32 %s255, 1
      %p259 = scmp.eq.s32.totalorder %s27, 1
      %p260 = scmp.ne.s32.totalorder %s255, %s257
      %p261 = scmp.eq.s32.totalorder %s27, 0
      %p262 = por %p260, %p261
      %p263 = scmp.ne.s32.totalorder %s255, %s257
      %p264 = scmp.eq.s32.totalorder %s32, 1
      %p265 = por %p263, %p264
      %p266 = scmp.ne.s32.totalorder %s257, %s258
      %p267 = scmp.eq.s32.totalorder %s32, 0
      %p268 = por %p266, %p267
      %p269 = scmp.ne.s32.totalorder %s257, %s258
      %p270 = scmp.eq.s32.totalorder %s33, 1
      %p271 = por %p269, %p270
      %p273 = scmp.ne.s32.totalorder %s258, %s272
      %p274 = scmp.eq.s32.totalorder %s33, 0
      %p275 = por %p273, %p274
      %s277 = sadd.s32 %s276, 1
      %p280 = scmp.eq.s32.totalorder %s27, 1
      %p281 = scmp.ne.s32.totalorder %s276, %s278
      %p282 = scmp.eq.s32.totalorder %s27, 0
      %p283 = por %p281, %p282
      %p284 = scmp.ne.s32.totalorder %s276, %s278
      %p285 = scmp.eq.s32.totalorder %s32, 1
      %p286 = por %p284, %p285
      %p287 = scmp.ne.s32.totalorder %s278, %s279
      %p288 = scmp.eq.s32.totalorder %s32, 0
      %p289 = por %p287, %p288
      %p290 = scmp.ne.s32.totalorder %s278, %s279
      %p291 = scmp.eq.s32.totalorder %s33, 1
      %p292 = por %p290, %p291
      %p294 = scmp.ne.s32.totalorder %s279, %s293
      %p295 = scmp.eq.s32.totalorder %s33, 0
      %p296 = por %p294, %p295
      %s298 = sadd.s32 %s297, 1
      %p301 = scmp.eq.s32.totalorder %s27, 1
      %p302 = scmp.ne.s32.totalorder %s297, %s299
      %p303 = scmp.eq.s32.totalorder %s27, 0
      %p304 = por %p302, %p303
      %p305 = scmp.ne.s32.totalorder %s297, %s299
      %p306 = scmp.eq.s32.totalorder %s32, 1
      %p307 = por %p305, %p306
      %p308 = scmp.ne.s32.totalorder %s299, %s300
      %p309 = scmp.eq.s32.totalorder %s32, 0
      %p310 = por %p308, %p309
      %p311 = scmp.ne.s32.totalorder %s299, %s300
      %p312 = scmp.eq.s32.totalorder %s33, 1
      %p313 = por %p311, %p312
      %p315 = scmp.ne.s32.totalorder %s300, %s314
      %p316 = scmp.eq.s32.totalorder %s33, 0
      %p317 = por %p315, %p316
      %s319 = sadd.s32 %s318, 1
      %p322 = scmp.eq.s32.totalorder %s27, 1
      %p323 = scmp.ne.s32.totalorder %s318, %s320
      %p324 = scmp.eq.s32.totalorder %s27, 0
      %p325 = por %p323, %p324
      %p326 = scmp.ne.s32.totalorder %s318, %s320
      %p327 = scmp.eq.s32.totalorder %s32, 1
      %p328 = por %p326, %p327
      %p329 = scmp.ne.s32.totalorder %s320, %s321
      %p330 = scmp.eq.s32.totalorder %s32, 0
      %p331 = por %p329, %p330
      %p332 = scmp.ne.s32.totalorder %s320, %s321
      %p333 = scmp.eq.s32.totalorder %s33, 1
      %p334 = por %p332, %p333
      %p336 = scmp.ne.s32.totalorder %s321, %s335
      %p337 = scmp.eq.s32.totalorder %s33, 0
      %p338 = por %p336, %p337
      %s339 = ssub.s32 %s27, %s34
      %p340 = scmp.eq.s32.totalorder %s339, 0
      %s342 = sadd.s32 %s341, 1
      %s343 = scalar_select %p340, %s341, %s342
      %p346 = pneg %p340
      %p347 = scmp.eq.s32.totalorder %s27, 1
      %p348 = por %p346, %p347
      %p349 = scmp.ne.s32.totalorder %s341, %s344
      %p350 = scmp.eq.s32.totalorder %s27, 0
      %p351 = por %p349, %p350
      %p352 = scmp.ne.s32.totalorder %s341, %s344
      %p353 = scmp.eq.s32.totalorder %s32, 1
      %p354 = por %p352, %p353
      %p355 = scmp.ne.s32.totalorder %s344, %s345
      %p356 = scmp.eq.s32.totalorder %s32, 0
      %p357 = por %p355, %p356
      %p358 = scmp.ne.s32.totalorder %s344, %s345
      %p359 = scmp.eq.s32.totalorder %s33, 1
      %p360 = por %p358, %p359
      %p362 = scmp.ne.s32.totalorder %s345, %s361
      %p363 = scmp.eq.s32.totalorder %s33, 0
      %p364 = por %p362, %p363
      %p365 = scmp.le.s32.totalorder 1, %s27
      %p366 = scmp.lt.s32.totalorder %s27, 3
      %p367 = pnand %p365, %p366
      %p368 = pneg %p367
      // Predicated region
      $region9: #{tpu_custom_call.1} parent=5 // pred_check
        _
      $region10: #{tpu_custom_call.1} parent=5 // pred_check_branch
        %370 = sbr.rel (%p367) target = $region12
      $region11: #{tpu_custom_call.1} parent=5 // pred_region
        %s371 = ssub.s32 %s27, 1
        // Predicated region
        $region13: #{tpu_custom_call.1} parent=11 // pred_check
          %p372 = pneg %p100
        $region14: #{tpu_custom_call.1} parent=11 // pred_check_branch
          %374 = sbr.rel (%p372) target = $region16
        $region15: #{tpu_custom_call.1} parent=11 // pred_region
          _
        $region16: #{tpu_custom_call.1} parent=11 // pred_fallthru
          _
        // Predicated region
        $region17: #{tpu_custom_call.1} parent=11 // pred_check
          %p375 = pneg %p121
        $region18: #{tpu_custom_call.1} parent=11 // pred_check_branch
          %377 = sbr.rel (%p375) target = $region20
        $region19: #{tpu_custom_call.1} parent=11 // pred_region
          %s379 = ssub.s32 256, 256
          %380 = vsyncadd [#allocation3], %s379
          %s381 = sshll.u32 [#allocation2], 4
          %s382 = int_to_ptr.vmem [resolvable:$true] %s381
          %387 = dma.hbm_to_vmem [thread:$0]  %s3, 256, %s382, [#allocation3], 64, 64, 4
        $region20: #{tpu_custom_call.1} parent=11 // pred_fallthru
          _
        // Predicated region
        $region21: #{tpu_custom_call.1} parent=11 // pred_check
          %p388 = pneg %p142
        $region22: #{tpu_custom_call.1} parent=11 // pred_check_branch
          %390 = sbr.rel (%p388) target = $region24
        $region23: #{tpu_custom_call.1} parent=11 // pred_region
          %s392 = ssub.s32 256, 256
          %393 = vsyncadd [#allocation6], %s392
          %s394 = sshll.u32 [#allocation5], 4
          %s395 = int_to_ptr.vmem [resolvable:$true] %s394
          %400 = dma.hbm_to_vmem [thread:$0]  %s4, 256, %s395, [#allocation6], 64, 64, 4
        $region24: #{tpu_custom_call.1} parent=11 // pred_fallthru
          _
        // Predicated region
        $region25: #{tpu_custom_call.1} parent=11 // pred_check
          %p401 = pneg %p163
        $region26: #{tpu_custom_call.1} parent=11 // pred_check_branch
          %403 = sbr.rel (%p401) target = $region28
        $region27: #{tpu_custom_call.1} parent=11 // pred_region
          %s405 = ssub.s32 256, 256
          %406 = vsyncadd [#allocation6], %s405
          %s407 = sshll.u32 [#allocation7], 4
          %s408 = int_to_ptr.vmem [resolvable:$true] %s407
          %413 = dma.hbm_to_vmem [thread:$0]  %s5, 256, %s408, [#allocation6], 64, 64, 4
        $region28: #{tpu_custom_call.1} parent=11 // pred_fallthru
          _
        // Predicated region
        $region29: #{tpu_custom_call.1} parent=11 // pred_check
          %p414 = pneg %p184
        $region30: #{tpu_custom_call.1} parent=11 // pred_check_branch
          %416 = sbr.rel (%p414) target = $region32
        $region31: #{tpu_custom_call.1} parent=11 // pred_region
          %s418 = ssub.s32 256, 256
          %419 = vsyncadd [#allocation9], %s418
          %s420 = sshll.u32 [#allocation8], 4
          %s421 = int_to_ptr.vmem [resolvable:$true] %s420
          %426 = dma.hbm_to_vmem [thread:$0]  %s6, 256, %s421, [#allocation9], 64, 64, 4
        $region32: #{tpu_custom_call.1} parent=11 // pred_fallthru
          _
        // Predicated region
        $region33: #{tpu_custom_call.1} parent=11 // pred_check
          %p427 = pneg %p205
        $region34: #{tpu_custom_call.1} parent=11 // pred_check_branch
          %429 = sbr.rel (%p427) target = $region36
        $region35: #{tpu_custom_call.1} parent=11 // pred_region
          %s431 = ssub.s32 256, 256
          %432 = vsyncadd [#allocation9], %s431
          %s433 = sshll.u32 [#allocation10], 4
          %s434 = int_to_ptr.vmem [resolvable:$true] %s433
          %439 = dma.hbm_to_vmem [thread:$0]  %s7, 256, %s434, [#allocation9], 64, 64, 4
        $region36: #{tpu_custom_call.1} parent=11 // pred_fallthru
          _
        // Predicated region
        $region37: #{tpu_custom_call.1} parent=11 // pred_check
          %p440 = pneg %p226
        $region38: #{tpu_custom_call.1} parent=11 // pred_check_branch
          %442 = sbr.rel (%p440) target = $region40
        $region39: #{tpu_custom_call.1} parent=11 // pred_region
          %s444 = ssub.s32 256, 256
          %445 = vsyncadd [#allocation12], %s444
          %s446 = sshll.u32 [#allocation11], 4
          %s447 = int_to_ptr.vmem [resolvable:$true] %s446
          %452 = dma.hbm_to_vmem [thread:$0]  %s8, 256, %s447, [#allocation12], 64, 64, 4
        $region40: #{tpu_custom_call.1} parent=11 // pred_fallthru
          _
        // Predicated region
        $region41: #{tpu_custom_call.1} parent=11 // pred_check
          %p453 = pneg %p247
        $region42: #{tpu_custom_call.1} parent=11 // pred_check_branch
          %455 = sbr.rel (%p453) target = $region44
        $region43: #{tpu_custom_call.1} parent=11 // pred_region
          _
        $region44: #{tpu_custom_call.1} parent=11 // pred_fallthru
          _
        // Predicated region
        $region45: #{tpu_custom_call.1} parent=11 // pred_check
          %p456 = pneg %p268
        $region46: #{tpu_custom_call.1} parent=11 // pred_check_branch
          %458 = sbr.rel (%p456) target = $region48
        $region47: #{tpu_custom_call.1} parent=11 // pred_region
          %s460 = ssub.s32 256, 256
          %461 = vsyncadd [#allocation12], %s460
          %s462 = sshll.u32 [#allocation13], 4
          %s463 = int_to_ptr.vmem [resolvable:$true] %s462
          %468 = dma.hbm_to_vmem [thread:$0]  %s10, 256, %s463, [#allocation12], 64, 64, 4
        $region48: #{tpu_custom_call.1} parent=11 // pred_fallthru
          _
        // Predicated region
        $region49: #{tpu_custom_call.1} parent=11 // pred_check
          %p469 = pneg %p289
        $region50: #{tpu_custom_call.1} parent=11 // pred_check_branch
          %471 = sbr.rel (%p469) target = $region52
        $region51: #{tpu_custom_call.1} parent=11 // pred_region
          _
        $region52: #{tpu_custom_call.1} parent=11 // pred_fallthru
          _
        // Predicated region
        $region53: #{tpu_custom_call.1} parent=11 // pred_check
          %p472 = pneg %p310
        $region54: #{tpu_custom_call.1} parent=11 // pred_check_branch
          %474 = sbr.rel (%p472) target = $region56
        $region55: #{tpu_custom_call.1} parent=11 // pred_region
          _
        $region56: #{tpu_custom_call.1} parent=11 // pred_fallthru
          _
        // Predicated region
        $region57: #{tpu_custom_call.1} parent=11 // pred_check
          %p475 = pneg %p331
        $region58: #{tpu_custom_call.1} parent=11 // pred_check_branch
          %477 = sbr.rel (%p475) target = $region60
        $region59: #{tpu_custom_call.1} parent=11 // pred_region
          _
        $region60: #{tpu_custom_call.1} parent=11 // pred_fallthru
          _
      $region12: #{tpu_custom_call.1} parent=5 // pred_fallthru
        _
      %p478 = scmp.lt.s32.totalorder %s27, 2
      // Predicated region
      $region61: #{tpu_custom_call.1} parent=5 // pred_check
        %p479 = pneg %p478
      $region62: #{tpu_custom_call.1} parent=5 // pred_check_branch
        %481 = sbr.rel (%p479) target = $region64
      $region63: #{tpu_custom_call.1} parent=5 // pred_region
        // Predicated region
        $region65: #{tpu_custom_call.1} parent=63 // pred_check
          %p482 = pneg %p47
        $region66: #{tpu_custom_call.1} parent=63 // pred_check_branch
          %484 = sbr.rel (%p482) target = $region68
        $region67: #{tpu_custom_call.1} parent=63 // pred_region
          %p485 = scmp.lt.s32.totalorder %s27, 1
          %s486 = scalar_select %p485, %s27, 1
          %s487 = smul.addr %s486, 8
          %s488 = scalar_lea.vmem %s0, %s487
        $region68: #{tpu_custom_call.1} parent=63 // pred_fallthru
          _
        // Predicated region
        $region69: #{tpu_custom_call.1} parent=63 // pred_check
          %p489 = pneg %p73
        $region70: #{tpu_custom_call.1} parent=63 // pred_check_branch
          %491 = sbr.rel (%p489) target = $region72
        $region71: #{tpu_custom_call.1} parent=63 // pred_region
          %p492 = scmp.lt.s32.totalorder %s27, 1
          %s493 = scalar_select %p492, %s27, 1
          %s494 = smul.addr %s493, 8
          %s495 = scalar_lea.vmem %s1, %s494
        $region72: #{tpu_custom_call.1} parent=63 // pred_fallthru
          _
      $region64: #{tpu_custom_call.1} parent=5 // pred_fallthru
        _
      %p496 = scmp.le.s32.totalorder 1, %s27
      %p497 = scmp.lt.s32.totalorder %s27, 3
      %p498 = pnand %p496, %p497
      %p499 = pneg %p498
      // Predicated region
      $region73: #{tpu_custom_call.1} parent=5 // pred_check
        _
      $region74: #{tpu_custom_call.1} parent=5 // pred_check_branch
        %501 = sbr.rel (%p498) target = $region76
      $region75: #{tpu_custom_call.1} parent=5 // pred_region
        %s502 = ssub.s32 %s27, 1
        // Predicated region
        $region77: #{tpu_custom_call.1} parent=75 // pred_check
          %p503 = pneg %p121
        $region78: #{tpu_custom_call.1} parent=75 // pred_check_branch
          %505 = sbr.rel (%p503) target = $region80
        $region79: #{tpu_custom_call.1} parent=75 // pred_region
          %506 = dma.done [#allocation3], 256
        $region80: #{tpu_custom_call.1} parent=75 // pred_fallthru
          _
        // Predicated region
        $region81: #{tpu_custom_call.1} parent=75 // pred_check
          %p507 = pneg %p142
        $region82: #{tpu_custom_call.1} parent=75 // pred_check_branch
          %509 = sbr.rel (%p507) target = $region84
        $region83: #{tpu_custom_call.1} parent=75 // pred_region
          %510 = dma.done [#allocation6], 256
        $region84: #{tpu_custom_call.1} parent=75 // pred_fallthru
          _
        // Predicated region
        $region85: #{tpu_custom_call.1} parent=75 // pred_check
          %p511 = pneg %p163
        $region86: #{tpu_custom_call.1} parent=75 // pred_check_branch
          %513 = sbr.rel (%p511) target = $region88
        $region87: #{tpu_custom_call.1} parent=75 // pred_region
          %514 = dma.done [#allocation6], 256
        $region88: #{tpu_custom_call.1} parent=75 // pred_fallthru
          _
        // Predicated region
        $region89: #{tpu_custom_call.1} parent=75 // pred_check
          %p515 = pneg %p184
        $region90: #{tpu_custom_call.1} parent=75 // pred_check_branch
          %517 = sbr.rel (%p515) target = $region92
        $region91: #{tpu_custom_call.1} parent=75 // pred_region
          %518 = dma.done [#allocation9], 256
        $region92: #{tpu_custom_call.1} parent=75 // pred_fallthru
          _
        // Predicated region
        $region93: #{tpu_custom_call.1} parent=75 // pred_check
          %p519 = pneg %p205
        $region94: #{tpu_custom_call.1} parent=75 // pred_check_branch
          %521 = sbr.rel (%p519) target = $region96
        $region95: #{tpu_custom_call.1} parent=75 // pred_region
          %522 = dma.done [#allocation9], 256
        $region96: #{tpu_custom_call.1} parent=75 // pred_fallthru
          _
        // Predicated region
        $region97: #{tpu_custom_call.1} parent=75 // pred_check
          %p523 = pneg %p226
        $region98: #{tpu_custom_call.1} parent=75 // pred_check_branch
          %525 = sbr.rel (%p523) target = $region100
        $region99: #{tpu_custom_call.1} parent=75 // pred_region
          %526 = dma.done [#allocation12], 256
        $region100: #{tpu_custom_call.1} parent=75 // pred_fallthru
          _
        // Predicated region
        $region101: #{tpu_custom_call.1} parent=75 // pred_check
          %p527 = pneg %p268
        $region102: #{tpu_custom_call.1} parent=75 // pred_check_branch
          %529 = sbr.rel (%p527) target = $region104
        $region103: #{tpu_custom_call.1} parent=75 // pred_region
          %530 = dma.done [#allocation12], 256
        $region104: #{tpu_custom_call.1} parent=75 // pred_fallthru
          _
        %p531 = scmp.lt.s32.totalorder %s32, 1
        %s532 = scalar_select %p531, %s32, 1
        %s533 = smul.addr %s532, 8
        %s534 = scalar_lea.vmem %s0, %s533
        %p535 = pneg %p53
        %p536 = pneg %p50
        %p537 = scmp.lt.s32.totalorder %s32, 1
        %s538 = scalar_select %p537, %s32, 1
        %s539 = smul.addr %s538, 8
        %s540 = scalar_lea.vmem %s1, %s539
        %p541 = pneg %p79
        %p542 = pneg %p76
        %p543 = pneg %p100
        %p544 = pneg %p97
        %p545 = pneg %p121
        %p546 = pneg %p118
        %p547 = pneg %p142
        %p548 = pneg %p139
        %p549 = pneg %p163
        %p550 = pneg %p160
        %p551 = pneg %p184
        %p552 = pneg %p181
        %p553 = pneg %p205
        %p554 = pneg %p202
        %p555 = pneg %p226
        %p556 = pneg %p223
        %p557 = pneg %p247
        %p558 = pneg %p244
        %p559 = pneg %p268
        %p560 = pneg %p265
        %p561 = pneg %p289
        %p562 = pneg %p286
        %p563 = pneg %p310
        %p564 = pneg %p307
        %p565 = pneg %p331
        %p566 = pneg %p328
        %p567 = pneg %p357
        %p568 = pneg %p354
        %s569 = sand.u32 %s344, 1
        %s570 = scalar_lea.sflag [#allocation4], %s569
        %s571 = sand.u32 %s344, 1
        %s572 = smul.addr %s571, 8
        %s573 = scalar_lea.vmem [#allocation14], %s572
        %p574 = scmp.lt.s32.totalorder %s32, 1
        %s575 = scalar_select %p574, %s32, 1
        %s576 = smul.addr %s575, 8
        %s577 = scalar_lea.vmem %s0, %s576
        %p578 = scmp.lt.s32.totalorder %s32, 1
        %s579 = scalar_select %p578, %s32, 1
        %s580 = smul.addr %s579, 8
        %s581 = scalar_lea.vmem %s1, %s580
        %v583 = vld [vmem:[%s577] sm:$0xff]
        %v584 = vld [vmem:[%s581] sm:$0xff]
        %v585 = vpack.c.bf16 %v584, %v584
        %v586 = vld [vmem:[%s13] sm:$0xff]
        %v587 = vld [vmem:[%s13 + $0x8] sm:$0x7f]
        %v588 = vpack.c.bf16 %v583, %v583
        %v589 = vld [vmem:[%s2] sm:$0xf]
        %v590 = vld [vmem:[%s2 + $0x4] sm:$0xf]
        %v591 = vld [vmem:[%s2 + $0x8] sm:$0xf]
        %v592 = vld [vmem:[%s2 + $0xc] sm:$0xf]
        %v593 = vlaneseq
        %v594 = vshrl.u32 %v593, 7
        %v595 = vsub.s32 0, %v594
        %v596 = vrot.slane %v586, %v595
        %v601 = vunpack.c.l.b16 %v589
        %v602 = vunpack.c.l.b16 %v590
        %v603 = vunpack.c.l.b16 %v591
        %v604 = vunpack.c.l.b16 %v592
        %v605 = vpack.c.b16 %v602, %v601
        %v606 = vpack.c.b16 %v604, %v603
        %vm609 = vcmask 261120
        %v611 = vsel %vm609, %v588, 0
        %613 = vmatprep.subr.bf16.mxu0 0
        %614 = vmatpush1.bf16.msra.mxu0 %v605
        %615 = vmatprep.subr.bf16.mxu0 0
        %616 = vmatpush1.bf16.msra.mxu0 %v606
        %617 = vmatprep.subr.bf16.mxu0 0
        %618 = vmatpush1.bf16.msra.mxu0 0
        %619 = vmatprep.subr.bf16.mxu0 0
        %620 = vmatpush1.bf16.msra.mxu0 0
        %621 = vmatprep.subr.bf16.mxu0 0
        %622 = vmatpush1.bf16.msra.mxu0 0
        %623 = vmatprep.subr.bf16.mxu0 0
        %624 = vmatpush1.bf16.msra.mxu0 0
        %625 = vmatprep.subr.bf16.mxu0 0
        %626 = vmatpush1.bf16.msra.mxu0 0
        %627 = vmatprep.subr.bf16.mxu0 0
        %628 = vmatpush1.bf16.msra.mxu0 0
        %629 = vmatprep.subr.bf16.mxu0 0
        %630 = vmatpush1.bf16.msra.mxu0 0
        %631 = vmatprep.subr.bf16.mxu0 0
        %632 = vmatpush1.bf16.msra.mxu0 0
        %633 = vmatprep.subr.bf16.mxu0 0
        %634 = vmatpush1.bf16.msra.mxu0 0
        %635 = vmatprep.subr.bf16.mxu0 0
        %636 = vmatpush1.bf16.msra.mxu0 0
        %637 = vmatprep.subr.bf16.mxu0 0
        %638 = vmatpush1.bf16.msra.mxu0 0
        %639 = vmatprep.subr.bf16.mxu0 0
        %640 = vmatpush1.bf16.msra.mxu0 0
        %641 = vmatprep.subr.bf16.mxu0 0
        %642 = vmatpush1.bf16.msra.mxu0 0
        %643 = vmatprep.subr.bf16.mxu0 0
        %644 = vmatpush1.bf16.msra.mxu0 0
        %645 = vmatprep.mubr.bf16.mxu0 0
        %646 = vmatmul.mubr.bf16.gmra.mrb[0].mxu0 %v611
        %v647 = vpop.f32.mrb[0].mxu0
        %v648 = vadd.f32 %v596, %v647
        %v649 = vpop.f32.mrb[0].mxu0
        %v650 = vpop.f32.mrb[0].mxu0
        %v651 = vpop.f32.mrb[0].mxu0
        %652 = vdwg.mxu0
        %v653 = vld [vmem:[#allocation2] sm:$0xf]
        %v654 = vld [vmem:[#allocation2 + $0x4] sm:$0xf]
        %v655 = vld [vmem:[#allocation2 + $0x8] sm:$0xf]
        %v656 = vld [vmem:[#allocation2 + $0xc] sm:$0xf]
        %v657 = vlaneseq
        %v658 = vshrl.u32 %v657, 7
        %v659 = vsub.s32 1, %v658
        %v660 = vrot.slane %v586, %v659
        %v665 = vunpack.c.l.b16 %v653
        %v666 = vunpack.c.l.b16 %v654
        %v667 = vunpack.c.l.b16 %v655
        %v668 = vunpack.c.l.b16 %v656
        %v669 = vpack.c.b16 %v666, %v665
        %v670 = vpack.c.b16 %v668, %v667
        %673 = vmatprep.subr.bf16.mxu0 0
        %674 = vmatpush1.bf16.msra.mxu0 %v669
        %675 = vmatprep.subr.bf16.mxu0 0
        %676 = vmatpush1.bf16.msra.mxu0 %v670
        %677 = vmatprep.subr.bf16.mxu0 0
        %678 = vmatpush1.bf16.msra.mxu0 0
        %679 = vmatprep.subr.bf16.mxu0 0
        %680 = vmatpush1.bf16.msra.mxu0 0
        %681 = vmatprep.subr.bf16.mxu0 0
        %682 = vmatpush1.bf16.msra.mxu0 0
        %683 = vmatprep.subr.bf16.mxu0 0
        %684 = vmatpush1.bf16.msra.mxu0 0
        %685 = vmatprep.subr.bf16.mxu0 0
        %686 = vmatpush1.bf16.msra.mxu0 0
        %687 = vmatprep.subr.bf16.mxu0 0
        %688 = vmatpush1.bf16.msra.mxu0 0
        %689 = vmatprep.subr.bf16.mxu0 0
        %690 = vmatpush1.bf16.msra.mxu0 0
        %691 = vmatprep.subr.bf16.mxu0 0
        %692 = vmatpush1.bf16.msra.mxu0 0
        %693 = vmatprep.subr.bf16.mxu0 0
        %694 = vmatpush1.bf16.msra.mxu0 0
        %695 = vmatprep.subr.bf16.mxu0 0
        %696 = vmatpush1.bf16.msra.mxu0 0
        %697 = vmatprep.subr.bf16.mxu0 0
        %698 = vmatpush1.bf16.msra.mxu0 0
        %699 = vmatprep.subr.bf16.mxu0 0
        %700 = vmatpush1.bf16.msra.mxu0 0
        %701 = vmatprep.subr.bf16.mxu0 0
        %702 = vmatpush1.bf16.msra.mxu0 0
        %703 = vmatprep.subr.bf16.mxu0 0
        %704 = vmatpush1.bf16.msra.mxu0 0
        %705 = vmatprep.mubr.bf16.mxu0 0
        %706 = vmatmul.mubr.bf16.gmra.mrb[0].mxu0 %v611
        %v707 = vpop.f32.mrb[0].mxu0
        %v708 = vadd.f32 %v660, %v707
        %v709 = vpop.f32.mrb[0].mxu0
        %v710 = vpop.f32.mrb[0].mxu0
        %v711 = vpop.f32.mrb[0].mxu0
        %712 = vdwg.mxu0
        %v713 = vld [vmem:[#allocation5] sm:$0xf]
        %v714 = vld [vmem:[#allocation5 + $0x4] sm:$0xf]
        %v715 = vld [vmem:[#allocation5 + $0x8] sm:$0xf]
        %v716 = vld [vmem:[#allocation5 + $0xc] sm:$0xf]
        %v717 = vlaneseq
        %v718 = vshrl.u32 %v717, 7
        %v719 = vsub.s32 2, %v718
        %v720 = vrot.slane %v586, %v719
        %v725 = vunpack.c.l.b16 %v713
        %v726 = vunpack.c.l.b16 %v714
        %v727 = vunpack.c.l.b16 %v715
        %v728 = vunpack.c.l.b16 %v716
        %v729 = vpack.c.b16 %v726, %v725
        %v730 = vpack.c.b16 %v728, %v727
        %733 = vmatprep.subr.bf16.mxu0 0
        %734 = vmatpush1.bf16.msra.mxu0 %v729
        %735 = vmatprep.subr.bf16.mxu0 0
        %736 = vmatpush1.bf16.msra.mxu0 %v730
        %737 = vmatprep.subr.bf16.mxu0 0
        %738 = vmatpush1.bf16.msra.mxu0 0
        %739 = vmatprep.subr.bf16.mxu0 0
        %740 = vmatpush1.bf16.msra.mxu0 0
        %741 = vmatprep.subr.bf16.mxu0 0
        %742 = vmatpush1.bf16.msra.mxu0 0
        %743 = vmatprep.subr.bf16.mxu0 0
        %744 = vmatpush1.bf16.msra.mxu0 0
        %745 = vmatprep.subr.bf16.mxu0 0
        %746 = vmatpush1.bf16.msra.mxu0 0
        %747 = vmatprep.subr.bf16.mxu0 0
        %748 = vmatpush1.bf16.msra.mxu0 0
        %749 = vmatprep.subr.bf16.mxu0 0
        %750 = vmatpush1.bf16.msra.mxu0 0
        %751 = vmatprep.subr.bf16.mxu0 0
        %752 = vmatpush1.bf16.msra.mxu0 0
        %753 = vmatprep.subr.bf16.mxu0 0
        %754 = vmatpush1.bf16.msra.mxu0 0
        %755 = vmatprep.subr.bf16.mxu0 0
        %756 = vmatpush1.bf16.msra.mxu0 0
        %757 = vmatprep.subr.bf16.mxu0 0
        %758 = vmatpush1.bf16.msra.mxu0 0
        %759 = vmatprep.subr.bf16.mxu0 0
        %760 = vmatpush1.bf16.msra.mxu0 0
        %761 = vmatprep.subr.bf16.mxu0 0
        %762 = vmatpush1.bf16.msra.mxu0 0
        %763 = vmatprep.subr.bf16.mxu0 0
        %764 = vmatpush1.bf16.msra.mxu0 0
        %765 = vmatprep.mubr.bf16.mxu0 0
        %766 = vmatmul.mubr.bf16.gmra.mrb[0].mxu0 %v611
        %v767 = vpop.f32.mrb[0].mxu0
        %v768 = vadd.f32 %v720, %v767
        %v769 = vpop.f32.mrb[0].mxu0
        %v770 = vpop.f32.mrb[0].mxu0
        %v771 = vpop.f32.mrb[0].mxu0
        %772 = vdwg.mxu0
        %774 = vrot.lane.b32.xlu0 %v648, 120
        %v775 = vpop.permute.xlu0 %774
        %777 = vrot.lane.b32.xlu0 %v648, 112
        %v778 = vpop.permute.xlu0 %777
        %780 = vrot.lane.b32.xlu0 %v648, 104
        %v781 = vpop.permute.xlu0 %780
        %v783 = vcombine.low %v648, %v778
        %v784 = vcombine.high %v648, %v778
        %v786 = vunpack.c.l.s4 1983009808
        %v787 = vunpack.c.0.s8 %v786
        %v788 = vlaneseq
        %v789 = vshrl.u32 %v788, 7
        %v790 = vsub.s32 %v787, %v789
        %v791 = vrot.slane %v783, %v790
        %v793 = vunpack.c.l.s4 1983009808
        %v794 = vunpack.c.0.s8 %v793
        %v795 = vlaneseq
        %v796 = vshrl.u32 %v795, 7
        %v797 = vsub.s32 %v794, %v796
        %v798 = vrot.slane %v784, %v797
        %v799 = vcombine.low %v775, %v781
        %v800 = vcombine.high %v775, %v781
        %v802 = vunpack.c.l.s4 1983009808
        %v803 = vunpack.c.0.s8 %v802
        %v804 = vlaneseq
        %v805 = vshrl.u32 %v804, 7
        %v806 = vsub.s32 %v803, %v805
        %v807 = vrot.slane %v799, %v806
        %v809 = vunpack.c.l.s4 1983009808
        %v810 = vunpack.c.0.s8 %v809
        %v811 = vlaneseq
        %v812 = vshrl.u32 %v811, 7
        %v813 = vsub.s32 %v810, %v812
        %v814 = vrot.slane %v800, %v813
        %v815 = vcombine.low %v791, %v807
        %v816 = vcombine.high %v791, %v807
        %v818 = vunpack.c.l.s4 1934713408
        %v819 = vunpack.c.0.s8 %v818
        %v820 = vlaneseq
        %v821 = vshrl.u32 %v820, 7
        %v822 = vsub.s32 %v819, %v821
        %v823 = vrot.slane %v815, %v822
        %v825 = vunpack.c.l.s4 1934713408
        %v826 = vunpack.c.0.s8 %v825
        %v827 = vlaneseq
        %v828 = vshrl.u32 %v827, 7
        %v829 = vsub.s32 %v826, %v828
        %v830 = vrot.slane %v816, %v829
        %v831 = vcombine.low %v798, %v814
        %v832 = vcombine.high %v798, %v814
        %v834 = vunpack.c.l.s4 1934713408
        %v835 = vunpack.c.0.s8 %v834
        %v836 = vlaneseq
        %v837 = vshrl.u32 %v836, 7
        %v838 = vsub.s32 %v835, %v837
        %v839 = vrot.slane %v831, %v838
        %v841 = vunpack.c.l.s4 1934713408
        %v842 = vunpack.c.0.s8 %v841
        %v843 = vlaneseq
        %v844 = vshrl.u32 %v843, 7
        %v845 = vsub.s32 %v842, %v844
        %v846 = vrot.slane %v832, %v845
        %v847 = vcombine.high %v823, 0.0
        %v848 = vcombine.high %v830, 0.0
        %v849 = vcombine.high %v839, 0.0
        %v850 = vcombine.high %v846, 0.0
        %v851 = vcombine.low %v823, %v830
        %v853 = vunpack.c.l.s4 1983009808
        %v854 = vunpack.c.0.s8 %v853
        %v855 = vlaneseq
        %v856 = vshrl.u32 %v855, 7
        %v857 = vsub.s32 %v854, %v856
        %v858 = vrot.slane %v851, %v857
        %v859 = vcombine.low %v847, %v848
        %v861 = vunpack.c.l.s4 1983009808
        %v862 = vunpack.c.0.s8 %v861
        %v863 = vlaneseq
        %v864 = vshrl.u32 %v863, 7
        %v865 = vsub.s32 %v862, %v864
        %v866 = vrot.slane %v859, %v865
        %v867 = vcombine.low %v839, %v846
        %v869 = vunpack.c.l.s4 1983009808
        %v870 = vunpack.c.0.s8 %v869
        %v871 = vlaneseq
        %v872 = vshrl.u32 %v871, 7
        %v873 = vsub.s32 %v870, %v872
        %v874 = vrot.slane %v867, %v873
        %v875 = vcombine.low %v849, %v850
        %v877 = vunpack.c.l.s4 1983009808
        %v878 = vunpack.c.0.s8 %v877
        %v879 = vlaneseq
        %v880 = vshrl.u32 %v879, 7
        %v881 = vsub.s32 %v878, %v880
        %v882 = vrot.slane %v875, %v881
        %v883 = vcombine.low %v858, %v866
        %v884 = vcombine.high %v858, %v866
        %v886 = vunpack.c.l.s4 1934713408
        %v887 = vunpack.c.0.s8 %v886
        %v888 = vlaneseq
        %v889 = vshrl.u32 %v888, 7
        %v890 = vsub.s32 %v887, %v889
        %v891 = vrot.slane %v883, %v890
        %v893 = vunpack.c.l.s4 1934713408
        %v894 = vunpack.c.0.s8 %v893
        %v895 = vlaneseq
        %v896 = vshrl.u32 %v895, 7
        %v897 = vsub.s32 %v894, %v896
        %v898 = vrot.slane %v884, %v897
        %v899 = vcombine.low %v874, %v882
        %v900 = vcombine.high %v874, %v882
        %v902 = vunpack.c.l.s4 1934713408
        %v903 = vunpack.c.0.s8 %v902
        %v904 = vlaneseq
        %v905 = vshrl.u32 %v904, 7
        %v906 = vsub.s32 %v903, %v905
        %v907 = vrot.slane %v899, %v906
        %v909 = vunpack.c.l.s4 1934713408
        %v910 = vunpack.c.0.s8 %v909
        %v911 = vlaneseq
        %v912 = vshrl.u32 %v911, 7
        %v913 = vsub.s32 %v910, %v912
        %v914 = vrot.slane %v900, %v913
        %v915 = vcombine.low %v891, %v907
        %v916 = vcombine.high %v891, %v907
        %v917 = vcombine.low %v898, %v914
        %v918 = vcombine.high %v898, %v914
        %v919 = vpack.c.bf16 %v915, %v915
        %v920 = vpack.c.bf16 %v916, %v916
        %v921 = vpack.c.bf16 %v917, %v917
        %v922 = vpack.c.bf16 %v918, %v918
        %924 = vrot.lane.b32.xlu0 %v708, 120
        %v925 = vpop.permute.xlu0 %924
        %927 = vrot.lane.b32.xlu0 %v708, 112
        %v928 = vpop.permute.xlu0 %927
        %930 = vrot.lane.b32.xlu0 %v708, 104
        %v931 = vpop.permute.xlu0 %930
        %v933 = vcombine.low %v708, %v928
        %v934 = vcombine.high %v708, %v928
        %v936 = vunpack.c.l.s4 1983009808
        %v937 = vunpack.c.0.s8 %v936
        %v938 = vlaneseq
        %v939 = vshrl.u32 %v938, 7
        %v940 = vsub.s32 %v937, %v939
        %v941 = vrot.slane %v933, %v940
        %v943 = vunpack.c.l.s4 1983009808
        %v944 = vunpack.c.0.s8 %v943
        %v945 = vlaneseq
        %v946 = vshrl.u32 %v945, 7
        %v947 = vsub.s32 %v944, %v946
        %v948 = vrot.slane %v934, %v947
        %v949 = vcombine.low %v925, %v931
        %v950 = vcombine.high %v925, %v931
        %v952 = vunpack.c.l.s4 1983009808
        %v953 = vunpack.c.0.s8 %v952
        %v954 = vlaneseq
        %v955 = vshrl.u32 %v954, 7
        %v956 = vsub.s32 %v953, %v955
        %v957 = vrot.slane %v949, %v956
        %v959 = vunpack.c.l.s4 1983009808
        %v960 = vunpack.c.0.s8 %v959
        %v961 = vlaneseq
        %v962 = vshrl.u32 %v961, 7
        %v963 = vsub.s32 %v960, %v962
        %v964 = vrot.slane %v950, %v963
        %v965 = vcombine.low %v941, %v957
        %v966 = vcombine.high %v941, %v957
        %v968 = vunpack.c.l.s4 1934713408
        %v969 = vunpack.c.0.s8 %v968
        %v970 = vlaneseq
        %v971 = vshrl.u32 %v970, 7
        %v972 = vsub.s32 %v969, %v971
        %v973 = vrot.slane %v965, %v972
        %v975 = vunpack.c.l.s4 1934713408
        %v976 = vunpack.c.0.s8 %v975
        %v977 = vlaneseq
        %v978 = vshrl.u32 %v977, 7
        %v979 = vsub.s32 %v976, %v978
        %v980 = vrot.slane %v966, %v979
        %v981 = vcombine.low %v948, %v964
        %v982 = vcombine.high %v948, %v964
        %v984 = vunpack.c.l.s4 1934713408
        %v985 = vunpack.c.0.s8 %v984
        %v986 = vlaneseq
        %v987 = vshrl.u32 %v986, 7
        %v988 = vsub.s32 %v985, %v987
        %v989 = vrot.slane %v981, %v988
        %v991 = vunpack.c.l.s4 1934713408
        %v992 = vunpack.c.0.s8 %v991
        %v993 = vlaneseq
        %v994 = vshrl.u32 %v993, 7
        %v995 = vsub.s32 %v992, %v994
        %v996 = vrot.slane %v982, %v995
        %v997 = vcombine.high %v973, 0.0
        %v998 = vcombine.high %v980, 0.0
        %v999 = vcombine.high %v989, 0.0
        %v1000 = vcombine.high %v996, 0.0
        %v1001 = vcombine.low %v973, %v980
        %v1003 = vunpack.c.l.s4 1983009808
        %v1004 = vunpack.c.0.s8 %v1003
        %v1005 = vlaneseq
        %v1006 = vshrl.u32 %v1005, 7
        %v1007 = vsub.s32 %v1004, %v1006
        %v1008 = vrot.slane %v1001, %v1007
        %v1009 = vcombine.low %v997, %v998
        %v1011 = vunpack.c.l.s4 1983009808
        %v1012 = vunpack.c.0.s8 %v1011
        %v1013 = vlaneseq
        %v1014 = vshrl.u32 %v1013, 7
        %v1015 = vsub.s32 %v1012, %v1014
        %v1016 = vrot.slane %v1009, %v1015
        %v1017 = vcombine.low %v989, %v996
        %v1019 = vunpack.c.l.s4 1983009808
        %v1020 = vunpack.c.0.s8 %v1019
        %v1021 = vlaneseq
        %v1022 = vshrl.u32 %v1021, 7
        %v1023 = vsub.s32 %v1020, %v1022
        %v1024 = vrot.slane %v1017, %v1023
        %v1025 = vcombine.low %v999, %v1000
        %v1027 = vunpack.c.l.s4 1983009808
        %v1028 = vunpack.c.0.s8 %v1027
        %v1029 = vlaneseq
        %v1030 = vshrl.u32 %v1029, 7
        %v1031 = vsub.s32 %v1028, %v1030
        %v1032 = vrot.slane %v1025, %v1031
        %v1033 = vcombine.low %v1008, %v1016
        %v1034 = vcombine.high %v1008, %v1016
        %v1036 = vunpack.c.l.s4 1934713408
        %v1037 = vunpack.c.0.s8 %v1036
        %v1038 = vlaneseq
        %v1039 = vshrl.u32 %v1038, 7
        %v1040 = vsub.s32 %v1037, %v1039
        %v1041 = vrot.slane %v1033, %v1040
        %v1043 = vunpack.c.l.s4 1934713408
        %v1044 = vunpack.c.0.s8 %v1043
        %v1045 = vlaneseq
        %v1046 = vshrl.u32 %v1045, 7
        %v1047 = vsub.s32 %v1044, %v1046
        %v1048 = vrot.slane %v1034, %v1047
        %v1049 = vcombine.low %v1024, %v1032
        %v1050 = vcombine.high %v1024, %v1032
        %v1052 = vunpack.c.l.s4 1934713408
        %v1053 = vunpack.c.0.s8 %v1052
        %v1054 = vlaneseq
        %v1055 = vshrl.u32 %v1054, 7
        %v1056 = vsub.s32 %v1053, %v1055
        %v1057 = vrot.slane %v1049, %v1056
        %v1059 = vunpack.c.l.s4 1934713408
        %v1060 = vunpack.c.0.s8 %v1059
        %v1061 = vlaneseq
        %v1062 = vshrl.u32 %v1061, 7
        %v1063 = vsub.s32 %v1060, %v1062
        %v1064 = vrot.slane %v1050, %v1063
        %v1065 = vcombine.low %v1041, %v1057
        %v1066 = vcombine.high %v1041, %v1057
        %v1067 = vcombine.low %v1048, %v1064
        %v1068 = vcombine.high %v1048, %v1064
        %v1069 = vpack.c.bf16 %v1065, %v1065
        %v1070 = vpack.c.bf16 %v1066, %v1066
        %v1071 = vpack.c.bf16 %v1067, %v1067
        %v1072 = vpack.c.bf16 %v1068, %v1068
        %1074 = vrot.lane.b32.xlu0 %v768, 120
        %v1075 = vpop.permute.xlu0 %1074
        %1077 = vrot.lane.b32.xlu0 %v768, 112
        %v1078 = vpop.permute.xlu0 %1077
        %1080 = vrot.lane.b32.xlu0 %v768, 104
        %v1081 = vpop.permute.xlu0 %1080
        %v1083 = vcombine.low %v768, %v1078
        %v1084 = vcombine.high %v768, %v1078
        %v1086 = vunpack.c.l.s4 1983009808
        %v1087 = vunpack.c.0.s8 %v1086
        %v1088 = vlaneseq
        %v1089 = vshrl.u32 %v1088, 7
        %v1090 = vsub.s32 %v1087, %v1089
        %v1091 = vrot.slane %v1083, %v1090
        %v1093 = vunpack.c.l.s4 1983009808
        %v1094 = vunpack.c.0.s8 %v1093
        %v1095 = vlaneseq
        %v1096 = vshrl.u32 %v1095, 7
        %v1097 = vsub.s32 %v1094, %v1096
        %v1098 = vrot.slane %v1084, %v1097
        %v1099 = vcombine.low %v1075, %v1081
        %v1100 = vcombine.high %v1075, %v1081
        %v1102 = vunpack.c.l.s4 1983009808
        %v1103 = vunpack.c.0.s8 %v1102
        %v1104 = vlaneseq
        %v1105 = vshrl.u32 %v1104, 7
        %v1106 = vsub.s32 %v1103, %v1105
        %v1107 = vrot.slane %v1099, %v1106
        %v1109 = vunpack.c.l.s4 1983009808
        %v1110 = vunpack.c.0.s8 %v1109
        %v1111 = vlaneseq
        %v1112 = vshrl.u32 %v1111, 7
        %v1113 = vsub.s32 %v1110, %v1112
        %v1114 = vrot.slane %v1100, %v1113
        %v1115 = vcombine.low %v1091, %v1107
        %v1116 = vcombine.high %v1091, %v1107
        %v1118 = vunpack.c.l.s4 1934713408
        %v1119 = vunpack.c.0.s8 %v1118
        %v1120 = vlaneseq
        %v1121 = vshrl.u32 %v1120, 7
        %v1122 = vsub.s32 %v1119, %v1121
        %v1123 = vrot.slane %v1115, %v1122
        %v1125 = vunpack.c.l.s4 1934713408
        %v1126 = vunpack.c.0.s8 %v1125
        %v1127 = vlaneseq
        %v1128 = vshrl.u32 %v1127, 7
        %v1129 = vsub.s32 %v1126, %v1128
        %v1130 = vrot.slane %v1116, %v1129
        %v1131 = vcombine.low %v1098, %v1114
        %v1132 = vcombine.high %v1098, %v1114
        %v1134 = vunpack.c.l.s4 1934713408
        %v1135 = vunpack.c.0.s8 %v1134
        %v1136 = vlaneseq
        %v1137 = vshrl.u32 %v1136, 7
        %v1138 = vsub.s32 %v1135, %v1137
        %v1139 = vrot.slane %v1131, %v1138
        %v1141 = vunpack.c.l.s4 1934713408
        %v1142 = vunpack.c.0.s8 %v1141
        %v1143 = vlaneseq
        %v1144 = vshrl.u32 %v1143, 7
        %v1145 = vsub.s32 %v1142, %v1144
        %v1146 = vrot.slane %v1132, %v1145
        %v1147 = vcombine.high %v1123, 0.0
        %v1148 = vcombine.high %v1130, 0.0
        %v1149 = vcombine.high %v1139, 0.0
        %v1150 = vcombine.high %v1146, 0.0
        %v1151 = vcombine.low %v1123, %v1130
        %v1153 = vunpack.c.l.s4 1983009808
        %v1154 = vunpack.c.0.s8 %v1153
        %v1155 = vlaneseq
        %v1156 = vshrl.u32 %v1155, 7
        %v1157 = vsub.s32 %v1154, %v1156
        %v1158 = vrot.slane %v1151, %v1157
        %v1159 = vcombine.low %v1147, %v1148
        %v1161 = vunpack.c.l.s4 1983009808
        %v1162 = vunpack.c.0.s8 %v1161
        %v1163 = vlaneseq
        %v1164 = vshrl.u32 %v1163, 7
        %v1165 = vsub.s32 %v1162, %v1164
        %v1166 = vrot.slane %v1159, %v1165
        %v1167 = vcombine.low %v1139, %v1146
        %v1169 = vunpack.c.l.s4 1983009808
        %v1170 = vunpack.c.0.s8 %v1169
        %v1171 = vlaneseq
        %v1172 = vshrl.u32 %v1171, 7
        %v1173 = vsub.s32 %v1170, %v1172
        %v1174 = vrot.slane %v1167, %v1173
        %v1175 = vcombine.low %v1149, %v1150
        %v1177 = vunpack.c.l.s4 1983009808
        %v1178 = vunpack.c.0.s8 %v1177
        %v1179 = vlaneseq
        %v1180 = vshrl.u32 %v1179, 7
        %v1181 = vsub.s32 %v1178, %v1180
        %v1182 = vrot.slane %v1175, %v1181
        %v1183 = vcombine.low %v1158, %v1166
        %v1184 = vcombine.high %v1158, %v1166
        %v1186 = vunpack.c.l.s4 1934713408
        %v1187 = vunpack.c.0.s8 %v1186
        %v1188 = vlaneseq
        %v1189 = vshrl.u32 %v1188, 7
        %v1190 = vsub.s32 %v1187, %v1189
        %v1191 = vrot.slane %v1183, %v1190
        %v1193 = vunpack.c.l.s4 1934713408
        %v1194 = vunpack.c.0.s8 %v1193
        %v1195 = vlaneseq
        %v1196 = vshrl.u32 %v1195, 7
        %v1197 = vsub.s32 %v1194, %v1196
        %v1198 = vrot.slane %v1184, %v1197
        %v1199 = vcombine.low %v1174, %v1182
        %v1200 = vcombine.high %v1174, %v1182
        %v1202 = vunpack.c.l.s4 1934713408
        %v1203 = vunpack.c.0.s8 %v1202
        %v1204 = vlaneseq
        %v1205 = vshrl.u32 %v1204, 7
        %v1206 = vsub.s32 %v1203, %v1205
        %v1207 = vrot.slane %v1199, %v1206
        %v1209 = vunpack.c.l.s4 1934713408
        %v1210 = vunpack.c.0.s8 %v1209
        %v1211 = vlaneseq
        %v1212 = vshrl.u32 %v1211, 7
        %v1213 = vsub.s32 %v1210, %v1212
        %v1214 = vrot.slane %v1200, %v1213
        %v1215 = vcombine.low %v1191, %v1207
        %v1216 = vcombine.high %v1191, %v1207
        %v1217 = vcombine.low %v1198, %v1214
        %v1218 = vcombine.high %v1198, %v1214
        %v1219 = vpack.c.bf16 %v1215, %v1215
        %v1220 = vpack.c.bf16 %v1216, %v1216
        %v1221 = vpack.c.bf16 %v1217, %v1217
        %v1222 = vpack.c.bf16 %v1218, %v1218
        %vm1223 = vcmask 64512
        %v1225 = vsel %vm1223, %v919, 0
        %v1228 = vsel %vm1223, %v1069, 0
        %1230 = vmatprep.subr.bf16.mxu0 0
        %1231 = vmatpush1.bf16.xpose.msra.mxu0 %v1228
        %1232 = vmatprep.subr.bf16.mxu0 0
        %1233 = vmatpush1.bf16.xpose.msra.mxu0 0
        %1234 = vmatprep.subr.bf16.mxu0 0
        %1235 = vmatpush1.bf16.xpose.msra.mxu0 0
        %1236 = vmatprep.subr.bf16.mxu0 0
        %1237 = vmatpush1.bf16.xpose.msra.mxu0 0
        %1238 = vmatprep.subr.bf16.mxu0 0
        %1239 = vmatpush1.bf16.xpose.msra.mxu0 0
        %1240 = vmatprep.subr.bf16.mxu0 0
        %1241 = vmatpush1.bf16.xpose.msra.mxu0 0
        %1242 = vmatprep.subr.bf16.mxu0 0
        %1243 = vmatpush1.bf16.xpose.msra.mxu0 0
        %1244 = vmatprep.subr.bf16.mxu0 0
        %1245 = vmatpush1.bf16.xpose.msra.mxu0 0
        %1246 = vmatprep.subr.bf16.mxu0 0
        %1247 = vmatpush1.bf16.xpose.msra.mxu0 0
        %1248 = vmatprep.subr.bf16.mxu0 0
        %1249 = vmatpush1.bf16.xpose.msra.mxu0 0
        %1250 = vmatprep.subr.bf16.mxu0 0
        %1251 = vmatpush1.bf16.xpose.msra.mxu0 0
        %1252 = vmatprep.subr.bf16.mxu0 0
        %1253 = vmatpush1.bf16.xpose.msra.mxu0 0
        %1254 = vmatprep.subr.bf16.mxu0 0
        %1255 = vmatpush1.bf16.xpose.msra.mxu0 0
        %1256 = vmatprep.subr.bf16.mxu0 0
        %1257 = vmatpush1.bf16.xpose.msra.mxu0 0
        %1258 = vmatprep.subr.bf16.mxu0 0
        %1259 = vmatpush1.bf16.xpose.msra.mxu0 0
        %1260 = vmatprep.subr.bf16.mxu0 0
        %1261 = vmatpush1.bf16.xpose.msra.mxu0 0
        %1262 = vmatprep.mubr.bf16.mxu0 0
        %1263 = vmatmul.mubr.bf16.gmra.mrb[0].mxu0 %v1225
        %v1264 = vpop.f32.mrb[0].mxu0
        %v1265 = vadd.f32 0.0, %v1264
        %v1266 = vpop.f32.mrb[0].mxu0
        %v1267 = vpop.f32.mrb[0].mxu0
        %v1268 = vpop.f32.mrb[0].mxu0
        %1269 = vdwg.mxu0
        %v1271 = vsel %vm1223, %v920, 0
        %v1274 = vsel %vm1223, %v1070, 0
        %1276 = vmatprep.subr.bf16.mxu0 0
        %1277 = vmatpush1.bf16.xpose.msra.mxu0 %v1274
        %1278 = vmatprep.subr.bf16.mxu0 0
        %1279 = vmatpush1.bf16.xpose.msra.mxu0 0
        %1280 = vmatprep.subr.bf16.mxu0 0
        %1281 = vmatpush1.bf16.xpose.msra.mxu0 0
        %1282 = vmatprep.subr.bf16.mxu0 0
        %1283 = vmatpush1.bf16.xpose.msra.mxu0 0
        %1284 = vmatprep.subr.bf16.mxu0 0
        %1285 = vmatpush1.bf16.xpose.msra.mxu0 0
        %1286 = vmatprep.subr.bf16.mxu0 0
        %1287 = vmatpush1.bf16.xpose.msra.mxu0 0
        %1288 = vmatprep.subr.bf16.mxu0 0
        %1289 = vmatpush1.bf16.xpose.msra.mxu0 0
        %1290 = vmatprep.subr.bf16.mxu0 0
        %1291 = vmatpush1.bf16.xpose.msra.mxu0 0
        %1292 = vmatprep.subr.bf16.mxu0 0
        %1293 = vmatpush1.bf16.xpose.msra.mxu0 0
        %1294 = vmatprep.subr.bf16.mxu0 0
        %1295 = vmatpush1.bf16.xpose.msra.mxu0 0
        %1296 = vmatprep.subr.bf16.mxu0 0
        %1297 = vmatpush1.bf16.xpose.msra.mxu0 0
        %1298 = vmatprep.subr.bf16.mxu0 0
        %1299 = vmatpush1.bf16.xpose.msra.mxu0 0
        %1300 = vmatprep.subr.bf16.mxu0 0
        %1301 = vmatpush1.bf16.xpose.msra.mxu0 0
        %1302 = vmatprep.subr.bf16.mxu0 0
        %1303 = vmatpush1.bf16.xpose.msra.mxu0 0
        %1304 = vmatprep.subr.bf16.mxu0 0
        %1305 = vmatpush1.bf16.xpose.msra.mxu0 0
        %1306 = vmatprep.subr.bf16.mxu0 0
        %1307 = vmatpush1.bf16.xpose.msra.mxu0 0
        %1308 = vmatprep.mubr.bf16.mxu0 0
        %1309 = vmatmul.mubr.bf16.gmra.mrb[0].mxu0 %v1271
        %v1310 = vpop.f32.mrb[0].mxu0
        %v1311 = vadd.f32 0.0, %v1310
        %v1312 = vpop.f32.mrb[0].mxu0
        %v1313 = vpop.f32.mrb[0].mxu0
        %v1314 = vpop.f32.mrb[0].mxu0
        %1315 = vdwg.mxu0
        %v1317 = vsel %vm1223, %v921, 0
        %v1320 = vsel %vm1223, %v1071, 0
        %1322 = vmatprep.subr.bf16.mxu0 0
        %1323 = vmatpush1.bf16.xpose.msra.mxu0 %v1320
        %1324 = vmatprep.subr.bf16.mxu0 0
        %1325 = vmatpush1.bf16.xpose.msra.mxu0 0
        %1326 = vmatprep.subr.bf16.mxu0 0
        %1327 = vmatpush1.bf16.xpose.msra.mxu0 0
        %1328 = vmatprep.subr.bf16.mxu0 0
        %1329 = vmatpush1.bf16.xpose.msra.mxu0 0
        %1330 = vmatprep.subr.bf16.mxu0 0
        %1331 = vmatpush1.bf16.xpose.msra.mxu0 0
        %1332 = vmatprep.subr.bf16.mxu0 0
        %1333 = vmatpush1.bf16.xpose.msra.mxu0 0
        %1334 = vmatprep.subr.bf16.mxu0 0
        %1335 = vmatpush1.bf16.xpose.msra.mxu0 0
        %1336 = vmatprep.subr.bf16.mxu0 0
        %1337 = vmatpush1.bf16.xpose.msra.mxu0 0
        %1338 = vmatprep.subr.bf16.mxu0 0
        %1339 = vmatpush1.bf16.xpose.msra.mxu0 0
        %1340 = vmatprep.subr.bf16.mxu0 0
        %1341 = vmatpush1.bf16.xpose.msra.mxu0 0
        %1342 = vmatprep.subr.bf16.mxu0 0
        %1343 = vmatpush1.bf16.xpose.msra.mxu0 0
        %1344 = vmatprep.subr.bf16.mxu0 0
        %1345 = vmatpush1.bf16.xpose.msra.mxu0 0
        %1346 = vmatprep.subr.bf16.mxu0 0
        %1347 = vmatpush1.bf16.xpose.msra.mxu0 0
        %1348 = vmatprep.subr.bf16.mxu0 0
        %1349 = vmatpush1.bf16.xpose.msra.mxu0 0
        %1350 = vmatprep.subr.bf16.mxu0 0
        %1351 = vmatpush1.bf16.xpose.msra.mxu0 0
        %1352 = vmatprep.subr.bf16.mxu0 0
        %1353 = vmatpush1.bf16.xpose.msra.mxu0 0
        %1354 = vmatprep.mubr.bf16.mxu0 0
        %1355 = vmatmul.mubr.bf16.gmra.mrb[0].mxu0 %v1317
        %v1356 = vpop.f32.mrb[0].mxu0
        %v1357 = vadd.f32 0.0, %v1356
        %v1358 = vpop.f32.mrb[0].mxu0
        %v1359 = vpop.f32.mrb[0].mxu0
        %v1360 = vpop.f32.mrb[0].mxu0
        %1361 = vdwg.mxu0
        %v1363 = vsel %vm1223, %v922, 0
        %v1366 = vsel %vm1223, %v1072, 0
        %1368 = vmatprep.subr.bf16.mxu0 0
        %1369 = vmatpush1.bf16.xpose.msra.mxu0 %v1366
        %1370 = vmatprep.subr.bf16.mxu0 0
        %1371 = vmatpush1.bf16.xpose.msra.mxu0 0
        %1372 = vmatprep.subr.bf16.mxu0 0
        %1373 = vmatpush1.bf16.xpose.msra.mxu0 0
        %1374 = vmatprep.subr.bf16.mxu0 0
        %1375 = vmatpush1.bf16.xpose.msra.mxu0 0
        %1376 = vmatprep.subr.bf16.mxu0 0
        %1377 = vmatpush1.bf16.xpose.msra.mxu0 0
        %1378 = vmatprep.subr.bf16.mxu0 0
        %1379 = vmatpush1.bf16.xpose.msra.mxu0 0
        %1380 = vmatprep.subr.bf16.mxu0 0
        %1381 = vmatpush1.bf16.xpose.msra.mxu0 0
        %1382 = vmatprep.subr.bf16.mxu0 0
        %1383 = vmatpush1.bf16.xpose.msra.mxu0 0
        %1384 = vmatprep.subr.bf16.mxu0 0
        %1385 = vmatpush1.bf16.xpose.msra.mxu0 0
        %1386 = vmatprep.subr.bf16.mxu0 0
        %1387 = vmatpush1.bf16.xpose.msra.mxu0 0
        %1388 = vmatprep.subr.bf16.mxu0 0
        %1389 = vmatpush1.bf16.xpose.msra.mxu0 0
        %1390 = vmatprep.subr.bf16.mxu0 0
        %1391 = vmatpush1.bf16.xpose.msra.mxu0 0
        %1392 = vmatprep.subr.bf16.mxu0 0
        %1393 = vmatpush1.bf16.xpose.msra.mxu0 0
        %1394 = vmatprep.subr.bf16.mxu0 0
        %1395 = vmatpush1.bf16.xpose.msra.mxu0 0
        %1396 = vmatprep.subr.bf16.mxu0 0
        %1397 = vmatpush1.bf16.xpose.msra.mxu0 0
        %1398 = vmatprep.subr.bf16.mxu0 0
        %1399 = vmatpush1.bf16.xpose.msra.mxu0 0
        %1400 = vmatprep.mubr.bf16.mxu0 0
        %1401 = vmatmul.mubr.bf16.gmra.mrb[0].mxu0 %v1363
        %v1402 = vpop.f32.mrb[0].mxu0
        %v1403 = vadd.f32 0.0, %v1402
        %v1404 = vpop.f32.mrb[0].mxu0
        %v1405 = vpop.f32.mrb[0].mxu0
        %v1406 = vpop.f32.mrb[0].mxu0
        %1407 = vdwg.mxu0
        %v1408 = vsel %vm1223, %v1265, -inf
        %1409 = vmax.xlane.f32.xlu0 %v1408
        %v1410 = vpop.xlane.xlu0 %1409
        %v1411 = vsel %vm1223, %v1311, -inf
        %1412 = vmax.xlane.f32.xlu0 %v1411
        %v1413 = vpop.xlane.xlu0 %1412
        %v1414 = vsel %vm1223, %v1357, -inf
        %1415 = vmax.xlane.f32.xlu0 %v1414
        %v1416 = vpop.xlane.xlu0 %1415
        %v1417 = vsel %vm1223, %v1403, -inf
        %1418 = vmax.xlane.f32.xlu0 %v1417
        %v1419 = vpop.xlane.xlu0 %1418
        %v1420 = vsub.f32 %v1265, %v1410
        %v1421 = vsub.f32 %v1311, %v1413
        %v1422 = vsub.f32 %v1357, %v1416
        %v1423 = vsub.f32 %v1403, %v1419
        %v1424 = vmul.f32 %v1420, 1.442695
        %v1425 = vpow.pop %v1424
        %v1426 = vmul.f32 %v1421, 1.442695
        %v1427 = vpow.pop %v1426
        %v1428 = vmul.f32 %v1422, 1.442695
        %v1429 = vpow.pop %v1428
        %v1430 = vmul.f32 %v1423, 1.442695
        %v1431 = vpow.pop %v1430
        %v1432 = vsel %vm1223, %v1425, 0.0
        %1433 = vadd.xlane.f32.xlu0 %v1432
        %v1434 = vpop.xlane.xlu0 %1433
        %v1435 = vsel %vm1223, %v1427, 0.0
        %1436 = vadd.xlane.f32.xlu0 %v1435
        %v1437 = vpop.xlane.xlu0 %1436
        %v1438 = vsel %vm1223, %v1429, 0.0
        %1439 = vadd.xlane.f32.xlu0 %v1438
        %v1440 = vpop.xlane.xlu0 %1439
        %v1441 = vsel %vm1223, %v1431, 0.0
        %1442 = vadd.xlane.f32.xlu0 %v1441
        %v1443 = vpop.xlane.xlu0 %1442
        %v1444 = vrcp.pop %v1434
        %v1445 = vrcp.pop %v1437
        %v1446 = vrcp.pop %v1440
        %v1447 = vrcp.pop %v1443
        %v1448 = vpack.c.bf16 %v1425, %v1425
        %v1449 = vpack.c.bf16 %v1427, %v1427
        %v1450 = vpack.c.bf16 %v1429, %v1429
        %v1451 = vpack.c.bf16 %v1431, %v1431
        %v1453 = vsel %vm1223, %v1448, 0
        %vm1455 = vcmask 1043456
        %v1457 = vsel %vm1455, %v1219, 0
        %1459 = vmatprep.subr.bf16.mxu0 0
        %1460 = vmatpush1.bf16.msra.mxu0 %v1457
        %1461 = vmatprep.subr.bf16.mxu0 0
        %1462 = vmatpush1.bf16.msra.mxu0 0
        %1463 = vmatprep.subr.bf16.mxu0 0
        %1464 = vmatpush1.bf16.msra.mxu0 0
        %1465 = vmatprep.subr.bf16.mxu0 0
        %1466 = vmatpush1.bf16.msra.mxu0 0
        %1467 = vmatprep.subr.bf16.mxu0 0
        %1468 = vmatpush1.bf16.msra.mxu0 0
        %1469 = vmatprep.subr.bf16.mxu0 0
        %1470 = vmatpush1.bf16.msra.mxu0 0
        %1471 = vmatprep.subr.bf16.mxu0 0
        %1472 = vmatpush1.bf16.msra.mxu0 0
        %1473 = vmatprep.subr.bf16.mxu0 0
        %1474 = vmatpush1.bf16.msra.mxu0 0
        %1475 = vmatprep.subr.bf16.mxu0 0
        %1476 = vmatpush1.bf16.msra.mxu0 0
        %1477 = vmatprep.subr.bf16.mxu0 0
        %1478 = vmatpush1.bf16.msra.mxu0 0
        %1479 = vmatprep.subr.bf16.mxu0 0
        %1480 = vmatpush1.bf16.msra.mxu0 0
        %1481 = vmatprep.subr.bf16.mxu0 0
        %1482 = vmatpush1.bf16.msra.mxu0 0
        %1483 = vmatprep.subr.bf16.mxu0 0
        %1484 = vmatpush1.bf16.msra.mxu0 0
        %1485 = vmatprep.subr.bf16.mxu0 0
        %1486 = vmatpush1.bf16.msra.mxu0 0
        %1487 = vmatprep.subr.bf16.mxu0 0
        %1488 = vmatpush1.bf16.msra.mxu0 0
        %1489 = vmatprep.subr.bf16.mxu0 0
        %1490 = vmatpush1.bf16.msra.mxu0 0
        %1491 = vmatprep.mubr.bf16.mxu0 0
        %1492 = vmatmul.mubr.bf16.gmra.mrb[0].mxu0 %v1453
        %v1493 = vpop.f32.mrb[0].mxu0
        %v1494 = vadd.f32 0.0, %v1493
        %v1495 = vpop.f32.mrb[0].mxu0
        %v1496 = vpop.f32.mrb[0].mxu0
        %v1497 = vpop.f32.mrb[0].mxu0
        %1498 = vdwg.mxu0
        %v1500 = vsel %vm1223, %v1449, 0
        %v1503 = vsel %vm1455, %v1220, 0
        %1505 = vmatprep.subr.bf16.mxu0 0
        %1506 = vmatpush1.bf16.msra.mxu0 %v1503
        %1507 = vmatprep.subr.bf16.mxu0 0
        %1508 = vmatpush1.bf16.msra.mxu0 0
        %1509 = vmatprep.subr.bf16.mxu0 0
        %1510 = vmatpush1.bf16.msra.mxu0 0
        %1511 = vmatprep.subr.bf16.mxu0 0
        %1512 = vmatpush1.bf16.msra.mxu0 0
        %1513 = vmatprep.subr.bf16.mxu0 0
        %1514 = vmatpush1.bf16.msra.mxu0 0
        %1515 = vmatprep.subr.bf16.mxu0 0
        %1516 = vmatpush1.bf16.msra.mxu0 0
        %1517 = vmatprep.subr.bf16.mxu0 0
        %1518 = vmatpush1.bf16.msra.mxu0 0
        %1519 = vmatprep.subr.bf16.mxu0 0
        %1520 = vmatpush1.bf16.msra.mxu0 0
        %1521 = vmatprep.subr.bf16.mxu0 0
        %1522 = vmatpush1.bf16.msra.mxu0 0
        %1523 = vmatprep.subr.bf16.mxu0 0
        %1524 = vmatpush1.bf16.msra.mxu0 0
        %1525 = vmatprep.subr.bf16.mxu0 0
        %1526 = vmatpush1.bf16.msra.mxu0 0
        %1527 = vmatprep.subr.bf16.mxu0 0
        %1528 = vmatpush1.bf16.msra.mxu0 0
        %1529 = vmatprep.subr.bf16.mxu0 0
        %1530 = vmatpush1.bf16.msra.mxu0 0
        %1531 = vmatprep.subr.bf16.mxu0 0
        %1532 = vmatpush1.bf16.msra.mxu0 0
        %1533 = vmatprep.subr.bf16.mxu0 0
        %1534 = vmatpush1.bf16.msra.mxu0 0
        %1535 = vmatprep.subr.bf16.mxu0 0
        %1536 = vmatpush1.bf16.msra.mxu0 0
        %1537 = vmatprep.mubr.bf16.mxu0 0
        %1538 = vmatmul.mubr.bf16.gmra.mrb[0].mxu0 %v1500
        %v1539 = vpop.f32.mrb[0].mxu0
        %v1540 = vadd.f32 0.0, %v1539
        %v1541 = vpop.f32.mrb[0].mxu0
        %v1542 = vpop.f32.mrb[0].mxu0
        %v1543 = vpop.f32.mrb[0].mxu0
        %1544 = vdwg.mxu0
        %v1546 = vsel %vm1223, %v1450, 0
        %v1549 = vsel %vm1455, %v1221, 0
        %1551 = vmatprep.subr.bf16.mxu0 0
        %1552 = vmatpush1.bf16.msra.mxu0 %v1549
        %1553 = vmatprep.subr.bf16.mxu0 0
        %1554 = vmatpush1.bf16.msra.mxu0 0
        %1555 = vmatprep.subr.bf16.mxu0 0
        %1556 = vmatpush1.bf16.msra.mxu0 0
        %1557 = vmatprep.subr.bf16.mxu0 0
        %1558 = vmatpush1.bf16.msra.mxu0 0
        %1559 = vmatprep.subr.bf16.mxu0 0
        %1560 = vmatpush1.bf16.msra.mxu0 0
        %1561 = vmatprep.subr.bf16.mxu0 0
        %1562 = vmatpush1.bf16.msra.mxu0 0
        %1563 = vmatprep.subr.bf16.mxu0 0
        %1564 = vmatpush1.bf16.msra.mxu0 0
        %1565 = vmatprep.subr.bf16.mxu0 0
        %1566 = vmatpush1.bf16.msra.mxu0 0
        %1567 = vmatprep.subr.bf16.mxu0 0
        %1568 = vmatpush1.bf16.msra.mxu0 0
        %1569 = vmatprep.subr.bf16.mxu0 0
        %1570 = vmatpush1.bf16.msra.mxu0 0
        %1571 = vmatprep.subr.bf16.mxu0 0
        %1572 = vmatpush1.bf16.msra.mxu0 0
        %1573 = vmatprep.subr.bf16.mxu0 0
        %1574 = vmatpush1.bf16.msra.mxu0 0
        %1575 = vmatprep.subr.bf16.mxu0 0
        %1576 = vmatpush1.bf16.msra.mxu0 0
        %1577 = vmatprep.subr.bf16.mxu0 0
        %1578 = vmatpush1.bf16.msra.mxu0 0
        %1579 = vmatprep.subr.bf16.mxu0 0
        %1580 = vmatpush1.bf16.msra.mxu0 0
        %1581 = vmatprep.subr.bf16.mxu0 0
        %1582 = vmatpush1.bf16.msra.mxu0 0
        %1583 = vmatprep.mubr.bf16.mxu0 0
        %1584 = vmatmul.mubr.bf16.gmra.mrb[0].mxu0 %v1546
        %v1585 = vpop.f32.mrb[0].mxu0
        %v1586 = vadd.f32 0.0, %v1585
        %v1587 = vpop.f32.mrb[0].mxu0
        %v1588 = vpop.f32.mrb[0].mxu0
        %v1589 = vpop.f32.mrb[0].mxu0
        %1590 = vdwg.mxu0
        %v1592 = vsel %vm1223, %v1451, 0
        %v1595 = vsel %vm1455, %v1222, 0
        %1597 = vmatprep.subr.bf16.mxu0 0
        %1598 = vmatpush1.bf16.msra.mxu0 %v1595
        %1599 = vmatprep.subr.bf16.mxu0 0
        %1600 = vmatpush1.bf16.msra.mxu0 0
        %1601 = vmatprep.subr.bf16.mxu0 0
        %1602 = vmatpush1.bf16.msra.mxu0 0
        %1603 = vmatprep.subr.bf16.mxu0 0
        %1604 = vmatpush1.bf16.msra.mxu0 0
        %1605 = vmatprep.subr.bf16.mxu0 0
        %1606 = vmatpush1.bf16.msra.mxu0 0
        %1607 = vmatprep.subr.bf16.mxu0 0
        %1608 = vmatpush1.bf16.msra.mxu0 0
        %1609 = vmatprep.subr.bf16.mxu0 0
        %1610 = vmatpush1.bf16.msra.mxu0 0
        %1611 = vmatprep.subr.bf16.mxu0 0
        %1612 = vmatpush1.bf16.msra.mxu0 0
        %1613 = vmatprep.subr.bf16.mxu0 0
        %1614 = vmatpush1.bf16.msra.mxu0 0
        %1615 = vmatprep.subr.bf16.mxu0 0
        %1616 = vmatpush1.bf16.msra.mxu0 0
        %1617 = vmatprep.subr.bf16.mxu0 0
        %1618 = vmatpush1.bf16.msra.mxu0 0
        %1619 = vmatprep.subr.bf16.mxu0 0
        %1620 = vmatpush1.bf16.msra.mxu0 0
        %1621 = vmatprep.subr.bf16.mxu0 0
        %1622 = vmatpush1.bf16.msra.mxu0 0
        %1623 = vmatprep.subr.bf16.mxu0 0
        %1624 = vmatpush1.bf16.msra.mxu0 0
        %1625 = vmatprep.subr.bf16.mxu0 0
        %1626 = vmatpush1.bf16.msra.mxu0 0
        %1627 = vmatprep.subr.bf16.mxu0 0
        %1628 = vmatpush1.bf16.msra.mxu0 0
        %1629 = vmatprep.mubr.bf16.mxu0 0
        %1630 = vmatmul.mubr.bf16.gmra.mrb[0].mxu0 %v1592
        %v1631 = vpop.f32.mrb[0].mxu0
        %v1632 = vadd.f32 0.0, %v1631
        %v1633 = vpop.f32.mrb[0].mxu0
        %v1634 = vpop.f32.mrb[0].mxu0
        %v1635 = vpop.f32.mrb[0].mxu0
        %1636 = vdwg.mxu0
        %v1637 = vmul.f32 %v1494, %v1444
        %v1638 = vmul.f32 %v1540, %v1445
        %v1639 = vmul.f32 %v1586, %v1446
        %v1640 = vmul.f32 %v1632, %v1447
        %v1641 = vcombine.low %v1637, %v1639
        %v1642 = vcombine.high %v1637, %v1639
        %v1644 = vunpack.c.l.s4 1983009808
        %v1645 = vunpack.c.0.s8 %v1644
        %v1646 = vlaneseq
        %v1647 = vshrl.u32 %v1646, 7
        %v1648 = vsub.s32 %v1645, %v1647
        %v1649 = vrot.slane %v1641, %v1648
        %v1651 = vunpack.c.l.s4 1983009808
        %v1652 = vunpack.c.0.s8 %v1651
        %v1653 = vlaneseq
        %v1654 = vshrl.u32 %v1653, 7
        %v1655 = vsub.s32 %v1652, %v1654
        %v1656 = vrot.slane %v1642, %v1655
        %v1657 = vcombine.low %v1638, %v1640
        %v1658 = vcombine.high %v1638, %v1640
        %v1660 = vunpack.c.l.s4 1983009808
        %v1661 = vunpack.c.0.s8 %v1660
        %v1662 = vlaneseq
        %v1663 = vshrl.u32 %v1662, 7
        %v1664 = vsub.s32 %v1661, %v1663
        %v1665 = vrot.slane %v1657, %v1664
        %v1667 = vunpack.c.l.s4 1983009808
        %v1668 = vunpack.c.0.s8 %v1667
        %v1669 = vlaneseq
        %v1670 = vshrl.u32 %v1669, 7
        %v1671 = vsub.s32 %v1668, %v1670
        %v1672 = vrot.slane %v1658, %v1671
        %v1673 = vcombine.low %v1649, %v1665
        %v1674 = vcombine.high %v1649, %v1665
        %v1676 = vunpack.c.l.s4 1934713408
        %v1677 = vunpack.c.0.s8 %v1676
        %v1678 = vlaneseq
        %v1679 = vshrl.u32 %v1678, 7
        %v1680 = vsub.s32 %v1677, %v1679
        %v1681 = vrot.slane %v1673, %v1680
        %v1683 = vunpack.c.l.s4 1934713408
        %v1684 = vunpack.c.0.s8 %v1683
        %v1685 = vlaneseq
        %v1686 = vshrl.u32 %v1685, 7
        %v1687 = vsub.s32 %v1684, %v1686
        %v1688 = vrot.slane %v1674, %v1687
        %v1689 = vcombine.low %v1656, %v1672
        %v1690 = vcombine.high %v1656, %v1672
        %v1692 = vunpack.c.l.s4 1934713408
        %v1693 = vunpack.c.0.s8 %v1692
        %v1694 = vlaneseq
        %v1695 = vshrl.u32 %v1694, 7
        %v1696 = vsub.s32 %v1693, %v1695
        %v1697 = vrot.slane %v1689, %v1696
        %v1699 = vunpack.c.l.s4 1934713408
        %v1700 = vunpack.c.0.s8 %v1699
        %v1701 = vlaneseq
        %v1702 = vshrl.u32 %v1701, 7
        %v1703 = vsub.s32 %v1700, %v1702
        %v1704 = vrot.slane %v1690, %v1703
        %v1705 = vcombine.high %v1681, 0.0
        %v1706 = vcombine.high %v1688, 0.0
        %v1707 = vcombine.high %v1697, 0.0
        %v1708 = vcombine.high %v1704, 0.0
        %v1709 = vcombine.low %v1681, %v1688
        %v1711 = vunpack.c.l.s4 1983009808
        %v1712 = vunpack.c.0.s8 %v1711
        %v1713 = vlaneseq
        %v1714 = vshrl.u32 %v1713, 7
        %v1715 = vsub.s32 %v1712, %v1714
        %v1716 = vrot.slane %v1709, %v1715
        %v1717 = vcombine.low %v1705, %v1706
        %v1719 = vunpack.c.l.s4 1983009808
        %v1720 = vunpack.c.0.s8 %v1719
        %v1721 = vlaneseq
        %v1722 = vshrl.u32 %v1721, 7
        %v1723 = vsub.s32 %v1720, %v1722
        %v1724 = vrot.slane %v1717, %v1723
        %v1725 = vcombine.low %v1697, %v1704
        %v1727 = vunpack.c.l.s4 1983009808
        %v1728 = vunpack.c.0.s8 %v1727
        %v1729 = vlaneseq
        %v1730 = vshrl.u32 %v1729, 7
        %v1731 = vsub.s32 %v1728, %v1730
        %v1732 = vrot.slane %v1725, %v1731
        %v1733 = vcombine.low %v1707, %v1708
        %v1735 = vunpack.c.l.s4 1983009808
        %v1736 = vunpack.c.0.s8 %v1735
        %v1737 = vlaneseq
        %v1738 = vshrl.u32 %v1737, 7
        %v1739 = vsub.s32 %v1736, %v1738
        %v1740 = vrot.slane %v1733, %v1739
        %v1741 = vcombine.low %v1716, %v1724
        %v1742 = vcombine.high %v1716, %v1724
        %v1744 = vunpack.c.l.s4 1934713408
        %v1745 = vunpack.c.0.s8 %v1744
        %v1746 = vlaneseq
        %v1747 = vshrl.u32 %v1746, 7
        %v1748 = vsub.s32 %v1745, %v1747
        %v1749 = vrot.slane %v1741, %v1748
        %v1751 = vunpack.c.l.s4 1934713408
        %v1752 = vunpack.c.0.s8 %v1751
        %v1753 = vlaneseq
        %v1754 = vshrl.u32 %v1753, 7
        %v1755 = vsub.s32 %v1752, %v1754
        %v1756 = vrot.slane %v1742, %v1755
        %v1757 = vcombine.low %v1732, %v1740
        %v1758 = vcombine.high %v1732, %v1740
        %v1760 = vunpack.c.l.s4 1934713408
        %v1761 = vunpack.c.0.s8 %v1760
        %v1762 = vlaneseq
        %v1763 = vshrl.u32 %v1762, 7
        %v1764 = vsub.s32 %v1761, %v1763
        %v1765 = vrot.slane %v1757, %v1764
        %v1767 = vunpack.c.l.s4 1934713408
        %v1768 = vunpack.c.0.s8 %v1767
        %v1769 = vlaneseq
        %v1770 = vshrl.u32 %v1769, 7
        %v1771 = vsub.s32 %v1768, %v1770
        %v1772 = vrot.slane %v1758, %v1771
        %v1773 = vcombine.low %v1749, %v1765
        %v1774 = vcombine.high %v1749, %v1765
        %v1775 = vcombine.low %v1756, %v1772
        %v1776 = vcombine.high %v1756, %v1772
        %1778 = vrot.lane.b32.xlu0 %v1774, 8
        %v1779 = vpop.permute.xlu0 %1778
        %1782 = vrot.lane.b32.xlu0 %v1775, 16
        %v1783 = vpop.permute.xlu0 %1782
        %1786 = vrot.lane.b32.xlu0 %v1776, 24
        %v1787 = vpop.permute.xlu0 %1786
        %v1789 = vsel %vm1223, %v1773, %v1779
        %vm1790 = vcmask 130048
        %v1791 = vsel %vm1790, %v1789, %v1783
        %vm1792 = vcmask 195584
        %v1793 = vsel %vm1792, %v1791, %v1787
        %v1794 = vpack.c.bf16 %v1793, %v1793
        %v1795 = vld [vmem:[#allocation7] sm:$0xf]
        %v1796 = vld [vmem:[#allocation7 + $0x4] sm:$0xf]
        %v1797 = vld [vmem:[#allocation7 + $0x8] sm:$0xf]
        %v1798 = vld [vmem:[#allocation7 + $0xc] sm:$0xf]
        %v1799 = vlaneseq
        %v1800 = vshrl.u32 %v1799, 7
        %v1801 = vsub.s32 3, %v1800
        %v1802 = vrot.slane %v586, %v1801
        %v1807 = vunpack.c.l.b16 %v1795
        %v1808 = vunpack.c.l.b16 %v1796
        %v1809 = vunpack.c.l.b16 %v1797
        %v1810 = vunpack.c.l.b16 %v1798
        %v1811 = vpack.c.b16 %v1808, %v1807
        %v1812 = vpack.c.b16 %v1810, %v1809
        %v1816 = vsel %vm609, %v1794, 0
        %1818 = vmatprep.subr.bf16.mxu0 0
        %1819 = vmatpush1.bf16.msra.mxu0 %v1811
        %1820 = vmatprep.subr.bf16.mxu0 0
        %1821 = vmatpush1.bf16.msra.mxu0 %v1812
        %1822 = vmatprep.subr.bf16.mxu0 0
        %1823 = vmatpush1.bf16.msra.mxu0 0
        %1824 = vmatprep.subr.bf16.mxu0 0
        %1825 = vmatpush1.bf16.msra.mxu0 0
        %1826 = vmatprep.subr.bf16.mxu0 0
        %1827 = vmatpush1.bf16.msra.mxu0 0
        %1828 = vmatprep.subr.bf16.mxu0 0
        %1829 = vmatpush1.bf16.msra.mxu0 0
        %1830 = vmatprep.subr.bf16.mxu0 0
        %1831 = vmatpush1.bf16.msra.mxu0 0
        %1832 = vmatprep.subr.bf16.mxu0 0
        %1833 = vmatpush1.bf16.msra.mxu0 0
        %1834 = vmatprep.subr.bf16.mxu0 0
        %1835 = vmatpush1.bf16.msra.mxu0 0
        %1836 = vmatprep.subr.bf16.mxu0 0
        %1837 = vmatpush1.bf16.msra.mxu0 0
        %1838 = vmatprep.subr.bf16.mxu0 0
        %1839 = vmatpush1.bf16.msra.mxu0 0
        %1840 = vmatprep.subr.bf16.mxu0 0
        %1841 = vmatpush1.bf16.msra.mxu0 0
        %1842 = vmatprep.subr.bf16.mxu0 0
        %1843 = vmatpush1.bf16.msra.mxu0 0
        %1844 = vmatprep.subr.bf16.mxu0 0
        %1845 = vmatpush1.bf16.msra.mxu0 0
        %1846 = vmatprep.subr.bf16.mxu0 0
        %1847 = vmatpush1.bf16.msra.mxu0 0
        %1848 = vmatprep.subr.bf16.mxu0 0
        %1849 = vmatpush1.bf16.msra.mxu0 0
        %1850 = vmatprep.mubr.bf16.mxu0 0
        %1851 = vmatmul.mubr.bf16.gmra.mrb[0].mxu0 %v1816
        %v1852 = vpop.f32.mrb[0].mxu0
        %v1853 = vadd.f32 %v1802, %v1852
        %v1854 = vpop.f32.mrb[0].mxu0
        %v1855 = vpop.f32.mrb[0].mxu0
        %v1856 = vpop.f32.mrb[0].mxu0
        %1857 = vdwg.mxu0
        %v1858 = vadd.f32 %v583, %v1853
        %v1859 = vsel %vm609, %v1858, 0.0
        %1860 = vadd.xlane.f32.xlu0 %v1859
        %v1861 = vpop.xlane.xlu0 %1860
        %v1862 = vrcp.pop 32.0
        %v1863 = vmul.f32 %v1861, %v1862
        %v1864 = vsub.f32 %v1858, %v1863
        %v1865 = vmul.f32 %v1864, %v1864
        %v1866 = vsel %vm609, %v1865, 0.0
        %1867 = vadd.xlane.f32.xlu0 %v1866
        %v1868 = vpop.xlane.xlu0 %1867
        %v1869 = vmul.f32 %v1868, %v1862
        %v1870 = vadd.f32 %v1869, 1e-05
        %v1871 = vrsqrt.pop %v1870
        %v1872 = vmul.f32 %v1864, %v1871
        %v1873 = vlaneseq
        %v1874 = vshrl.u32 %v1873, 7
        %v1875 = vsub.s32 1, %v1874
        %v1876 = vrot.slane %v587, %v1875
        %v1877 = vmul.f32 %v1872, %v1876
        %v1878 = vlaneseq
        %v1879 = vshrl.u32 %v1878, 7
        %v1880 = vsub.s32 2, %v1879
        %v1881 = vrot.slane %v587, %v1880
        %v1882 = vadd.f32 %v1877, %v1881
        %v1883 = vpack.c.bf16 %v1882, %v1882
        %v1884 = vld [vmem:[#allocation8] sm:$0xf]
        %v1885 = vld [vmem:[#allocation8 + $0x4] sm:$0xf]
        %v1886 = vld [vmem:[#allocation8 + $0x8] sm:$0xf]
        %v1887 = vld [vmem:[#allocation8 + $0xc] sm:$0xf]
        %v1888 = vlaneseq
        %v1889 = vshrl.u32 %v1888, 7
        %v1890 = vsub.s32 4, %v1889
        %v1891 = vrot.slane %v586, %v1890
        %v1896 = vunpack.c.l.b16 %v1884
        %v1897 = vunpack.c.l.b16 %v1885
        %v1898 = vunpack.c.l.b16 %v1886
        %v1899 = vunpack.c.l.b16 %v1887
        %v1900 = vpack.c.b16 %v1897, %v1896
        %v1901 = vpack.c.b16 %v1899, %v1898
        %v1905 = vsel %vm609, %v1883, 0
        %1907 = vmatprep.subr.bf16.mxu0 0
        %1908 = vmatpush1.bf16.msra.mxu0 %v1900
        %1909 = vmatprep.subr.bf16.mxu0 0
        %1910 = vmatpush1.bf16.msra.mxu0 %v1901
        %1911 = vmatprep.subr.bf16.mxu0 0
        %1912 = vmatpush1.bf16.msra.mxu0 0
        %1913 = vmatprep.subr.bf16.mxu0 0
        %1914 = vmatpush1.bf16.msra.mxu0 0
        %1915 = vmatprep.subr.bf16.mxu0 0
        %1916 = vmatpush1.bf16.msra.mxu0 0
        %1917 = vmatprep.subr.bf16.mxu0 0
        %1918 = vmatpush1.bf16.msra.mxu0 0
        %1919 = vmatprep.subr.bf16.mxu0 0
        %1920 = vmatpush1.bf16.msra.mxu0 0
        %1921 = vmatprep.subr.bf16.mxu0 0
        %1922 = vmatpush1.bf16.msra.mxu0 0
        %1923 = vmatprep.subr.bf16.mxu0 0
        %1924 = vmatpush1.bf16.msra.mxu0 0
        %1925 = vmatprep.subr.bf16.mxu0 0
        %1926 = vmatpush1.bf16.msra.mxu0 0
        %1927 = vmatprep.subr.bf16.mxu0 0
        %1928 = vmatpush1.bf16.msra.mxu0 0
        %1929 = vmatprep.subr.bf16.mxu0 0
        %1930 = vmatpush1.bf16.msra.mxu0 0
        %1931 = vmatprep.subr.bf16.mxu0 0
        %1932 = vmatpush1.bf16.msra.mxu0 0
        %1933 = vmatprep.subr.bf16.mxu0 0
        %1934 = vmatpush1.bf16.msra.mxu0 0
        %1935 = vmatprep.subr.bf16.mxu0 0
        %1936 = vmatpush1.bf16.msra.mxu0 0
        %1937 = vmatprep.subr.bf16.mxu0 0
        %1938 = vmatpush1.bf16.msra.mxu0 0
        %1939 = vmatprep.mubr.bf16.mxu0 0
        %1940 = vmatmul.mubr.bf16.gmra.mrb[0].mxu0 %v1905
        %v1941 = vpop.f32.mrb[0].mxu0
        %v1942 = vadd.f32 %v1891, %v1941
        %v1943 = vpop.f32.mrb[0].mxu0
        %v1944 = vpop.f32.mrb[0].mxu0
        %v1945 = vpop.f32.mrb[0].mxu0
        %1946 = vdwg.mxu0
        %v1947 = vld [vmem:[#allocation10] sm:$0xf]
        %v1948 = vld [vmem:[#allocation10 + $0x4] sm:$0xf]
        %v1949 = vld [vmem:[#allocation10 + $0x8] sm:$0xf]
        %v1950 = vld [vmem:[#allocation10 + $0xc] sm:$0xf]
        %v1951 = vlaneseq
        %v1952 = vshrl.u32 %v1951, 7
        %v1953 = vsub.s32 5, %v1952
        %v1954 = vrot.slane %v586, %v1953
        %v1959 = vunpack.c.l.b16 %v1947
        %v1960 = vunpack.c.l.b16 %v1948
        %v1961 = vunpack.c.l.b16 %v1949
        %v1962 = vunpack.c.l.b16 %v1950
        %v1963 = vpack.c.b16 %v1960, %v1959
        %v1964 = vpack.c.b16 %v1962, %v1961
        %v1968 = vsel %vm609, %v585, 0
        %1970 = vmatprep.subr.bf16.mxu0 0
        %1971 = vmatpush1.bf16.msra.mxu0 %v1963
        %1972 = vmatprep.subr.bf16.mxu0 0
        %1973 = vmatpush1.bf16.msra.mxu0 %v1964
        %1974 = vmatprep.subr.bf16.mxu0 0
        %1975 = vmatpush1.bf16.msra.mxu0 0
        %1976 = vmatprep.subr.bf16.mxu0 0
        %1977 = vmatpush1.bf16.msra.mxu0 0
        %1978 = vmatprep.subr.bf16.mxu0 0
        %1979 = vmatpush1.bf16.msra.mxu0 0
        %1980 = vmatprep.subr.bf16.mxu0 0
        %1981 = vmatpush1.bf16.msra.mxu0 0
        %1982 = vmatprep.subr.bf16.mxu0 0
        %1983 = vmatpush1.bf16.msra.mxu0 0
        %1984 = vmatprep.subr.bf16.mxu0 0
        %1985 = vmatpush1.bf16.msra.mxu0 0
        %1986 = vmatprep.subr.bf16.mxu0 0
        %1987 = vmatpush1.bf16.msra.mxu0 0
        %1988 = vmatprep.subr.bf16.mxu0 0
        %1989 = vmatpush1.bf16.msra.mxu0 0
        %1990 = vmatprep.subr.bf16.mxu0 0
        %1991 = vmatpush1.bf16.msra.mxu0 0
        %1992 = vmatprep.subr.bf16.mxu0 0
        %1993 = vmatpush1.bf16.msra.mxu0 0
        %1994 = vmatprep.subr.bf16.mxu0 0
        %1995 = vmatpush1.bf16.msra.mxu0 0
        %1996 = vmatprep.subr.bf16.mxu0 0
        %1997 = vmatpush1.bf16.msra.mxu0 0
        %1998 = vmatprep.subr.bf16.mxu0 0
        %1999 = vmatpush1.bf16.msra.mxu0 0
        %2000 = vmatprep.subr.bf16.mxu0 0
        %2001 = vmatpush1.bf16.msra.mxu0 0
        %2002 = vmatprep.mubr.bf16.mxu0 0
        %2003 = vmatmul.mubr.bf16.gmra.mrb[0].mxu0 %v1968
        %v2004 = vpop.f32.mrb[0].mxu0
        %v2005 = vadd.f32 %v1954, %v2004
        %v2006 = vpop.f32.mrb[0].mxu0
        %v2007 = vpop.f32.mrb[0].mxu0
        %v2008 = vpop.f32.mrb[0].mxu0
        %2009 = vdwg.mxu0
        %v2010 = vld [vmem:[#allocation11] sm:$0xf]
        %v2011 = vld [vmem:[#allocation11 + $0x4] sm:$0xf]
        %v2012 = vld [vmem:[#allocation11 + $0x8] sm:$0xf]
        %v2013 = vld [vmem:[#allocation11 + $0xc] sm:$0xf]
        %v2014 = vlaneseq
        %v2015 = vshrl.u32 %v2014, 7
        %v2016 = vsub.s32 6, %v2015
        %v2017 = vrot.slane %v586, %v2016
        %v2022 = vunpack.c.l.b16 %v2010
        %v2023 = vunpack.c.l.b16 %v2011
        %v2024 = vunpack.c.l.b16 %v2012
        %v2025 = vunpack.c.l.b16 %v2013
        %v2026 = vpack.c.b16 %v2023, %v2022
        %v2027 = vpack.c.b16 %v2025, %v2024
        %2030 = vmatprep.subr.bf16.mxu0 0
        %2031 = vmatpush1.bf16.msra.mxu0 %v2026
        %2032 = vmatprep.subr.bf16.mxu0 0
        %2033 = vmatpush1.bf16.msra.mxu0 %v2027
        %2034 = vmatprep.subr.bf16.mxu0 0
        %2035 = vmatpush1.bf16.msra.mxu0 0
        %2036 = vmatprep.subr.bf16.mxu0 0
        %2037 = vmatpush1.bf16.msra.mxu0 0
        %2038 = vmatprep.subr.bf16.mxu0 0
        %2039 = vmatpush1.bf16.msra.mxu0 0
        %2040 = vmatprep.subr.bf16.mxu0 0
        %2041 = vmatpush1.bf16.msra.mxu0 0
        %2042 = vmatprep.subr.bf16.mxu0 0
        %2043 = vmatpush1.bf16.msra.mxu0 0
        %2044 = vmatprep.subr.bf16.mxu0 0
        %2045 = vmatpush1.bf16.msra.mxu0 0
        %2046 = vmatprep.subr.bf16.mxu0 0
        %2047 = vmatpush1.bf16.msra.mxu0 0
        %2048 = vmatprep.subr.bf16.mxu0 0
        %2049 = vmatpush1.bf16.msra.mxu0 0
        %2050 = vmatprep.subr.bf16.mxu0 0
        %2051 = vmatpush1.bf16.msra.mxu0 0
        %2052 = vmatprep.subr.bf16.mxu0 0
        %2053 = vmatpush1.bf16.msra.mxu0 0
        %2054 = vmatprep.subr.bf16.mxu0 0
        %2055 = vmatpush1.bf16.msra.mxu0 0
        %2056 = vmatprep.subr.bf16.mxu0 0
        %2057 = vmatpush1.bf16.msra.mxu0 0
        %2058 = vmatprep.subr.bf16.mxu0 0
        %2059 = vmatpush1.bf16.msra.mxu0 0
        %2060 = vmatprep.subr.bf16.mxu0 0
        %2061 = vmatpush1.bf16.msra.mxu0 0
        %2062 = vmatprep.mubr.bf16.mxu0 0
        %2063 = vmatmul.mubr.bf16.gmra.mrb[0].mxu0 %v1968
        %v2064 = vpop.f32.mrb[0].mxu0
        %v2065 = vadd.f32 %v2017, %v2064
        %v2066 = vpop.f32.mrb[0].mxu0
        %v2067 = vpop.f32.mrb[0].mxu0
        %v2068 = vpop.f32.mrb[0].mxu0
        %2069 = vdwg.mxu0
        %v2070 = vlaneseq
        %v2071 = vshrl.u32 %v2070, 7
        %v2072 = vlaneseq
        %v2073 = vand.u32 %v2072, 127
        %v2074 = vsub.s32 %v2071, %v2073
        %vm2075 = vcmp.lt.s32.totalorder %v2074, 0
        %v2076 = vsub.s32 0, %v2074
        %v2077 = vsel %vm2075, %v2076, %v2074
        %vm2078 = vcmp.le.s32.totalorder %v2077, 1
        %2080 = vrot.lane.b32.xlu0 %v1942, 120
        %v2081 = vpop.permute.xlu0 %2080
        %2083 = vrot.lane.b32.xlu0 %v1942, 112
        %v2084 = vpop.permute.xlu0 %2083
        %2086 = vrot.lane.b32.xlu0 %v1942, 104
        %v2087 = vpop.permute.xlu0 %2086
        %v2089 = vcombine.low %v1942, %v2084
        %v2090 = vcombine.high %v1942, %v2084
        %v2092 = vunpack.c.l.s4 1983009808
        %v2093 = vunpack.c.0.s8 %v2092
        %v2094 = vlaneseq
        %v2095 = vshrl.u32 %v2094, 7
        %v2096 = vsub.s32 %v2093, %v2095
        %v2097 = vrot.slane %v2089, %v2096
        %v2099 = vunpack.c.l.s4 1983009808
        %v2100 = vunpack.c.0.s8 %v2099
        %v2101 = vlaneseq
        %v2102 = vshrl.u32 %v2101, 7
        %v2103 = vsub.s32 %v2100, %v2102
        %v2104 = vrot.slane %v2090, %v2103
        %v2105 = vcombine.low %v2081, %v2087
        %v2106 = vcombine.high %v2081, %v2087
        %v2108 = vunpack.c.l.s4 1983009808
        %v2109 = vunpack.c.0.s8 %v2108
        %v2110 = vlaneseq
        %v2111 = vshrl.u32 %v2110, 7
        %v2112 = vsub.s32 %v2109, %v2111
        %v2113 = vrot.slane %v2105, %v2112
        %v2115 = vunpack.c.l.s4 1983009808
        %v2116 = vunpack.c.0.s8 %v2115
        %v2117 = vlaneseq
        %v2118 = vshrl.u32 %v2117, 7
        %v2119 = vsub.s32 %v2116, %v2118
        %v2120 = vrot.slane %v2106, %v2119
        %v2121 = vcombine.low %v2097, %v2113
        %v2122 = vcombine.high %v2097, %v2113
        %v2124 = vunpack.c.l.s4 1934713408
        %v2125 = vunpack.c.0.s8 %v2124
        %v2126 = vlaneseq
        %v2127 = vshrl.u32 %v2126, 7
        %v2128 = vsub.s32 %v2125, %v2127
        %v2129 = vrot.slane %v2121, %v2128
        %v2131 = vunpack.c.l.s4 1934713408
        %v2132 = vunpack.c.0.s8 %v2131
        %v2133 = vlaneseq
        %v2134 = vshrl.u32 %v2133, 7
        %v2135 = vsub.s32 %v2132, %v2134
        %v2136 = vrot.slane %v2122, %v2135
        %v2137 = vcombine.low %v2104, %v2120
        %v2138 = vcombine.high %v2104, %v2120
        %v2140 = vunpack.c.l.s4 1934713408
        %v2141 = vunpack.c.0.s8 %v2140
        %v2142 = vlaneseq
        %v2143 = vshrl.u32 %v2142, 7
        %v2144 = vsub.s32 %v2141, %v2143
        %v2145 = vrot.slane %v2137, %v2144
        %v2147 = vunpack.c.l.s4 1934713408
        %v2148 = vunpack.c.0.s8 %v2147
        %v2149 = vlaneseq
        %v2150 = vshrl.u32 %v2149, 7
        %v2151 = vsub.s32 %v2148, %v2150
        %v2152 = vrot.slane %v2138, %v2151
        %v2153 = vcombine.high %v2129, 0.0
        %v2154 = vcombine.high %v2136, 0.0
        %v2155 = vcombine.high %v2145, 0.0
        %v2156 = vcombine.high %v2152, 0.0
        %v2157 = vcombine.low %v2129, %v2136
        %v2159 = vunpack.c.l.s4 1983009808
        %v2160 = vunpack.c.0.s8 %v2159
        %v2161 = vlaneseq
        %v2162 = vshrl.u32 %v2161, 7
        %v2163 = vsub.s32 %v2160, %v2162
        %v2164 = vrot.slane %v2157, %v2163
        %v2165 = vcombine.low %v2153, %v2154
        %v2167 = vunpack.c.l.s4 1983009808
        %v2168 = vunpack.c.0.s8 %v2167
        %v2169 = vlaneseq
        %v2170 = vshrl.u32 %v2169, 7
        %v2171 = vsub.s32 %v2168, %v2170
        %v2172 = vrot.slane %v2165, %v2171
        %v2173 = vcombine.low %v2145, %v2152
        %v2175 = vunpack.c.l.s4 1983009808
        %v2176 = vunpack.c.0.s8 %v2175
        %v2177 = vlaneseq
        %v2178 = vshrl.u32 %v2177, 7
        %v2179 = vsub.s32 %v2176, %v2178
        %v2180 = vrot.slane %v2173, %v2179
        %v2181 = vcombine.low %v2155, %v2156
        %v2183 = vunpack.c.l.s4 1983009808
        %v2184 = vunpack.c.0.s8 %v2183
        %v2185 = vlaneseq
        %v2186 = vshrl.u32 %v2185, 7
        %v2187 = vsub.s32 %v2184, %v2186
        %v2188 = vrot.slane %v2181, %v2187
        %v2189 = vcombine.low %v2164, %v2172
        %v2190 = vcombine.high %v2164, %v2172
        %v2192 = vunpack.c.l.s4 1934713408
        %v2193 = vunpack.c.0.s8 %v2192
        %v2194 = vlaneseq
        %v2195 = vshrl.u32 %v2194, 7
        %v2196 = vsub.s32 %v2193, %v2195
        %v2197 = vrot.slane %v2189, %v2196
        %v2199 = vunpack.c.l.s4 1934713408
        %v2200 = vunpack.c.0.s8 %v2199
        %v2201 = vlaneseq
        %v2202 = vshrl.u32 %v2201, 7
        %v2203 = vsub.s32 %v2200, %v2202
        %v2204 = vrot.slane %v2190, %v2203
        %v2205 = vcombine.low %v2180, %v2188
        %v2206 = vcombine.high %v2180, %v2188
        %v2208 = vunpack.c.l.s4 1934713408
        %v2209 = vunpack.c.0.s8 %v2208
        %v2210 = vlaneseq
        %v2211 = vshrl.u32 %v2210, 7
        %v2212 = vsub.s32 %v2209, %v2211
        %v2213 = vrot.slane %v2205, %v2212
        %v2215 = vunpack.c.l.s4 1934713408
        %v2216 = vunpack.c.0.s8 %v2215
        %v2217 = vlaneseq
        %v2218 = vshrl.u32 %v2217, 7
        %v2219 = vsub.s32 %v2216, %v2218
        %v2220 = vrot.slane %v2206, %v2219
        %v2221 = vcombine.low %v2197, %v2213
        %v2222 = vcombine.high %v2197, %v2213
        %v2223 = vcombine.low %v2204, %v2220
        %v2224 = vcombine.high %v2204, %v2220
        %v2225 = vpack.c.bf16 %v2221, %v2221
        %v2226 = vpack.c.bf16 %v2222, %v2222
        %v2227 = vpack.c.bf16 %v2223, %v2223
        %v2228 = vpack.c.bf16 %v2224, %v2224
        %2230 = vrot.lane.b32.xlu0 %v2005, 120
        %v2231 = vpop.permute.xlu0 %2230
        %2233 = vrot.lane.b32.xlu0 %v2005, 112
        %v2234 = vpop.permute.xlu0 %2233
        %2236 = vrot.lane.b32.xlu0 %v2005, 104
        %v2237 = vpop.permute.xlu0 %2236
        %v2239 = vcombine.low %v2005, %v2234
        %v2240 = vcombine.high %v2005, %v2234
        %v2242 = vunpack.c.l.s4 1983009808
        %v2243 = vunpack.c.0.s8 %v2242
        %v2244 = vlaneseq
        %v2245 = vshrl.u32 %v2244, 7
        %v2246 = vsub.s32 %v2243, %v2245
        %v2247 = vrot.slane %v2239, %v2246
        %v2249 = vunpack.c.l.s4 1983009808
        %v2250 = vunpack.c.0.s8 %v2249
        %v2251 = vlaneseq
        %v2252 = vshrl.u32 %v2251, 7
        %v2253 = vsub.s32 %v2250, %v2252
        %v2254 = vrot.slane %v2240, %v2253
        %v2255 = vcombine.low %v2231, %v2237
        %v2256 = vcombine.high %v2231, %v2237
        %v2258 = vunpack.c.l.s4 1983009808
        %v2259 = vunpack.c.0.s8 %v2258
        %v2260 = vlaneseq
        %v2261 = vshrl.u32 %v2260, 7
        %v2262 = vsub.s32 %v2259, %v2261
        %v2263 = vrot.slane %v2255, %v2262
        %v2265 = vunpack.c.l.s4 1983009808
        %v2266 = vunpack.c.0.s8 %v2265
        %v2267 = vlaneseq
        %v2268 = vshrl.u32 %v2267, 7
        %v2269 = vsub.s32 %v2266, %v2268
        %v2270 = vrot.slane %v2256, %v2269
        %v2271 = vcombine.low %v2247, %v2263
        %v2272 = vcombine.high %v2247, %v2263
        %v2274 = vunpack.c.l.s4 1934713408
        %v2275 = vunpack.c.0.s8 %v2274
        %v2276 = vlaneseq
        %v2277 = vshrl.u32 %v2276, 7
        %v2278 = vsub.s32 %v2275, %v2277
        %v2279 = vrot.slane %v2271, %v2278
        %v2281 = vunpack.c.l.s4 1934713408
        %v2282 = vunpack.c.0.s8 %v2281
        %v2283 = vlaneseq
        %v2284 = vshrl.u32 %v2283, 7
        %v2285 = vsub.s32 %v2282, %v2284
        %v2286 = vrot.slane %v2272, %v2285
        %v2287 = vcombine.low %v2254, %v2270
        %v2288 = vcombine.high %v2254, %v2270
        %v2290 = vunpack.c.l.s4 1934713408
        %v2291 = vunpack.c.0.s8 %v2290
        %v2292 = vlaneseq
        %v2293 = vshrl.u32 %v2292, 7
        %v2294 = vsub.s32 %v2291, %v2293
        %v2295 = vrot.slane %v2287, %v2294
        %v2297 = vunpack.c.l.s4 1934713408
        %v2298 = vunpack.c.0.s8 %v2297
        %v2299 = vlaneseq
        %v2300 = vshrl.u32 %v2299, 7
        %v2301 = vsub.s32 %v2298, %v2300
        %v2302 = vrot.slane %v2288, %v2301
        %v2303 = vcombine.high %v2279, 0.0
        %v2304 = vcombine.high %v2286, 0.0
        %v2305 = vcombine.high %v2295, 0.0
        %v2306 = vcombine.high %v2302, 0.0
        %v2307 = vcombine.low %v2279, %v2286
        %v2309 = vunpack.c.l.s4 1983009808
        %v2310 = vunpack.c.0.s8 %v2309
        %v2311 = vlaneseq
        %v2312 = vshrl.u32 %v2311, 7
        %v2313 = vsub.s32 %v2310, %v2312
        %v2314 = vrot.slane %v2307, %v2313
        %v2315 = vcombine.low %v2303, %v2304
        %v2317 = vunpack.c.l.s4 1983009808
        %v2318 = vunpack.c.0.s8 %v2317
        %v2319 = vlaneseq
        %v2320 = vshrl.u32 %v2319, 7
        %v2321 = vsub.s32 %v2318, %v2320
        %v2322 = vrot.slane %v2315, %v2321
        %v2323 = vcombine.low %v2295, %v2302
        %v2325 = vunpack.c.l.s4 1983009808
        %v2326 = vunpack.c.0.s8 %v2325
        %v2327 = vlaneseq
        %v2328 = vshrl.u32 %v2327, 7
        %v2329 = vsub.s32 %v2326, %v2328
        %v2330 = vrot.slane %v2323, %v2329
        %v2331 = vcombine.low %v2305, %v2306
        %v2333 = vunpack.c.l.s4 1983009808
        %v2334 = vunpack.c.0.s8 %v2333
        %v2335 = vlaneseq
        %v2336 = vshrl.u32 %v2335, 7
        %v2337 = vsub.s32 %v2334, %v2336
        %v2338 = vrot.slane %v2331, %v2337
        %v2339 = vcombine.low %v2314, %v2322
        %v2340 = vcombine.high %v2314, %v2322
        %v2342 = vunpack.c.l.s4 1934713408
        %v2343 = vunpack.c.0.s8 %v2342
        %v2344 = vlaneseq
        %v2345 = vshrl.u32 %v2344, 7
        %v2346 = vsub.s32 %v2343, %v2345
        %v2347 = vrot.slane %v2339, %v2346
        %v2349 = vunpack.c.l.s4 1934713408
        %v2350 = vunpack.c.0.s8 %v2349
        %v2351 = vlaneseq
        %v2352 = vshrl.u32 %v2351, 7
        %v2353 = vsub.s32 %v2350, %v2352
        %v2354 = vrot.slane %v2340, %v2353
        %v2355 = vcombine.low %v2330, %v2338
        %v2356 = vcombine.high %v2330, %v2338
        %v2358 = vunpack.c.l.s4 1934713408
        %v2359 = vunpack.c.0.s8 %v2358
        %v2360 = vlaneseq
        %v2361 = vshrl.u32 %v2360, 7
        %v2362 = vsub.s32 %v2359, %v2361
        %v2363 = vrot.slane %v2355, %v2362
        %v2365 = vunpack.c.l.s4 1934713408
        %v2366 = vunpack.c.0.s8 %v2365
        %v2367 = vlaneseq
        %v2368 = vshrl.u32 %v2367, 7
        %v2369 = vsub.s32 %v2366, %v2368
        %v2370 = vrot.slane %v2356, %v2369
        %v2371 = vcombine.low %v2347, %v2363
        %v2372 = vcombine.high %v2347, %v2363
        %v2373 = vcombine.low %v2354, %v2370
        %v2374 = vcombine.high %v2354, %v2370
        %v2375 = vpack.c.bf16 %v2371, %v2371
        %v2376 = vpack.c.bf16 %v2372, %v2372
        %v2377 = vpack.c.bf16 %v2373, %v2373
        %v2378 = vpack.c.bf16 %v2374, %v2374
        %2380 = vrot.lane.b32.xlu0 %v2065, 120
        %v2381 = vpop.permute.xlu0 %2380
        %2383 = vrot.lane.b32.xlu0 %v2065, 112
        %v2384 = vpop.permute.xlu0 %2383
        %2386 = vrot.lane.b32.xlu0 %v2065, 104
        %v2387 = vpop.permute.xlu0 %2386
        %v2389 = vcombine.low %v2065, %v2384
        %v2390 = vcombine.high %v2065, %v2384
        %v2392 = vunpack.c.l.s4 1983009808
        %v2393 = vunpack.c.0.s8 %v2392
        %v2394 = vlaneseq
        %v2395 = vshrl.u32 %v2394, 7
        %v2396 = vsub.s32 %v2393, %v2395
        %v2397 = vrot.slane %v2389, %v2396
        %v2399 = vunpack.c.l.s4 1983009808
        %v2400 = vunpack.c.0.s8 %v2399
        %v2401 = vlaneseq
        %v2402 = vshrl.u32 %v2401, 7
        %v2403 = vsub.s32 %v2400, %v2402
        %v2404 = vrot.slane %v2390, %v2403
        %v2405 = vcombine.low %v2381, %v2387
        %v2406 = vcombine.high %v2381, %v2387
        %v2408 = vunpack.c.l.s4 1983009808
        %v2409 = vunpack.c.0.s8 %v2408
        %v2410 = vlaneseq
        %v2411 = vshrl.u32 %v2410, 7
        %v2412 = vsub.s32 %v2409, %v2411
        %v2413 = vrot.slane %v2405, %v2412
        %v2415 = vunpack.c.l.s4 1983009808
        %v2416 = vunpack.c.0.s8 %v2415
        %v2417 = vlaneseq
        %v2418 = vshrl.u32 %v2417, 7
        %v2419 = vsub.s32 %v2416, %v2418
        %v2420 = vrot.slane %v2406, %v2419
        %v2421 = vcombine.low %v2397, %v2413
        %v2422 = vcombine.high %v2397, %v2413
        %v2424 = vunpack.c.l.s4 1934713408
        %v2425 = vunpack.c.0.s8 %v2424
        %v2426 = vlaneseq
        %v2427 = vshrl.u32 %v2426, 7
        %v2428 = vsub.s32 %v2425, %v2427
        %v2429 = vrot.slane %v2421, %v2428
        %v2431 = vunpack.c.l.s4 1934713408
        %v2432 = vunpack.c.0.s8 %v2431
        %v2433 = vlaneseq
        %v2434 = vshrl.u32 %v2433, 7
        %v2435 = vsub.s32 %v2432, %v2434
        %v2436 = vrot.slane %v2422, %v2435
        %v2437 = vcombine.low %v2404, %v2420
        %v2438 = vcombine.high %v2404, %v2420
        %v2440 = vunpack.c.l.s4 1934713408
        %v2441 = vunpack.c.0.s8 %v2440
        %v2442 = vlaneseq
        %v2443 = vshrl.u32 %v2442, 7
        %v2444 = vsub.s32 %v2441, %v2443
        %v2445 = vrot.slane %v2437, %v2444
        %v2447 = vunpack.c.l.s4 1934713408
        %v2448 = vunpack.c.0.s8 %v2447
        %v2449 = vlaneseq
        %v2450 = vshrl.u32 %v2449, 7
        %v2451 = vsub.s32 %v2448, %v2450
        %v2452 = vrot.slane %v2438, %v2451
        %v2453 = vcombine.high %v2429, 0.0
        %v2454 = vcombine.high %v2436, 0.0
        %v2455 = vcombine.high %v2445, 0.0
        %v2456 = vcombine.high %v2452, 0.0
        %v2457 = vcombine.low %v2429, %v2436
        %v2459 = vunpack.c.l.s4 1983009808
        %v2460 = vunpack.c.0.s8 %v2459
        %v2461 = vlaneseq
        %v2462 = vshrl.u32 %v2461, 7
        %v2463 = vsub.s32 %v2460, %v2462
        %v2464 = vrot.slane %v2457, %v2463
        %v2465 = vcombine.low %v2453, %v2454
        %v2467 = vunpack.c.l.s4 1983009808
        %v2468 = vunpack.c.0.s8 %v2467
        %v2469 = vlaneseq
        %v2470 = vshrl.u32 %v2469, 7
        %v2471 = vsub.s32 %v2468, %v2470
        %v2472 = vrot.slane %v2465, %v2471
        %v2473 = vcombine.low %v2445, %v2452
        %v2475 = vunpack.c.l.s4 1983009808
        %v2476 = vunpack.c.0.s8 %v2475
        %v2477 = vlaneseq
        %v2478 = vshrl.u32 %v2477, 7
        %v2479 = vsub.s32 %v2476, %v2478
        %v2480 = vrot.slane %v2473, %v2479
        %v2481 = vcombine.low %v2455, %v2456
        %v2483 = vunpack.c.l.s4 1983009808
        %v2484 = vunpack.c.0.s8 %v2483
        %v2485 = vlaneseq
        %v2486 = vshrl.u32 %v2485, 7
        %v2487 = vsub.s32 %v2484, %v2486
        %v2488 = vrot.slane %v2481, %v2487
        %v2489 = vcombine.low %v2464, %v2472
        %v2490 = vcombine.high %v2464, %v2472
        %v2492 = vunpack.c.l.s4 1934713408
        %v2493 = vunpack.c.0.s8 %v2492
        %v2494 = vlaneseq
        %v2495 = vshrl.u32 %v2494, 7
        %v2496 = vsub.s32 %v2493, %v2495
        %v2497 = vrot.slane %v2489, %v2496
        %v2499 = vunpack.c.l.s4 1934713408
        %v2500 = vunpack.c.0.s8 %v2499
        %v2501 = vlaneseq
        %v2502 = vshrl.u32 %v2501, 7
        %v2503 = vsub.s32 %v2500, %v2502
        %v2504 = vrot.slane %v2490, %v2503
        %v2505 = vcombine.low %v2480, %v2488
        %v2506 = vcombine.high %v2480, %v2488
        %v2508 = vunpack.c.l.s4 1934713408
        %v2509 = vunpack.c.0.s8 %v2508
        %v2510 = vlaneseq
        %v2511 = vshrl.u32 %v2510, 7
        %v2512 = vsub.s32 %v2509, %v2511
        %v2513 = vrot.slane %v2505, %v2512
        %v2515 = vunpack.c.l.s4 1934713408
        %v2516 = vunpack.c.0.s8 %v2515
        %v2517 = vlaneseq
        %v2518 = vshrl.u32 %v2517, 7
        %v2519 = vsub.s32 %v2516, %v2518
        %v2520 = vrot.slane %v2506, %v2519
        %v2521 = vcombine.low %v2497, %v2513
        %v2522 = vcombine.high %v2497, %v2513
        %v2523 = vcombine.low %v2504, %v2520
        %v2524 = vcombine.high %v2504, %v2520
        %v2525 = vpack.c.bf16 %v2521, %v2521
        %v2526 = vpack.c.bf16 %v2522, %v2522
        %v2527 = vpack.c.bf16 %v2523, %v2523
        %v2528 = vpack.c.bf16 %v2524, %v2524
        %v2530 = vsel %vm1223, %v2225, 0
        %v2533 = vsel %vm1223, %v2375, 0
        %2535 = vmatprep.subr.bf16.mxu0 0
        %2536 = vmatpush1.bf16.xpose.msra.mxu0 %v2533
        %2537 = vmatprep.subr.bf16.mxu0 0
        %2538 = vmatpush1.bf16.xpose.msra.mxu0 0
        %2539 = vmatprep.subr.bf16.mxu0 0
        %2540 = vmatpush1.bf16.xpose.msra.mxu0 0
        %2541 = vmatprep.subr.bf16.mxu0 0
        %2542 = vmatpush1.bf16.xpose.msra.mxu0 0
        %2543 = vmatprep.subr.bf16.mxu0 0
        %2544 = vmatpush1.bf16.xpose.msra.mxu0 0
        %2545 = vmatprep.subr.bf16.mxu0 0
        %2546 = vmatpush1.bf16.xpose.msra.mxu0 0
        %2547 = vmatprep.subr.bf16.mxu0 0
        %2548 = vmatpush1.bf16.xpose.msra.mxu0 0
        %2549 = vmatprep.subr.bf16.mxu0 0
        %2550 = vmatpush1.bf16.xpose.msra.mxu0 0
        %2551 = vmatprep.subr.bf16.mxu0 0
        %2552 = vmatpush1.bf16.xpose.msra.mxu0 0
        %2553 = vmatprep.subr.bf16.mxu0 0
        %2554 = vmatpush1.bf16.xpose.msra.mxu0 0
        %2555 = vmatprep.subr.bf16.mxu0 0
        %2556 = vmatpush1.bf16.xpose.msra.mxu0 0
        %2557 = vmatprep.subr.bf16.mxu0 0
        %2558 = vmatpush1.bf16.xpose.msra.mxu0 0
        %2559 = vmatprep.subr.bf16.mxu0 0
        %2560 = vmatpush1.bf16.xpose.msra.mxu0 0
        %2561 = vmatprep.subr.bf16.mxu0 0
        %2562 = vmatpush1.bf16.xpose.msra.mxu0 0
        %2563 = vmatprep.subr.bf16.mxu0 0
        %2564 = vmatpush1.bf16.xpose.msra.mxu0 0
        %2565 = vmatprep.subr.bf16.mxu0 0
        %2566 = vmatpush1.bf16.xpose.msra.mxu0 0
        %2567 = vmatprep.mubr.bf16.mxu0 0
        %2568 = vmatmul.mubr.bf16.gmra.mrb[0].mxu0 %v2530
        %v2569 = vpop.f32.mrb[0].mxu0
        %v2570 = vadd.f32 0.0, %v2569
        %v2571 = vpop.f32.mrb[0].mxu0
        %v2572 = vpop.f32.mrb[0].mxu0
        %v2573 = vpop.f32.mrb[0].mxu0
        %2574 = vdwg.mxu0
        %v2576 = vsel %vm1223, %v2226, 0
        %v2579 = vsel %vm1223, %v2376, 0
        %2581 = vmatprep.subr.bf16.mxu0 0
        %2582 = vmatpush1.bf16.xpose.msra.mxu0 %v2579
        %2583 = vmatprep.subr.bf16.mxu0 0
        %2584 = vmatpush1.bf16.xpose.msra.mxu0 0
        %2585 = vmatprep.subr.bf16.mxu0 0
        %2586 = vmatpush1.bf16.xpose.msra.mxu0 0
        %2587 = vmatprep.subr.bf16.mxu0 0
        %2588 = vmatpush1.bf16.xpose.msra.mxu0 0
        %2589 = vmatprep.subr.bf16.mxu0 0
        %2590 = vmatpush1.bf16.xpose.msra.mxu0 0
        %2591 = vmatprep.subr.bf16.mxu0 0
        %2592 = vmatpush1.bf16.xpose.msra.mxu0 0
        %2593 = vmatprep.subr.bf16.mxu0 0
        %2594 = vmatpush1.bf16.xpose.msra.mxu0 0
        %2595 = vmatprep.subr.bf16.mxu0 0
        %2596 = vmatpush1.bf16.xpose.msra.mxu0 0
        %2597 = vmatprep.subr.bf16.mxu0 0
        %2598 = vmatpush1.bf16.xpose.msra.mxu0 0
        %2599 = vmatprep.subr.bf16.mxu0 0
        %2600 = vmatpush1.bf16.xpose.msra.mxu0 0
        %2601 = vmatprep.subr.bf16.mxu0 0
        %2602 = vmatpush1.bf16.xpose.msra.mxu0 0
        %2603 = vmatprep.subr.bf16.mxu0 0
        %2604 = vmatpush1.bf16.xpose.msra.mxu0 0
        %2605 = vmatprep.subr.bf16.mxu0 0
        %2606 = vmatpush1.bf16.xpose.msra.mxu0 0
        %2607 = vmatprep.subr.bf16.mxu0 0
        %2608 = vmatpush1.bf16.xpose.msra.mxu0 0
        %2609 = vmatprep.subr.bf16.mxu0 0
        %2610 = vmatpush1.bf16.xpose.msra.mxu0 0
        %2611 = vmatprep.subr.bf16.mxu0 0
        %2612 = vmatpush1.bf16.xpose.msra.mxu0 0
        %2613 = vmatprep.mubr.bf16.mxu0 0
        %2614 = vmatmul.mubr.bf16.gmra.mrb[0].mxu0 %v2576
        %v2615 = vpop.f32.mrb[0].mxu0
        %v2616 = vadd.f32 0.0, %v2615
        %v2617 = vpop.f32.mrb[0].mxu0
        %v2618 = vpop.f32.mrb[0].mxu0
        %v2619 = vpop.f32.mrb[0].mxu0
        %2620 = vdwg.mxu0
        %v2622 = vsel %vm1223, %v2227, 0
        %v2625 = vsel %vm1223, %v2377, 0
        %2627 = vmatprep.subr.bf16.mxu0 0
        %2628 = vmatpush1.bf16.xpose.msra.mxu0 %v2625
        %2629 = vmatprep.subr.bf16.mxu0 0
        %2630 = vmatpush1.bf16.xpose.msra.mxu0 0
        %2631 = vmatprep.subr.bf16.mxu0 0
        %2632 = vmatpush1.bf16.xpose.msra.mxu0 0
        %2633 = vmatprep.subr.bf16.mxu0 0
        %2634 = vmatpush1.bf16.xpose.msra.mxu0 0
        %2635 = vmatprep.subr.bf16.mxu0 0
        %2636 = vmatpush1.bf16.xpose.msra.mxu0 0
        %2637 = vmatprep.subr.bf16.mxu0 0
        %2638 = vmatpush1.bf16.xpose.msra.mxu0 0
        %2639 = vmatprep.subr.bf16.mxu0 0
        %2640 = vmatpush1.bf16.xpose.msra.mxu0 0
        %2641 = vmatprep.subr.bf16.mxu0 0
        %2642 = vmatpush1.bf16.xpose.msra.mxu0 0
        %2643 = vmatprep.subr.bf16.mxu0 0
        %2644 = vmatpush1.bf16.xpose.msra.mxu0 0
        %2645 = vmatprep.subr.bf16.mxu0 0
        %2646 = vmatpush1.bf16.xpose.msra.mxu0 0
        %2647 = vmatprep.subr.bf16.mxu0 0
        %2648 = vmatpush1.bf16.xpose.msra.mxu0 0
        %2649 = vmatprep.subr.bf16.mxu0 0
        %2650 = vmatpush1.bf16.xpose.msra.mxu0 0
        %2651 = vmatprep.subr.bf16.mxu0 0
        %2652 = vmatpush1.bf16.xpose.msra.mxu0 0
        %2653 = vmatprep.subr.bf16.mxu0 0
        %2654 = vmatpush1.bf16.xpose.msra.mxu0 0
        %2655 = vmatprep.subr.bf16.mxu0 0
        %2656 = vmatpush1.bf16.xpose.msra.mxu0 0
        %2657 = vmatprep.subr.bf16.mxu0 0
        %2658 = vmatpush1.bf16.xpose.msra.mxu0 0
        %2659 = vmatprep.mubr.bf16.mxu0 0
        %2660 = vmatmul.mubr.bf16.gmra.mrb[0].mxu0 %v2622
        %v2661 = vpop.f32.mrb[0].mxu0
        %v2662 = vadd.f32 0.0, %v2661
        %v2663 = vpop.f32.mrb[0].mxu0
        %v2664 = vpop.f32.mrb[0].mxu0
        %v2665 = vpop.f32.mrb[0].mxu0
        %2666 = vdwg.mxu0
        %v2668 = vsel %vm1223, %v2228, 0
        %v2671 = vsel %vm1223, %v2378, 0
        %2673 = vmatprep.subr.bf16.mxu0 0
        %2674 = vmatpush1.bf16.xpose.msra.mxu0 %v2671
        %2675 = vmatprep.subr.bf16.mxu0 0
        %2676 = vmatpush1.bf16.xpose.msra.mxu0 0
        %2677 = vmatprep.subr.bf16.mxu0 0
        %2678 = vmatpush1.bf16.xpose.msra.mxu0 0
        %2679 = vmatprep.subr.bf16.mxu0 0
        %2680 = vmatpush1.bf16.xpose.msra.mxu0 0
        %2681 = vmatprep.subr.bf16.mxu0 0
        %2682 = vmatpush1.bf16.xpose.msra.mxu0 0
        %2683 = vmatprep.subr.bf16.mxu0 0
        %2684 = vmatpush1.bf16.xpose.msra.mxu0 0
        %2685 = vmatprep.subr.bf16.mxu0 0
        %2686 = vmatpush1.bf16.xpose.msra.mxu0 0
        %2687 = vmatprep.subr.bf16.mxu0 0
        %2688 = vmatpush1.bf16.xpose.msra.mxu0 0
        %2689 = vmatprep.subr.bf16.mxu0 0
        %2690 = vmatpush1.bf16.xpose.msra.mxu0 0
        %2691 = vmatprep.subr.bf16.mxu0 0
        %2692 = vmatpush1.bf16.xpose.msra.mxu0 0
        %2693 = vmatprep.subr.bf16.mxu0 0
        %2694 = vmatpush1.bf16.xpose.msra.mxu0 0
        %2695 = vmatprep.subr.bf16.mxu0 0
        %2696 = vmatpush1.bf16.xpose.msra.mxu0 0
        %2697 = vmatprep.subr.bf16.mxu0 0
        %2698 = vmatpush1.bf16.xpose.msra.mxu0 0
        %2699 = vmatprep.subr.bf16.mxu0 0
        %2700 = vmatpush1.bf16.xpose.msra.mxu0 0
        %2701 = vmatprep.subr.bf16.mxu0 0
        %2702 = vmatpush1.bf16.xpose.msra.mxu0 0
        %2703 = vmatprep.subr.bf16.mxu0 0
        %2704 = vmatpush1.bf16.xpose.msra.mxu0 0
        %2705 = vmatprep.mubr.bf16.mxu0 0
        %2706 = vmatmul.mubr.bf16.gmra.mrb[0].mxu0 %v2668
        %v2707 = vpop.f32.mrb[0].mxu0
        %v2708 = vadd.f32 0.0, %v2707
        %v2709 = vpop.f32.mrb[0].mxu0
        %v2710 = vpop.f32.mrb[0].mxu0
        %v2711 = vpop.f32.mrb[0].mxu0
        %2712 = vdwg.mxu0
        %v2713 = vsel %vm2078, 1, 0
        %vm2714 = vcmp.eq.s32.totalorder %v2713, 1
        %v2715 = vsel %vm2714, %v2570, -1e+30
        %v2716 = vsel %vm2714, %v2616, -1e+30
        %v2717 = vsel %vm2714, %v2662, -1e+30
        %v2718 = vsel %vm2714, %v2708, -1e+30
        %v2719 = vsel %vm1223, %v2715, -inf
        %2720 = vmax.xlane.f32.xlu0 %v2719
        %v2721 = vpop.xlane.xlu0 %2720
        %v2722 = vsel %vm1223, %v2716, -inf
        %2723 = vmax.xlane.f32.xlu0 %v2722
        %v2724 = vpop.xlane.xlu0 %2723
        %v2725 = vsel %vm1223, %v2717, -inf
        %2726 = vmax.xlane.f32.xlu0 %v2725
        %v2727 = vpop.xlane.xlu0 %2726
        %v2728 = vsel %vm1223, %v2718, -inf
        %2729 = vmax.xlane.f32.xlu0 %v2728
        %v2730 = vpop.xlane.xlu0 %2729
        %v2731 = vsub.f32 %v2715, %v2721
        %v2732 = vsub.f32 %v2716, %v2724
        %v2733 = vsub.f32 %v2717, %v2727
        %v2734 = vsub.f32 %v2718, %v2730
        %v2735 = vmul.f32 %v2731, 1.442695
        %v2736 = vpow.pop %v2735
        %v2737 = vmul.f32 %v2732, 1.442695
        %v2738 = vpow.pop %v2737
        %v2739 = vmul.f32 %v2733, 1.442695
        %v2740 = vpow.pop %v2739
        %v2741 = vmul.f32 %v2734, 1.442695
        %v2742 = vpow.pop %v2741
        %v2743 = vsel %vm1223, %v2736, 0.0
        %2744 = vadd.xlane.f32.xlu0 %v2743
        %v2745 = vpop.xlane.xlu0 %2744
        %v2746 = vsel %vm1223, %v2738, 0.0
        %2747 = vadd.xlane.f32.xlu0 %v2746
        %v2748 = vpop.xlane.xlu0 %2747
        %v2749 = vsel %vm1223, %v2740, 0.0
        %2750 = vadd.xlane.f32.xlu0 %v2749
        %v2751 = vpop.xlane.xlu0 %2750
        %v2752 = vsel %vm1223, %v2742, 0.0
        %2753 = vadd.xlane.f32.xlu0 %v2752
        %v2754 = vpop.xlane.xlu0 %2753
        %v2755 = vrcp.pop %v2745
        %v2756 = vrcp.pop %v2748
        %v2757 = vrcp.pop %v2751
        %v2758 = vrcp.pop %v2754
        %v2759 = vpack.c.bf16 %v2736, %v2736
        %v2760 = vpack.c.bf16 %v2738, %v2738
        %v2761 = vpack.c.bf16 %v2740, %v2740
        %v2762 = vpack.c.bf16 %v2742, %v2742
        %v2764 = vsel %vm1223, %v2759, 0
        %v2767 = vsel %vm1455, %v2525, 0
        %2769 = vmatprep.subr.bf16.mxu0 0
        %2770 = vmatpush1.bf16.msra.mxu0 %v2767
        %2771 = vmatprep.subr.bf16.mxu0 0
        %2772 = vmatpush1.bf16.msra.mxu0 0
        %2773 = vmatprep.subr.bf16.mxu0 0
        %2774 = vmatpush1.bf16.msra.mxu0 0
        %2775 = vmatprep.subr.bf16.mxu0 0
        %2776 = vmatpush1.bf16.msra.mxu0 0
        %2777 = vmatprep.subr.bf16.mxu0 0
        %2778 = vmatpush1.bf16.msra.mxu0 0
        %2779 = vmatprep.subr.bf16.mxu0 0
        %2780 = vmatpush1.bf16.msra.mxu0 0
        %2781 = vmatprep.subr.bf16.mxu0 0
        %2782 = vmatpush1.bf16.msra.mxu0 0
        %2783 = vmatprep.subr.bf16.mxu0 0
        %2784 = vmatpush1.bf16.msra.mxu0 0
        %2785 = vmatprep.subr.bf16.mxu0 0
        %2786 = vmatpush1.bf16.msra.mxu0 0
        %2787 = vmatprep.subr.bf16.mxu0 0
        %2788 = vmatpush1.bf16.msra.mxu0 0
        %2789 = vmatprep.subr.bf16.mxu0 0
        %2790 = vmatpush1.bf16.msra.mxu0 0
        %2791 = vmatprep.subr.bf16.mxu0 0
        %2792 = vmatpush1.bf16.msra.mxu0 0
        %2793 = vmatprep.subr.bf16.mxu0 0
        %2794 = vmatpush1.bf16.msra.mxu0 0
        %2795 = vmatprep.subr.bf16.mxu0 0
        %2796 = vmatpush1.bf16.msra.mxu0 0
        %2797 = vmatprep.subr.bf16.mxu0 0
        %2798 = vmatpush1.bf16.msra.mxu0 0
        %2799 = vmatprep.subr.bf16.mxu0 0
        %2800 = vmatpush1.bf16.msra.mxu0 0
        %2801 = vmatprep.mubr.bf16.mxu0 0
        %2802 = vmatmul.mubr.bf16.gmra.mrb[0].mxu0 %v2764
        %v2803 = vpop.f32.mrb[0].mxu0
        %v2804 = vadd.f32 0.0, %v2803
        %v2805 = vpop.f32.mrb[0].mxu0
        %v2806 = vpop.f32.mrb[0].mxu0
        %v2807 = vpop.f32.mrb[0].mxu0
        %2808 = vdwg.mxu0
        %v2810 = vsel %vm1223, %v2760, 0
        %v2813 = vsel %vm1455, %v2526, 0
        %2815 = vmatprep.subr.bf16.mxu0 0
        %2816 = vmatpush1.bf16.msra.mxu0 %v2813
        %2817 = vmatprep.subr.bf16.mxu0 0
        %2818 = vmatpush1.bf16.msra.mxu0 0
        %2819 = vmatprep.subr.bf16.mxu0 0
        %2820 = vmatpush1.bf16.msra.mxu0 0
        %2821 = vmatprep.subr.bf16.mxu0 0
        %2822 = vmatpush1.bf16.msra.mxu0 0
        %2823 = vmatprep.subr.bf16.mxu0 0
        %2824 = vmatpush1.bf16.msra.mxu0 0
        %2825 = vmatprep.subr.bf16.mxu0 0
        %2826 = vmatpush1.bf16.msra.mxu0 0
        %2827 = vmatprep.subr.bf16.mxu0 0
        %2828 = vmatpush1.bf16.msra.mxu0 0
        %2829 = vmatprep.subr.bf16.mxu0 0
        %2830 = vmatpush1.bf16.msra.mxu0 0
        %2831 = vmatprep.subr.bf16.mxu0 0
        %2832 = vmatpush1.bf16.msra.mxu0 0
        %2833 = vmatprep.subr.bf16.mxu0 0
        %2834 = vmatpush1.bf16.msra.mxu0 0
        %2835 = vmatprep.subr.bf16.mxu0 0
        %2836 = vmatpush1.bf16.msra.mxu0 0
        %2837 = vmatprep.subr.bf16.mxu0 0
        %2838 = vmatpush1.bf16.msra.mxu0 0
        %2839 = vmatprep.subr.bf16.mxu0 0
        %2840 = vmatpush1.bf16.msra.mxu0 0
        %2841 = vmatprep.subr.bf16.mxu0 0
        %2842 = vmatpush1.bf16.msra.mxu0 0
        %2843 = vmatprep.subr.bf16.mxu0 0
        %2844 = vmatpush1.bf16.msra.mxu0 0
        %2845 = vmatprep.subr.bf16.mxu0 0
        %2846 = vmatpush1.bf16.msra.mxu0 0
        %2847 = vmatprep.mubr.bf16.mxu0 0
        %2848 = vmatmul.mubr.bf16.gmra.mrb[0].mxu0 %v2810
        %v2849 = vpop.f32.mrb[0].mxu0
        %v2850 = vadd.f32 0.0, %v2849
        %v2851 = vpop.f32.mrb[0].mxu0
        %v2852 = vpop.f32.mrb[0].mxu0
        %v2853 = vpop.f32.mrb[0].mxu0
        %2854 = vdwg.mxu0
        %v2856 = vsel %vm1223, %v2761, 0
        %v2859 = vsel %vm1455, %v2527, 0
        %2861 = vmatprep.subr.bf16.mxu0 0
        %2862 = vmatpush1.bf16.msra.mxu0 %v2859
        %2863 = vmatprep.subr.bf16.mxu0 0
        %2864 = vmatpush1.bf16.msra.mxu0 0
        %2865 = vmatprep.subr.bf16.mxu0 0
        %2866 = vmatpush1.bf16.msra.mxu0 0
        %2867 = vmatprep.subr.bf16.mxu0 0
        %2868 = vmatpush1.bf16.msra.mxu0 0
        %2869 = vmatprep.subr.bf16.mxu0 0
        %2870 = vmatpush1.bf16.msra.mxu0 0
        %2871 = vmatprep.subr.bf16.mxu0 0
        %2872 = vmatpush1.bf16.msra.mxu0 0
        %2873 = vmatprep.subr.bf16.mxu0 0
        %2874 = vmatpush1.bf16.msra.mxu0 0
        %2875 = vmatprep.subr.bf16.mxu0 0
        %2876 = vmatpush1.bf16.msra.mxu0 0
        %2877 = vmatprep.subr.bf16.mxu0 0
        %2878 = vmatpush1.bf16.msra.mxu0 0
        %2879 = vmatprep.subr.bf16.mxu0 0
        %2880 = vmatpush1.bf16.msra.mxu0 0
        %2881 = vmatprep.subr.bf16.mxu0 0
        %2882 = vmatpush1.bf16.msra.mxu0 0
        %2883 = vmatprep.subr.bf16.mxu0 0
        %2884 = vmatpush1.bf16.msra.mxu0 0
        %2885 = vmatprep.subr.bf16.mxu0 0
        %2886 = vmatpush1.bf16.msra.mxu0 0
        %2887 = vmatprep.subr.bf16.mxu0 0
        %2888 = vmatpush1.bf16.msra.mxu0 0
        %2889 = vmatprep.subr.bf16.mxu0 0
        %2890 = vmatpush1.bf16.msra.mxu0 0
        %2891 = vmatprep.subr.bf16.mxu0 0
        %2892 = vmatpush1.bf16.msra.mxu0 0
        %2893 = vmatprep.mubr.bf16.mxu0 0
        %2894 = vmatmul.mubr.bf16.gmra.mrb[0].mxu0 %v2856
        %v2895 = vpop.f32.mrb[0].mxu0
        %v2896 = vadd.f32 0.0, %v2895
        %v2897 = vpop.f32.mrb[0].mxu0
        %v2898 = vpop.f32.mrb[0].mxu0
        %v2899 = vpop.f32.mrb[0].mxu0
        %2900 = vdwg.mxu0
        %v2902 = vsel %vm1223, %v2762, 0
        %v2905 = vsel %vm1455, %v2528, 0
        %2907 = vmatprep.subr.bf16.mxu0 0
        %2908 = vmatpush1.bf16.msra.mxu0 %v2905
        %2909 = vmatprep.subr.bf16.mxu0 0
        %2910 = vmatpush1.bf16.msra.mxu0 0
        %2911 = vmatprep.subr.bf16.mxu0 0
        %2912 = vmatpush1.bf16.msra.mxu0 0
        %2913 = vmatprep.subr.bf16.mxu0 0
        %2914 = vmatpush1.bf16.msra.mxu0 0
        %2915 = vmatprep.subr.bf16.mxu0 0
        %2916 = vmatpush1.bf16.msra.mxu0 0
        %2917 = vmatprep.subr.bf16.mxu0 0
        %2918 = vmatpush1.bf16.msra.mxu0 0
        %2919 = vmatprep.subr.bf16.mxu0 0
        %2920 = vmatpush1.bf16.msra.mxu0 0
        %2921 = vmatprep.subr.bf16.mxu0 0
        %2922 = vmatpush1.bf16.msra.mxu0 0
        %2923 = vmatprep.subr.bf16.mxu0 0
        %2924 = vmatpush1.bf16.msra.mxu0 0
        %2925 = vmatprep.subr.bf16.mxu0 0
        %2926 = vmatpush1.bf16.msra.mxu0 0
        %2927 = vmatprep.subr.bf16.mxu0 0
        %2928 = vmatpush1.bf16.msra.mxu0 0
        %2929 = vmatprep.subr.bf16.mxu0 0
        %2930 = vmatpush1.bf16.msra.mxu0 0
        %2931 = vmatprep.subr.bf16.mxu0 0
        %2932 = vmatpush1.bf16.msra.mxu0 0
        %2933 = vmatprep.subr.bf16.mxu0 0
        %2934 = vmatpush1.bf16.msra.mxu0 0
        %2935 = vmatprep.subr.bf16.mxu0 0
        %2936 = vmatpush1.bf16.msra.mxu0 0
        %2937 = vmatprep.subr.bf16.mxu0 0
        %2938 = vmatpush1.bf16.msra.mxu0 0
        %2939 = vmatprep.mubr.bf16.mxu0 0
        %2940 = vmatmul.mubr.bf16.gmra.mrb[0].mxu0 %v2902
        %v2941 = vpop.f32.mrb[0].mxu0
        %v2942 = vadd.f32 0.0, %v2941
        %v2943 = vpop.f32.mrb[0].mxu0
        %v2944 = vpop.f32.mrb[0].mxu0
        %v2945 = vpop.f32.mrb[0].mxu0
        %2946 = vdwg.mxu0
        %v2947 = vmul.f32 %v2804, %v2755
        %v2948 = vmul.f32 %v2850, %v2756
        %v2949 = vmul.f32 %v2896, %v2757
        %v2950 = vmul.f32 %v2942, %v2758
        %v2951 = vcombine.low %v2947, %v2949
        %v2952 = vcombine.high %v2947, %v2949
        %v2954 = vunpack.c.l.s4 1983009808
        %v2955 = vunpack.c.0.s8 %v2954
        %v2956 = vlaneseq
        %v2957 = vshrl.u32 %v2956, 7
        %v2958 = vsub.s32 %v2955, %v2957
        %v2959 = vrot.slane %v2951, %v2958
        %v2961 = vunpack.c.l.s4 1983009808
        %v2962 = vunpack.c.0.s8 %v2961
        %v2963 = vlaneseq
        %v2964 = vshrl.u32 %v2963, 7
        %v2965 = vsub.s32 %v2962, %v2964
        %v2966 = vrot.slane %v2952, %v2965
        %v2967 = vcombine.low %v2948, %v2950
        %v2968 = vcombine.high %v2948, %v2950
        %v2970 = vunpack.c.l.s4 1983009808
        %v2971 = vunpack.c.0.s8 %v2970
        %v2972 = vlaneseq
        %v2973 = vshrl.u32 %v2972, 7
        %v2974 = vsub.s32 %v2971, %v2973
        %v2975 = vrot.slane %v2967, %v2974
        %v2977 = vunpack.c.l.s4 1983009808
        %v2978 = vunpack.c.0.s8 %v2977
        %v2979 = vlaneseq
        %v2980 = vshrl.u32 %v2979, 7
        %v2981 = vsub.s32 %v2978, %v2980
        %v2982 = vrot.slane %v2968, %v2981
        %v2983 = vcombine.low %v2959, %v2975
        %v2984 = vcombine.high %v2959, %v2975
        %v2986 = vunpack.c.l.s4 1934713408
        %v2987 = vunpack.c.0.s8 %v2986
        %v2988 = vlaneseq
        %v2989 = vshrl.u32 %v2988, 7
        %v2990 = vsub.s32 %v2987, %v2989
        %v2991 = vrot.slane %v2983, %v2990
        %v2993 = vunpack.c.l.s4 1934713408
        %v2994 = vunpack.c.0.s8 %v2993
        %v2995 = vlaneseq
        %v2996 = vshrl.u32 %v2995, 7
        %v2997 = vsub.s32 %v2994, %v2996
        %v2998 = vrot.slane %v2984, %v2997
        %v2999 = vcombine.low %v2966, %v2982
        %v3000 = vcombine.high %v2966, %v2982
        %v3002 = vunpack.c.l.s4 1934713408
        %v3003 = vunpack.c.0.s8 %v3002
        %v3004 = vlaneseq
        %v3005 = vshrl.u32 %v3004, 7
        %v3006 = vsub.s32 %v3003, %v3005
        %v3007 = vrot.slane %v2999, %v3006
        %v3009 = vunpack.c.l.s4 1934713408
        %v3010 = vunpack.c.0.s8 %v3009
        %v3011 = vlaneseq
        %v3012 = vshrl.u32 %v3011, 7
        %v3013 = vsub.s32 %v3010, %v3012
        %v3014 = vrot.slane %v3000, %v3013
        %v3015 = vcombine.high %v2991, 0.0
        %v3016 = vcombine.high %v2998, 0.0
        %v3017 = vcombine.high %v3007, 0.0
        %v3018 = vcombine.high %v3014, 0.0
        %v3019 = vcombine.low %v2991, %v2998
        %v3021 = vunpack.c.l.s4 1983009808
        %v3022 = vunpack.c.0.s8 %v3021
        %v3023 = vlaneseq
        %v3024 = vshrl.u32 %v3023, 7
        %v3025 = vsub.s32 %v3022, %v3024
        %v3026 = vrot.slane %v3019, %v3025
        %v3027 = vcombine.low %v3015, %v3016
        %v3029 = vunpack.c.l.s4 1983009808
        %v3030 = vunpack.c.0.s8 %v3029
        %v3031 = vlaneseq
        %v3032 = vshrl.u32 %v3031, 7
        %v3033 = vsub.s32 %v3030, %v3032
        %v3034 = vrot.slane %v3027, %v3033
        %v3035 = vcombine.low %v3007, %v3014
        %v3037 = vunpack.c.l.s4 1983009808
        %v3038 = vunpack.c.0.s8 %v3037
        %v3039 = vlaneseq
        %v3040 = vshrl.u32 %v3039, 7
        %v3041 = vsub.s32 %v3038, %v3040
        %v3042 = vrot.slane %v3035, %v3041
        %v3043 = vcombine.low %v3017, %v3018
        %v3045 = vunpack.c.l.s4 1983009808
        %v3046 = vunpack.c.0.s8 %v3045
        %v3047 = vlaneseq
        %v3048 = vshrl.u32 %v3047, 7
        %v3049 = vsub.s32 %v3046, %v3048
        %v3050 = vrot.slane %v3043, %v3049
        %v3051 = vcombine.low %v3026, %v3034
        %v3052 = vcombine.high %v3026, %v3034
        %v3054 = vunpack.c.l.s4 1934713408
        %v3055 = vunpack.c.0.s8 %v3054
        %v3056 = vlaneseq
        %v3057 = vshrl.u32 %v3056, 7
        %v3058 = vsub.s32 %v3055, %v3057
        %v3059 = vrot.slane %v3051, %v3058
        %v3061 = vunpack.c.l.s4 1934713408
        %v3062 = vunpack.c.0.s8 %v3061
        %v3063 = vlaneseq
        %v3064 = vshrl.u32 %v3063, 7
        %v3065 = vsub.s32 %v3062, %v3064
        %v3066 = vrot.slane %v3052, %v3065
        %v3067 = vcombine.low %v3042, %v3050
        %v3068 = vcombine.high %v3042, %v3050
        %v3070 = vunpack.c.l.s4 1934713408
        %v3071 = vunpack.c.0.s8 %v3070
        %v3072 = vlaneseq
        %v3073 = vshrl.u32 %v3072, 7
        %v3074 = vsub.s32 %v3071, %v3073
        %v3075 = vrot.slane %v3067, %v3074
        %v3077 = vunpack.c.l.s4 1934713408
        %v3078 = vunpack.c.0.s8 %v3077
        %v3079 = vlaneseq
        %v3080 = vshrl.u32 %v3079, 7
        %v3081 = vsub.s32 %v3078, %v3080
        %v3082 = vrot.slane %v3068, %v3081
        %v3083 = vcombine.low %v3059, %v3075
        %v3084 = vcombine.high %v3059, %v3075
        %v3085 = vcombine.low %v3066, %v3082
        %v3086 = vcombine.high %v3066, %v3082
        %3088 = vrot.lane.b32.xlu0 %v3084, 8
        %v3089 = vpop.permute.xlu0 %3088
        %3092 = vrot.lane.b32.xlu0 %v3085, 16
        %v3093 = vpop.permute.xlu0 %3092
        %3096 = vrot.lane.b32.xlu0 %v3086, 24
        %v3097 = vpop.permute.xlu0 %3096
        %v3099 = vsel %vm1223, %v3083, %v3089
        %v3100 = vsel %vm1790, %v3099, %v3093
        %v3101 = vsel %vm1792, %v3100, %v3097
        %v3102 = vpack.c.bf16 %v3101, %v3101
        %v3103 = vld [vmem:[%s9] sm:$0xf]
        %v3104 = vld [vmem:[%s9 + $0x4] sm:$0xf]
        %v3105 = vld [vmem:[%s9 + $0x8] sm:$0xf]
        %v3106 = vld [vmem:[%s9 + $0xc] sm:$0xf]
        %v3107 = vlaneseq
        %v3108 = vshrl.u32 %v3107, 7
        %v3109 = vsub.s32 7, %v3108
        %v3110 = vrot.slane %v586, %v3109
        %v3115 = vunpack.c.l.b16 %v3103
        %v3116 = vunpack.c.l.b16 %v3104
        %v3117 = vunpack.c.l.b16 %v3105
        %v3118 = vunpack.c.l.b16 %v3106
        %v3119 = vpack.c.b16 %v3116, %v3115
        %v3120 = vpack.c.b16 %v3118, %v3117
        %v3124 = vsel %vm609, %v3102, 0
        %3126 = vmatprep.subr.bf16.mxu0 0
        %3127 = vmatpush1.bf16.msra.mxu0 %v3119
        %3128 = vmatprep.subr.bf16.mxu0 0
        %3129 = vmatpush1.bf16.msra.mxu0 %v3120
        %3130 = vmatprep.subr.bf16.mxu0 0
        %3131 = vmatpush1.bf16.msra.mxu0 0
        %3132 = vmatprep.subr.bf16.mxu0 0
        %3133 = vmatpush1.bf16.msra.mxu0 0
        %3134 = vmatprep.subr.bf16.mxu0 0
        %3135 = vmatpush1.bf16.msra.mxu0 0
        %3136 = vmatprep.subr.bf16.mxu0 0
        %3137 = vmatpush1.bf16.msra.mxu0 0
        %3138 = vmatprep.subr.bf16.mxu0 0
        %3139 = vmatpush1.bf16.msra.mxu0 0
        %3140 = vmatprep.subr.bf16.mxu0 0
        %3141 = vmatpush1.bf16.msra.mxu0 0
        %3142 = vmatprep.subr.bf16.mxu0 0
        %3143 = vmatpush1.bf16.msra.mxu0 0
        %3144 = vmatprep.subr.bf16.mxu0 0
        %3145 = vmatpush1.bf16.msra.mxu0 0
        %3146 = vmatprep.subr.bf16.mxu0 0
        %3147 = vmatpush1.bf16.msra.mxu0 0
        %3148 = vmatprep.subr.bf16.mxu0 0
        %3149 = vmatpush1.bf16.msra.mxu0 0
        %3150 = vmatprep.subr.bf16.mxu0 0
        %3151 = vmatpush1.bf16.msra.mxu0 0
        %3152 = vmatprep.subr.bf16.mxu0 0
        %3153 = vmatpush1.bf16.msra.mxu0 0
        %3154 = vmatprep.subr.bf16.mxu0 0
        %3155 = vmatpush1.bf16.msra.mxu0 0
        %3156 = vmatprep.subr.bf16.mxu0 0
        %3157 = vmatpush1.bf16.msra.mxu0 0
        %3158 = vmatprep.mubr.bf16.mxu0 0
        %3159 = vmatmul.mubr.bf16.gmra.mrb[0].mxu0 %v3124
        %v3160 = vpop.f32.mrb[0].mxu0
        %v3161 = vadd.f32 %v3110, %v3160
        %v3162 = vpop.f32.mrb[0].mxu0
        %v3163 = vpop.f32.mrb[0].mxu0
        %v3164 = vpop.f32.mrb[0].mxu0
        %3165 = vdwg.mxu0
        %v3166 = vadd.f32 %v1882, %v3161
        %v3167 = vsel %vm609, %v3166, 0.0
        %3168 = vadd.xlane.f32.xlu0 %v3167
        %v3169 = vpop.xlane.xlu0 %3168
        %v3170 = vmul.f32 %v3169, %v1862
        %v3171 = vsub.f32 %v3166, %v3170
        %v3172 = vmul.f32 %v3171, %v3171
        %v3173 = vsel %vm609, %v3172, 0.0
        %3174 = vadd.xlane.f32.xlu0 %v3173
        %v3175 = vpop.xlane.xlu0 %3174
        %v3176 = vmul.f32 %v3175, %v1862
        %v3177 = vadd.f32 %v3176, 1e-05
        %v3178 = vrsqrt.pop %v3177
        %v3179 = vmul.f32 %v3171, %v3178
        %v3180 = vlaneseq
        %v3181 = vshrl.u32 %v3180, 7
        %v3182 = vsub.s32 3, %v3181
        %v3183 = vrot.slane %v587, %v3182
        %v3184 = vmul.f32 %v3179, %v3183
        %v3185 = vlaneseq
        %v3186 = vshrl.u32 %v3185, 7
        %v3187 = vsub.s32 4, %v3186
        %v3188 = vrot.slane %v587, %v3187
        %v3189 = vadd.f32 %v3184, %v3188
        %v3190 = vpack.c.bf16 %v3189, %v3189
        %v3191 = vld [vmem:[#allocation13] sm:$0xf]
        %v3192 = vld [vmem:[#allocation13 + $0x4] sm:$0xf]
        %v3193 = vld [vmem:[#allocation13 + $0x8] sm:$0xf]
        %v3194 = vld [vmem:[#allocation13 + $0xc] sm:$0xf]
        %v3195 = vld [vmem:[%s12] sm:$0x1]
        %v3197 = vlaneseq
        %v3198 = vshrl.u32 %v3197, 7
        %v3199 = vsub.s32 0, %v3198
        %v3200 = vrot.slane %v3195, %v3199
        %v3206 = vunpack.c.l.b16 %v3191
        %v3207 = vunpack.c.l.b16 %v3192
        %v3208 = vunpack.c.l.b16 %v3193
        %v3209 = vunpack.c.l.b16 %v3194
        %v3210 = vpack.c.b16 %v3207, %v3206
        %v3211 = vpack.c.b16 %v3209, %v3208
        %v3215 = vsel %vm609, %v3190, 0
        %3217 = vmatprep.subr.bf16.mxu0 0
        %3218 = vmatpush1.bf16.msra.mxu0 %v3210
        %3219 = vmatprep.subr.bf16.mxu0 0
        %3220 = vmatpush1.bf16.msra.mxu0 %v3211
        %3221 = vmatprep.subr.bf16.mxu0 0
        %3222 = vmatpush1.bf16.msra.mxu0 0
        %3223 = vmatprep.subr.bf16.mxu0 0
        %3224 = vmatpush1.bf16.msra.mxu0 0
        %3225 = vmatprep.subr.bf16.mxu0 0
        %3226 = vmatpush1.bf16.msra.mxu0 0
        %3227 = vmatprep.subr.bf16.mxu0 0
        %3228 = vmatpush1.bf16.msra.mxu0 0
        %3229 = vmatprep.subr.bf16.mxu0 0
        %3230 = vmatpush1.bf16.msra.mxu0 0
        %3231 = vmatprep.subr.bf16.mxu0 0
        %3232 = vmatpush1.bf16.msra.mxu0 0
        %3233 = vmatprep.subr.bf16.mxu0 0
        %3234 = vmatpush1.bf16.msra.mxu0 0
        %3235 = vmatprep.subr.bf16.mxu0 0
        %3236 = vmatpush1.bf16.msra.mxu0 0
        %3237 = vmatprep.subr.bf16.mxu0 0
        %3238 = vmatpush1.bf16.msra.mxu0 0
        %3239 = vmatprep.subr.bf16.mxu0 0
        %3240 = vmatpush1.bf16.msra.mxu0 0
        %3241 = vmatprep.subr.bf16.mxu0 0
        %3242 = vmatpush1.bf16.msra.mxu0 0
        %3243 = vmatprep.subr.bf16.mxu0 0
        %3244 = vmatpush1.bf16.msra.mxu0 0
        %3245 = vmatprep.subr.bf16.mxu0 0
        %3246 = vmatpush1.bf16.msra.mxu0 0
        %3247 = vmatprep.subr.bf16.mxu0 0
        %3248 = vmatpush1.bf16.msra.mxu0 0
        %3249 = vmatprep.mubr.bf16.mxu0 0
        %3250 = vmatmul.mubr.bf16.gmra.mrb[0].mxu0 %v3215
        %v3251 = vpop.f32.mrb[0].mxu0
        %v3252 = vadd.f32 %v3200, %v3251
        %v3253 = vpop.f32.mrb[0].mxu0
        %v3254 = vpop.f32.mrb[0].mxu0
        %v3255 = vpop.f32.mrb[0].mxu0
        %3256 = vdwg.mxu0
        %v3257 = vmax.f32 %v3252, 0.0
        %v3258 = vpack.c.bf16 %v3257, %v3257
        %v3259 = vld [vmem:[%s11] sm:$0xf]
        %v3260 = vld [vmem:[%s11 + $0x4] sm:$0xf]
        %v3261 = vld [vmem:[%s11 + $0x8] sm:$0xf]
        %v3262 = vld [vmem:[%s11 + $0xc] sm:$0xf]
        %v3263 = vld [vmem:[%s11 + $0x10] sm:$0xf]
        %v3264 = vld [vmem:[%s11 + $0x14] sm:$0xf]
        %v3265 = vld [vmem:[%s11 + $0x18] sm:$0xf]
        %v3266 = vld [vmem:[%s11 + $0x1c] sm:$0xf]
        %v3267 = vlaneseq
        %v3268 = vshrl.u32 %v3267, 7
        %v3269 = vsub.s32 0, %v3268
        %v3270 = vrot.slane %v587, %v3269
        %v3279 = vunpack.c.l.b16 %v3259
        %v3280 = vunpack.c.l.b16 %v3260
        %v3281 = vunpack.c.l.b16 %v3261
        %v3282 = vunpack.c.l.b16 %v3262
        %v3283 = vunpack.c.l.b16 %v3263
        %v3284 = vunpack.c.l.b16 %v3264
        %v3285 = vunpack.c.l.b16 %v3265
        %v3286 = vunpack.c.l.b16 %v3266
        %v3287 = vpack.c.b16 %v3280, %v3279
        %v3288 = vpack.c.b16 %v3282, %v3281
        %v3289 = vpack.c.b16 %v3284, %v3283
        %v3290 = vpack.c.b16 %v3286, %v3285
        %vm3295 = vcmask 523264
        %v3297 = vsel %vm3295, %v3258, 0
        %3299 = vmatprep.subr.bf16.mxu0 0
        %3300 = vmatpush1.bf16.msra.mxu0 %v3287
        %3301 = vmatprep.subr.bf16.mxu0 0
        %3302 = vmatpush1.bf16.msra.mxu0 %v3288
        %3303 = vmatprep.subr.bf16.mxu0 0
        %3304 = vmatpush1.bf16.msra.mxu0 %v3289
        %3305 = vmatprep.subr.bf16.mxu0 0
        %3306 = vmatpush1.bf16.msra.mxu0 %v3290
        %3307 = vmatprep.subr.bf16.mxu0 0
        %3308 = vmatpush1.bf16.msra.mxu0 0
        %3309 = vmatprep.subr.bf16.mxu0 0
        %3310 = vmatpush1.bf16.msra.mxu0 0
        %3311 = vmatprep.subr.bf16.mxu0 0
        %3312 = vmatpush1.bf16.msra.mxu0 0
        %3313 = vmatprep.subr.bf16.mxu0 0
        %3314 = vmatpush1.bf16.msra.mxu0 0
        %3315 = vmatprep.subr.bf16.mxu0 0
        %3316 = vmatpush1.bf16.msra.mxu0 0
        %3317 = vmatprep.subr.bf16.mxu0 0
        %3318 = vmatpush1.bf16.msra.mxu0 0
        %3319 = vmatprep.subr.bf16.mxu0 0
        %3320 = vmatpush1.bf16.msra.mxu0 0
        %3321 = vmatprep.subr.bf16.mxu0 0
        %3322 = vmatpush1.bf16.msra.mxu0 0
        %3323 = vmatprep.subr.bf16.mxu0 0
        %3324 = vmatpush1.bf16.msra.mxu0 0
        %3325 = vmatprep.subr.bf16.mxu0 0
        %3326 = vmatpush1.bf16.msra.mxu0 0
        %3327 = vmatprep.subr.bf16.mxu0 0
        %3328 = vmatpush1.bf16.msra.mxu0 0
        %3329 = vmatprep.subr.bf16.mxu0 0
        %3330 = vmatpush1.bf16.msra.mxu0 0
        %3331 = vmatprep.mubr.bf16.mxu0 0
        %3332 = vmatmul.mubr.bf16.gmra.mrb[0].mxu0 %v3297
        %v3333 = vpop.f32.mrb[0].mxu0
        %v3334 = vadd.f32 %v3270, %v3333
        %v3335 = vpop.f32.mrb[0].mxu0
        %v3336 = vpop.f32.mrb[0].mxu0
        %v3337 = vpop.f32.mrb[0].mxu0
        %3338 = vdwg.mxu0
        %v3339 = vadd.f32 %v3189, %v3334
        %v3340 = vsel %vm609, %v3339, 0.0
        %3341 = vadd.xlane.f32.xlu0 %v3340
        %v3342 = vpop.xlane.xlu0 %3341
        %v3343 = vmul.f32 %v3342, %v1862
        %v3344 = vsub.f32 %v3339, %v3343
        %v3345 = vmul.f32 %v3344, %v3344
        %v3346 = vsel %vm609, %v3345, 0.0
        %3347 = vadd.xlane.f32.xlu0 %v3346
        %v3348 = vpop.xlane.xlu0 %3347
        %v3349 = vmul.f32 %v3348, %v1862
        %v3350 = vadd.f32 %v3349, 1e-05
        %v3351 = vrsqrt.pop %v3350
        %v3352 = vmul.f32 %v3344, %v3351
        %v3353 = vlaneseq
        %v3354 = vshrl.u32 %v3353, 7
        %v3355 = vsub.s32 5, %v3354
        %v3356 = vrot.slane %v587, %v3355
        %v3357 = vmul.f32 %v3352, %v3356
        %v3358 = vlaneseq
        %v3359 = vshrl.u32 %v3358, 7
        %v3360 = vsub.s32 6, %v3359
        %v3361 = vrot.slane %v587, %v3360
        %v3362 = vadd.f32 %v3357, %v3361
        %3363 = vst.msk [vmem:[%s573] sm:$0xff] %vm609, %v3362
        %s3364 = sand.u32 %s344, 1
        %s3365 = scalar_lea.sflag [#allocation4], %s3364
        %s3366 = sand.u32 %s344, 1
        %s3367 = smul.addr %s3366, 8
        %s3368 = scalar_lea.vmem [#allocation14], %s3367
        // Predicated region
        $region105: #{tpu_custom_call.1} parent=75 // pred_check
          %p3369 = pneg %p354
        $region106: #{tpu_custom_call.1} parent=75 // pred_check_branch
          %3371 = sbr.rel (%p3369) target = $region108
        $region107: #{tpu_custom_call.1} parent=75 // pred_region
          %s3373 = ssub.s32 128, 128
          %3374 = vsyncadd %s3365, %s3373
          %s3375 = smul.addr %s32, 128
          %s3376 = scalar_lea.hbm %s14, %s3375
          %s3378 = sshll.u32 %s3368, 4
          %s3379 = int_to_ptr.vmem [resolvable:$true] %s3378
          %3381 = dma.vmem_to_hbm [thread:$0]  %s3379, 128, %s3376, %s3365
        $region108: #{tpu_custom_call.1} parent=75 // pred_fallthru
          _
      $region76: #{tpu_custom_call.1} parent=5 // pred_fallthru
        _
      %p3382 = scmp.le.s32.totalorder 2, %s27
      // Predicated region
      $region109: #{tpu_custom_call.1} parent=5 // pred_check
        %p3383 = pneg %p3382
      $region110: #{tpu_custom_call.1} parent=5 // pred_check_branch
        %3385 = sbr.rel (%p3383) target = $region112
      $region111: #{tpu_custom_call.1} parent=5 // pred_region
        %s3386 = ssub.s32 %s27, 2
        // Predicated region
        $region113: #{tpu_custom_call.1} parent=111 // pred_check
          %p3387 = pneg %p360
        $region114: #{tpu_custom_call.1} parent=111 // pred_check_branch
          %3389 = sbr.rel (%p3387) target = $region116
        $region115: #{tpu_custom_call.1} parent=111 // pred_region
          %s3390 = sand.u32 %s345, 1
          %s3391 = scalar_lea.sflag [#allocation4], %s3390
          %s3392 = sand.u32 %s345, 1
          %s3393 = smul.addr %s3392, 8
          %s3394 = scalar_lea.vmem [#allocation14], %s3393
          %3395 = dma.done %s3391, 128
        $region116: #{tpu_custom_call.1} parent=111 // pred_fallthru
          _
      $region112: #{tpu_custom_call.1} parent=5 // pred_fallthru
        _
    $region6: #{tpu_custom_call.1} parent=1 // loop_footer
      %s31 = sadd.s32 1, %s27
    $region7: #{tpu_custom_call.1} parent=1 // loop_footer_branch
      %26 = sbr.rel target = $region3
    $region8: #{tpu_custom_call.1} parent=1 // loop_exit
      _
    %3396 = vsyncpa [#allocation3], 1
    %s3397 = scalar_lea.sflag [#allocation3], 1
    %3398 = vsyncpa %s3397, 1
    %3399 = vsyncpa [#allocation6], 1
    %3400 = vsyncpa [#allocation9], 1
    %3401 = vsyncpa [#allocation12], 1
    %3402 = vsyncpa [#allocation4], 1
    %s3403 = scalar_lea.sflag [#allocation4], 1
    %3404 = vsyncpa %s3403, 1

</llo_original>
